<compile_context>
chip_gen: v7x
topology: tpu7x:2x2x1
jax: 0.10.0
libtpu: 0.0.40
codegen_flags: <defaults>
</compile_context>

<pallas_src>
import functools

import jax
import jax.numpy as jnp
from jax.experimental import pallas as pl
from jax.experimental.pallas import tpu as pltpu

EPS = 1e-5          # BatchNorm eps
HIDDEN = 128
NUM_FILTERS = 25
KSIZE = 5
PAD = 2
LANE = 128
SUBLANE = 8


def _round_up(n, m):
    return ((n + m - 1) // m) * m


# ---------------------------------------------------------------------------
# Fused kernel: BN -> folded conv+input projection -> biLSTM -> FC
# ---------------------------------------------------------------------------
def _model9_kernel(x_ref, xr_ref, wf_ref, wb_ref, b_in_ref, whh_ref,
                   h0_ref, c0_ref, fc_w_ref, fc_b_ref,
                   out_ref, xg_buf, lstm_buf, *, batch, batch_pad, seq, hidden):
    B, Bp, S, H = batch, batch_pad, seq, hidden
    n_valid = float(S * B)
    n_pad_rows = float(S * (Bp - B))

    # --- BatchNorm1d, training mode (biased batch stats over the S*B valid
    # rows).  Padded batch rows are zero, so they drop out of the mean and
    # their (0-mean)^2 contribution is subtracted from the variance exactly.
    # TODO(synk): gamma/beta assumed 1/0 (fresh init); eval-mode running
    # stats / their updates are not modeled.
    x = x_ref[...]                                            # (S*Bp, F)
    mean = jnp.sum(x, axis=0, keepdims=True) / n_valid        # (1, F)
    cen = x - mean
    var = (jnp.sum(cen * cen, axis=0, keepdims=True)
           - n_pad_rows * mean * mean) / n_valid
    inv = jax.lax.rsqrt(var + EPS)
    xn = cen * inv
    xnr = (xr_ref[...] - mean) * inv                          # time-reversed rows

    # --- Folded conv+projection for BOTH directions.  Row block t already
    # holds [fwd proj @ t | bwd proj @ S-1-t] in gate-interleaved column
    # order, so the recurrence below does zero shuffling.
    xg_buf[...] = (jnp.dot(xn, wf_ref[...], preferred_element_type=jnp.float32)
                   + jnp.dot(xnr, wb_ref[...], preferred_element_type=jnp.float32)
                   + b_in_ref[...])                           # (S*Bp, 8H)

    # --- biLSTM recurrence, fully unrolled (S=8).  h/c carry both directions
    # ([fwd | bwd] along lanes); one MXU matmul (K=2H=256) per step.
    whh = whh_ref[...]                                        # (2H, 8H)
    h = h0_ref[...]                                           # (Bp, 2H)
    c = c0_ref[...]
    G2 = 2 * H
    for t in range(S):
        gates = (jnp.dot(h, whh, preferred_element_type=jnp.float32)
                 + xg_buf[t * Bp:(t + 1) * Bp, :])            # (Bp, 8H)
        i = jax.nn.sigmoid(gates[:, 0 * G2:1 * G2])
        f = jax.nn.sigmoid(gates[:, 1 * G2:2 * G2])
        g = jnp.tanh(gates[:, 2 * G2:3 * G2])
        o = jax.nn.sigmoid(gates[:, 3 * G2:4 * G2])
        c = f * c + i * g
        h = o * jnp.tanh(c)
        # Aligned full-tile stores: fwd hidden at time t, bwd hidden at S-1-t.
        lstm_buf[t * Bp:(t + 1) * Bp, 0:H] = h[:, 0:H]
        lstm_buf[(S - 1 - t) * Bp:(S - t) * Bp, H:2 * H] = h[:, H:2 * H]

    # --- Final linear; output lanes padded to 128 (sliced outside).
    out_ref[...] = (jnp.dot(lstm_buf[...], fc_w_ref[...],
                            preferred_element_type=jnp.float32)
                    + fc_b_ref[...])


def _fused_call(x_tm, x_rev, derived, *, batch, batch_pad, seq):
    Np = seq * batch_pad
    out_pad = derived["fc_w"].shape[1]
    kern = functools.partial(_model9_kernel, batch=batch, batch_pad=batch_pad,
                             seq=seq, hidden=HIDDEN)
    return pl.pallas_call(
        kern,
        out_shape=jax.ShapeDtypeStruct((Np, out_pad), jnp.float32),
        scratch_shapes=[
            pltpu.VMEM((Np, 8 * HIDDEN), jnp.float32),   # pre-assembled x gates
            pltpu.VMEM((Np, 2 * HIDDEN), jnp.float32),   # lstm outputs
        ],
    )(x_tm, x_rev, derived["w_f"], derived["w_b"], derived["b_in"],
      derived["whh"], derived["h0"], derived["c0"],
      derived["fc_w"], derived["fc_b"])


# ---------------------------------------------------------------------------
# Parameters (deterministic, matching Model9.__init__ shapes)
# ---------------------------------------------------------------------------
def init_params(key, input_size, output_size):
    C, K, H = NUM_FILTERS, KSIZE, HIDDEN
    lstm_in = C * input_size            # conv_out == input_size (k=5, p=2)
    ks = jax.random.split(key, 14)
    u = lambda k, shape, s: jax.random.uniform(k, shape, jnp.float32, -s, s)
    sk = 1.0 / (K ** 0.5)
    sh = 1.0 / (H ** 0.5)
    sl = 1.0 / ((2 * H) ** 0.5)
    return dict(
        conv_w=u(ks[0], (C, 1, K), sk),
        conv_b=u(ks[1], (C,), sk),
        w_ih_f=u(ks[2], (4 * H, lstm_in), sh),
        w_hh_f=u(ks[3], (4 * H, H), sh),
        b_ih_f=u(ks[4], (4 * H,), sh),
        b_hh_f=u(ks[5], (4 * H,), sh),
        w_ih_b=u(ks[6], (4 * H, lstm_in), sh),
        w_hh_b=u(ks[7], (4 * H, H), sh),
        b_ih_b=u(ks[8], (4 * H,), sh),
        b_hh_b=u(ks[9], (4 * H,), sh),
        fc_w=u(ks[10], (output_size, 2 * H), sl),
        fc_b=u(ks[11], (output_size,), sl),
        h0=jax.random.uniform(ks[12], (2, 1, H), jnp.float32),   # torch.rand
        c0=jax.random.uniform(ks[13], (2, 1, H), jnp.float32),   # torch.rand
    )


# ---------------------------------------------------------------------------
# One-time parameter-derived preprocessing (hoisted out of the forward)
# ---------------------------------------------------------------------------
def prepare_derived(params, input_size, batch):
    F = input_size
    C, K, H = NUM_FILTERS, KSIZE, HIDDEN
    CF = C * F
    Bp = _round_up(max(batch, 1), SUBLANE)

    # Toeplitz-expanded conv weight (F, C*F), channel-major cols (c*F + tau).
    conv_mat = jnp.zeros((F, C, F), jnp.float32)
    for k in range(K):
        off = k - PAD
        shift = jnp.eye(F, F, k=-off, dtype=jnp.float32)   # shift[j, j-off] = 1
        conv_mat = conv_mat + shift[:, None, :] * params["conv_w"][None, :, 0, k, None]
    conv_mat = conv_mat.reshape(F, CF)
    conv_bias_row = jnp.repeat(params["conv_b"], F).reshape(1, CF)

    # Gate-interleaved input weights / biases for both directions:
    # columns = [i_f i_b | f_f f_b | g_f g_b | o_f o_b], each block H wide
    # (PyTorch gate order i, f, g, o is preserved per direction).
    wih_f = params["w_ih_f"].T.reshape(CF, 4, H)
    wih_b = params["w_ih_b"].T.reshape(CF, 4, H)
    w_ih = jnp.stack([wih_f, wih_b], axis=2).reshape(CF, 8 * H)
    bf = (params["b_ih_f"] + params["b_hh_f"]).reshape(4, H)
    bb = (params["b_ih_b"] + params["b_hh_b"]).reshape(4, H)
    b_gates = jnp.stack([bf, bb], axis=1).reshape(1, 8 * H)

    # Fold conv into the projection (exact, all linear):
    #   xp = xn @ W_in + b_in   with   W_in = conv_mat @ W_ih.
    w_in = conv_mat @ w_ih                                   # (F, 8H)
    b_in = conv_bias_row @ w_ih + b_gates                    # (1, 8H)

    # Split W_in columns by direction so the kernel feeds the backward half
    # from time-reversed input rows with no per-step shuffling.
    fwd_mask = jnp.tile(jnp.concatenate([jnp.ones((H,), jnp.float32),
                                         jnp.zeros((H,), jnp.float32)]), 4)
    w_f = w_in * fwd_mask[None, :]
    w_b = w_in * (1.0 - fwd_mask)[None, :]

    # Block recurrent weight: rows [h_f | h_b] -> interleaved gate columns.
    whh = jnp.zeros((2 * H, 4, 2, H), jnp.float32)
    whh = whh.at[:H, :, 0, :].set(params["w_hh_f"].T.reshape(H, 4, H))
    whh = whh.at[H:, :, 1, :].set(params["w_hh_b"].T.reshape(H, 4, H))
    whh = whh.reshape(2 * H, 8 * H)

    # Initial states: Parameter.repeat(1, batch, 1), [fwd | bwd] along lanes,
    # batch padded to the sublane tile (padding rows never read back).
    h0 = jnp.tile(jnp.concatenate([params["h0"][0], params["h0"][1]], axis=-1),
                  (Bp, 1))                                   # (Bp, 2H)
    c0 = jnp.tile(jnp.concatenate([params["c0"][0], params["c0"][1]], axis=-1),
                  (Bp, 1))

    # Final FC, output lanes padded to 128.
    out_size = params["fc_w"].shape[0]
    out_pad = _round_up(out_size, LANE)
    fc_w = jnp.pad(params["fc_w"].T, ((0, 0), (0, out_pad - out_size)))
    fc_b = jnp.pad(params["fc_b"], (0, out_pad - out_size)).reshape(1, out_pad)

    return dict(w_f=w_f, w_b=w_b, b_in=b_in, whh=whh, h0=h0, c0=c0,
                fc_w=fc_w, fc_b=fc_b)


# ---------------------------------------------------------------------------
# Forward pass (single fused Pallas kernel + tiny layout glue)
# ---------------------------------------------------------------------------
def model9_forward(derived, inputs, *, output_size):
    B, S, F = inputs.shape
    Bp = _round_up(B, SUBLANE)
    # Time-major, zero-padded to Bp sublanes, plus a time-reversed copy for
    # the backward LSTM direction (tiny arrays; negligible wrapper cost).
    x_tm = jnp.pad(inputs.transpose(1, 0, 2), ((0, 0), (0, Bp - B), (0, 0)))
    x_rev = x_tm[::-1]
    out = _fused_call(x_tm.reshape(S * Bp, F), x_rev.reshape(S * Bp, F),
                      derived, batch=B, batch_pad=Bp, seq=S)   # (S*Bp, 128)
    out = out.reshape(S, Bp, -1)[:, :B, :output_size].transpose(1, 0, 2)
    return out                                                 # (B, S, out)


if __name__ == "__main__":
    input_size = 16
    output_size = 4
    batch, seq = 2, 8

    key = jax.random.PRNGKey(0)
    pkey, xkey = jax.random.split(key)
    params = init_params(pkey, input_size, output_size)
    x = jax.random.normal(xkey, (batch, seq, input_size), jnp.float32)

    # Hoisted, computed once (depends only on params / static batch).
    derived = prepare_derived(params, input_size, batch)

    fwd = jax.jit(functools.partial(model9_forward, output_size=output_size))
    logits = fwd(derived, x)
    jax.block_until_ready(logits)
    assert logits.shape == (batch, seq, output_size)
    assert logits.dtype == jnp.float32
    print("KERNEL_OK")
</pallas_src>

<mosaic_0001>
module attributes {stable_mosaic.version = 11 : i64} {
  func.func @_model9_kernel(%arg0: memref<64x16xf32, #tpu.memory_space<vmem>>, %arg1: memref<64x16xf32, #tpu.memory_space<vmem>>, %arg2: memref<16x1024xf32, #tpu.memory_space<vmem>>, %arg3: memref<16x1024xf32, #tpu.memory_space<vmem>>, %arg4: memref<1x1024xf32, #tpu.memory_space<vmem>>, %arg5: memref<256x1024xf32, #tpu.memory_space<vmem>>, %arg6: memref<8x256xf32, #tpu.memory_space<vmem>>, %arg7: memref<8x256xf32, #tpu.memory_space<vmem>>, %arg8: memref<256x128xf32, #tpu.memory_space<vmem>>, %arg9: memref<1x128xf32, #tpu.memory_space<vmem>>, %arg10: memref<64x128xf32, #tpu.memory_space<vmem>>, %arg11: memref<64x1024xf32, #tpu.memory_space<vmem>>, %arg12: memref<64x256xf32, #tpu.memory_space<vmem>>) attributes {dimension_semantics = [], scalar_prefetch = 0 : i64, scratch_operands = 2 : i64, tpu.core_type = #tpu.core_type<tc>} {
    %c0 = arith.constant 0 : index
    %c0_0 = arith.constant 0 : index
    %0 = vector.load %arg0[%c0, %c0_0] : memref<64x16xf32, #tpu.memory_space<vmem>>, vector<64x16xf32>
    %cst = arith.constant dense<0.000000e+00> : vector<16xf32>
    %1 = vector.multi_reduction <add>, %0, %cst [0] : vector<64x16xf32> to vector<16xf32>
    %2 = vector.shape_cast %1 : vector<16xf32> to vector<1x16xf32>
    %cst_1 = arith.constant 1.600000e+01 : f32
    %3 = vector.broadcast %cst_1 : f32 to vector<1x16xf32>
    %4 = arith.divf %2, %3 : vector<1x16xf32>
    %5 = vector.broadcast %4 : vector<1x16xf32> to vector<64x16xf32>
    %6 = arith.subf %0, %5 : vector<64x16xf32>
    %7 = arith.mulf %6, %6 : vector<64x16xf32>
    %cst_2 = arith.constant dense<0.000000e+00> : vector<16xf32>
    %8 = vector.multi_reduction <add>, %7, %cst_2 [0] : vector<64x16xf32> to vector<16xf32>
    %9 = vector.shape_cast %8 : vector<16xf32> to vector<1x16xf32>
    %cst_3 = arith.constant 4.800000e+01 : f32
    %10 = vector.broadcast %cst_3 : f32 to vector<1x16xf32>
    %11 = arith.mulf %10, %4 : vector<1x16xf32>
    %12 = arith.mulf %11, %4 : vector<1x16xf32>
    %13 = arith.subf %9, %12 : vector<1x16xf32>
    %cst_4 = arith.constant 1.600000e+01 : f32
    %14 = vector.broadcast %cst_4 : f32 to vector<1x16xf32>
    %15 = arith.divf %13, %14 : vector<1x16xf32>
    %cst_5 = arith.constant 9.99999974E-6 : f32
    %16 = vector.broadcast %cst_5 : f32 to vector<1x16xf32>
    %17 = arith.addf %15, %16 : vector<1x16xf32>
    %18 = math.rsqrt %17 : vector<1x16xf32>
    %19 = vector.broadcast %18 : vector<1x16xf32> to vector<64x16xf32>
    %20 = arith.mulf %6, %19 : vector<64x16xf32>
    %c0_6 = arith.constant 0 : index
    %c0_7 = arith.constant 0 : index
    %21 = vector.load %arg1[%c0_6, %c0_7] : memref<64x16xf32, #tpu.memory_space<vmem>>, vector<64x16xf32>
    %22 = vector.broadcast %4 : vector<1x16xf32> to vector<64x16xf32>
    %23 = arith.subf %21, %22 : vector<64x16xf32>
    %24 = vector.broadcast %18 : vector<1x16xf32> to vector<64x16xf32>
    %25 = arith.mulf %23, %24 : vector<64x16xf32>
    %c0_8 = arith.constant 0 : index
    %c0_9 = arith.constant 0 : index
    %26 = vector.load %arg2[%c0_8, %c0_9] : memref<16x1024xf32, #tpu.memory_space<vmem>>, vector<16x1024xf32>
    %cst_10 = arith.constant dense<0.000000e+00> : vector<64x1024xf32>
    %27 = tpu.matmul %20, %26, %cst_10 {dimension_numbers = #tpu.dot_dimension_numbers<[1], [0], [0], [1], [0, 0, 1, 1], [], []>} : vector<64x16xf32>, vector<16x1024xf32>, vector<64x1024xf32> -> vector<64x1024xf32>
    %c0_11 = arith.constant 0 : index
    %c0_12 = arith.constant 0 : index
    %28 = vector.load %arg3[%c0_11, %c0_12] : memref<16x1024xf32, #tpu.memory_space<vmem>>, vector<16x1024xf32>
    %cst_13 = arith.constant dense<0.000000e+00> : vector<64x1024xf32>
    %29 = tpu.matmul %25, %28, %cst_13 {dimension_numbers = #tpu.dot_dimension_numbers<[1], [0], [0], [1], [0, 0, 1, 1], [], []>} : vector<64x16xf32>, vector<16x1024xf32>, vector<64x1024xf32> -> vector<64x1024xf32>
    %30 = arith.addf %27, %29 : vector<64x1024xf32>
    %c0_14 = arith.constant 0 : index
    %c0_15 = arith.constant 0 : index
    %31 = vector.load %arg4[%c0_14, %c0_15] : memref<1x1024xf32, #tpu.memory_space<vmem>>, vector<1x1024xf32>
    %32 = vector.broadcast %31 : vector<1x1024xf32> to vector<64x1024xf32>
    %33 = arith.addf %30, %32 : vector<64x1024xf32>
    %c0_16 = arith.constant 0 : index
    %c0_17 = arith.constant 0 : index
    %34 = vector.load %arg11[%c0_16, %c0_17] : memref<64x1024xf32, #tpu.memory_space<vmem>>, vector<64x1024xf32>
    tpu.vector_store %arg11[%c0_16, %c0_17], %33 {strides = array<i32>} : memref<64x1024xf32, #tpu.memory_space<vmem>>, vector<64x1024xf32>,
    %c0_18 = arith.constant 0 : index
    %c0_19 = arith.constant 0 : index
    %35 = vector.load %arg5[%c0_18, %c0_19] : memref<256x1024xf32, #tpu.memory_space<vmem>>, vector<256x1024xf32>
    %c0_20 = arith.constant 0 : index
    %c0_21 = arith.constant 0 : index
    %36 = vector.load %arg6[%c0_20, %c0_21] : memref<8x256xf32, #tpu.memory_space<vmem>>, vector<8x256xf32>
    %c0_22 = arith.constant 0 : index
    %c0_23 = arith.constant 0 : index
    %37 = vector.load %arg7[%c0_22, %c0_23] : memref<8x256xf32, #tpu.memory_space<vmem>>, vector<8x256xf32>
    %cst_24 = arith.constant dense<0.000000e+00> : vector<8x1024xf32>
    %38 = tpu.matmul %36, %35, %cst_24 {dimension_numbers = #tpu.dot_dimension_numbers<[1], [0], [0], [1], [0, 0, 1, 1], [], []>} : vector<8x256xf32>, vector<256x1024xf32>, vector<8x1024xf32> -> vector<8x1024xf32>
    %c0_25 = arith.constant 0 : index
    %c0_26 = arith.constant 0 : index
    %39 = vector.load %arg11[%c0_25, %c0_26] : memref<64x1024xf32, #tpu.memory_space<vmem>>, vector<8x1024xf32>
    %40 = arith.addf %38, %39 : vector<8x1024xf32>
    %41 = vector.extract_strided_slice %40 {offsets = [0, 0], sizes = [8, 256], strides = [1, 1]} : vector<8x1024xf32> to vector<8x256xf32>
    %42 = arith.negf %41 : vector<8x256xf32>
    %43 = math.exp %42 : vector<8x256xf32>
    %cst_27 = arith.constant 1.000000e+00 : f32
    %44 = vector.broadcast %cst_27 : f32 to vector<8x256xf32>
    %45 = arith.addf %44, %43 : vector<8x256xf32>
    %46 = arith.divf %44, %45 : vector<8x256xf32>
    %47 = vector.extract_strided_slice %40 {offsets = [0, 256], sizes = [8, 256], strides = [1, 1]} : vector<8x1024xf32> to vector<8x256xf32>
    %48 = arith.negf %47 : vector<8x256xf32>
    %49 = math.exp %48 : vector<8x256xf32>
    %cst_28 = arith.constant 1.000000e+00 : f32
    %50 = vector.broadcast %cst_28 : f32 to vector<8x256xf32>
    %51 = arith.addf %50, %49 : vector<8x256xf32>
    %52 = arith.divf %50, %51 : vector<8x256xf32>
    %53 = vector.extract_strided_slice %40 {offsets = [0, 512], sizes = [8, 256], strides = [1, 1]} : vector<8x1024xf32> to vector<8x256xf32>
    %54 = math.tanh %53 : vector<8x256xf32>
    %55 = vector.extract_strided_slice %40 {offsets = [0, 768], sizes = [8, 256], strides = [1, 1]} : vector<8x1024xf32> to vector<8x256xf32>
    %56 = arith.negf %55 : vector<8x256xf32>
    %57 = math.exp %56 : vector<8x256xf32>
    %cst_29 = arith.constant 1.000000e+00 : f32
    %58 = vector.broadcast %cst_29 : f32 to vector<8x256xf32>
    %59 = arith.addf %58, %57 : vector<8x256xf32>
    %60 = arith.divf %58, %59 : vector<8x256xf32>
    %61 = arith.mulf %52, %37 : vector<8x256xf32>
    %62 = arith.mulf %46, %54 : vector<8x256xf32>
    %63 = arith.addf %61, %62 : vector<8x256xf32>
    %64 = math.tanh %63 : vector<8x256xf32>
    %65 = arith.mulf %60, %64 : vector<8x256xf32>
    %66 = vector.extract_strided_slice %65 {offsets = [0, 0], sizes = [8, 128], strides = [1, 1]} : vector<8x256xf32> to vector<8x128xf32>
    %c0_30 = arith.constant 0 : index
    %c0_31 = arith.constant 0 : index
    %67 = vector.load %arg12[%c0_30, %c0_31] : memref<64x256xf32, #tpu.memory_space<vmem>>, vector<8x128xf32>
    tpu.vector_store %arg12[%c0_30, %c0_31], %66 {strides = array<i32>} : memref<64x256xf32, #tpu.memory_space<vmem>>, vector<8x128xf32>,
    %68 = vector.extract_strided_slice %65 {offsets = [0, 128], sizes = [8, 128], strides = [1, 1]} : vector<8x256xf32> to vector<8x128xf32>
    %c56 = arith.constant 56 : index
    %c128 = arith.constant 128 : index
    %69 = vector.load %arg12[%c56, %c128] : memref<64x256xf32, #tpu.memory_space<vmem>>, vector<8x128xf32>
    tpu.vector_store %arg12[%c56, %c128], %68 {strides = array<i32>} : memref<64x256xf32, #tpu.memory_space<vmem>>, vector<8x128xf32>,
    %cst_32 = arith.constant dense<0.000000e+00> : vector<8x1024xf32>
    %70 = tpu.matmul %65, %35, %cst_32 {dimension_numbers = #tpu.dot_dimension_numbers<[1], [0], [0], [1], [0, 0, 1, 1], [], []>} : vector<8x256xf32>, vector<256x1024xf32>, vector<8x1024xf32> -> vector<8x1024xf32>
    %c8 = arith.constant 8 : index
    %c0_33 = arith.constant 0 : index
    %71 = vector.load %arg11[%c8, %c0_33] : memref<64x1024xf32, #tpu.memory_space<vmem>>, vector<8x1024xf32>
    %72 = arith.addf %70, %71 : vector<8x1024xf32>
    %73 = vector.extract_strided_slice %72 {offsets = [0, 0], sizes = [8, 256], strides = [1, 1]} : vector<8x1024xf32> to vector<8x256xf32>
    %74 = arith.negf %73 : vector<8x256xf32>
    %75 = math.exp %74 : vector<8x256xf32>
    %cst_34 = arith.constant 1.000000e+00 : f32
    %76 = vector.broadcast %cst_34 : f32 to vector<8x256xf32>
    %77 = arith.addf %76, %75 : vector<8x256xf32>
    %78 = arith.divf %76, %77 : vector<8x256xf32>
    %79 = vector.extract_strided_slice %72 {offsets = [0, 256], sizes = [8, 256], strides = [1, 1]} : vector<8x1024xf32> to vector<8x256xf32>
    %80 = arith.negf %79 : vector<8x256xf32>
    %81 = math.exp %80 : vector<8x256xf32>
    %cst_35 = arith.constant 1.000000e+00 : f32
    %82 = vector.broadcast %cst_35 : f32 to vector<8x256xf32>
    %83 = arith.addf %82, %81 : vector<8x256xf32>
    %84 = arith.divf %82, %83 : vector<8x256xf32>
    %85 = vector.extract_strided_slice %72 {offsets = [0, 512], sizes = [8, 256], strides = [1, 1]} : vector<8x1024xf32> to vector<8x256xf32>
    %86 = math.tanh %85 : vector<8x256xf32>
    %87 = vector.extract_strided_slice %72 {offsets = [0, 768], sizes = [8, 256], strides = [1, 1]} : vector<8x1024xf32> to vector<8x256xf32>
    %88 = arith.negf %87 : vector<8x256xf32>
    %89 = math.exp %88 : vector<8x256xf32>
    %cst_36 = arith.constant 1.000000e+00 : f32
    %90 = vector.broadcast %cst_36 : f32 to vector<8x256xf32>
    %91 = arith.addf %90, %89 : vector<8x256xf32>
    %92 = arith.divf %90, %91 : vector<8x256xf32>
    %93 = arith.mulf %84, %63 : vector<8x256xf32>
    %94 = arith.mulf %78, %86 : vector<8x256xf32>
    %95 = arith.addf %93, %94 : vector<8x256xf32>
    %96 = math.tanh %95 : vector<8x256xf32>
    %97 = arith.mulf %92, %96 : vector<8x256xf32>
    %98 = vector.extract_strided_slice %97 {offsets = [0, 0], sizes = [8, 128], strides = [1, 1]} : vector<8x256xf32> to vector<8x128xf32>
    %c8_37 = arith.constant 8 : index
    %c0_38 = arith.constant 0 : index
    %99 = vector.load %arg12[%c8_37, %c0_38] : memref<64x256xf32, #tpu.memory_space<vmem>>, vector<8x128xf32>
    tpu.vector_store %arg12[%c8_37, %c0_38], %98 {strides = array<i32>} : memref<64x256xf32, #tpu.memory_space<vmem>>, vector<8x128xf32>,
    %100 = vector.extract_strided_slice %97 {offsets = [0, 128], sizes = [8, 128], strides = [1, 1]} : vector<8x256xf32> to vector<8x128xf32>
    %c48 = arith.constant 48 : index
    %c128_39 = arith.constant 128 : index
    %101 = vector.load %arg12[%c48, %c128_39] : memref<64x256xf32, #tpu.memory_space<vmem>>, vector<8x128xf32>
    tpu.vector_store %arg12[%c48, %c128_39], %100 {strides = array<i32>} : memref<64x256xf32, #tpu.memory_space<vmem>>, vector<8x128xf32>,
    %cst_40 = arith.constant dense<0.000000e+00> : vector<8x1024xf32>
    %102 = tpu.matmul %97, %35, %cst_40 {dimension_numbers = #tpu.dot_dimension_numbers<[1], [0], [0], [1], [0, 0, 1, 1], [], []>} : vector<8x256xf32>, vector<256x1024xf32>, vector<8x1024xf32> -> vector<8x1024xf32>
    %c16 = arith.constant 16 : index
    %c0_41 = arith.constant 0 : index
    %103 = vector.load %arg11[%c16, %c0_41] : memref<64x1024xf32, #tpu.memory_space<vmem>>, vector<8x1024xf32>
    %104 = arith.addf %102, %103 : vector<8x1024xf32>
    %105 = vector.extract_strided_slice %104 {offsets = [0, 0], sizes = [8, 256], strides = [1, 1]} : vector<8x1024xf32> to vector<8x256xf32>
    %106 = arith.negf %105 : vector<8x256xf32>
    %107 = math.exp %106 : vector<8x256xf32>
    %cst_42 = arith.constant 1.000000e+00 : f32
    %108 = vector.broadcast %cst_42 : f32 to vector<8x256xf32>
    %109 = arith.addf %108, %107 : vector<8x256xf32>
    %110 = arith.divf %108, %109 : vector<8x256xf32>
    %111 = vector.extract_strided_slice %104 {offsets = [0, 256], sizes = [8, 256], strides = [1, 1]} : vector<8x1024xf32> to vector<8x256xf32>
    %112 = arith.negf %111 : vector<8x256xf32>
    %113 = math.exp %112 : vector<8x256xf32>
    %cst_43 = arith.constant 1.000000e+00 : f32
    %114 = vector.broadcast %cst_43 : f32 to vector<8x256xf32>
    %115 = arith.addf %114, %113 : vector<8x256xf32>
    %116 = arith.divf %114, %115 : vector<8x256xf32>
    %117 = vector.extract_strided_slice %104 {offsets = [0, 512], sizes = [8, 256], strides = [1, 1]} : vector<8x1024xf32> to vector<8x256xf32>
    %118 = math.tanh %117 : vector<8x256xf32>
    %119 = vector.extract_strided_slice %104 {offsets = [0, 768], sizes = [8, 256], strides = [1, 1]} : vector<8x1024xf32> to vector<8x256xf32>
    %120 = arith.negf %119 : vector<8x256xf32>
    %121 = math.exp %120 : vector<8x256xf32>
    %cst_44 = arith.constant 1.000000e+00 : f32
    %122 = vector.broadcast %cst_44 : f32 to vector<8x256xf32>
    %123 = arith.addf %122, %121 : vector<8x256xf32>
    %124 = arith.divf %122, %123 : vector<8x256xf32>
    %125 = arith.mulf %116, %95 : vector<8x256xf32>
    %126 = arith.mulf %110, %118 : vector<8x256xf32>
    %127 = arith.addf %125, %126 : vector<8x256xf32>
    %128 = math.tanh %127 : vector<8x256xf32>
    %129 = arith.mulf %124, %128 : vector<8x256xf32>
    %130 = vector.extract_strided_slice %129 {offsets = [0, 0], sizes = [8, 128], strides = [1, 1]} : vector<8x256xf32> to vector<8x128xf32>
    %c16_45 = arith.constant 16 : index
    %c0_46 = arith.constant 0 : index
    %131 = vector.load %arg12[%c16_45, %c0_46] : memref<64x256xf32, #tpu.memory_space<vmem>>, vector<8x128xf32>
    tpu.vector_store %arg12[%c16_45, %c0_46], %130 {strides = array<i32>} : memref<64x256xf32, #tpu.memory_space<vmem>>, vector<8x128xf32>,
    %132 = vector.extract_strided_slice %129 {offsets = [0, 128], sizes = [8, 128], strides = [1, 1]} : vector<8x256xf32> to vector<8x128xf32>
    %c40 = arith.constant 40 : index
    %c128_47 = arith.constant 128 : index
    %133 = vector.load %arg12[%c40, %c128_47] : memref<64x256xf32, #tpu.memory_space<vmem>>, vector<8x128xf32>
    tpu.vector_store %arg12[%c40, %c128_47], %132 {strides = array<i32>} : memref<64x256xf32, #tpu.memory_space<vmem>>, vector<8x128xf32>,
    %cst_48 = arith.constant dense<0.000000e+00> : vector<8x1024xf32>
    %134 = tpu.matmul %129, %35, %cst_48 {dimension_numbers = #tpu.dot_dimension_numbers<[1], [0], [0], [1], [0, 0, 1, 1], [], []>} : vector<8x256xf32>, vector<256x1024xf32>, vector<8x1024xf32> -> vector<8x1024xf32>
    %c24 = arith.constant 24 : index
    %c0_49 = arith.constant 0 : index
    %135 = vector.load %arg11[%c24, %c0_49] : memref<64x1024xf32, #tpu.memory_space<vmem>>, vector<8x1024xf32>
    %136 = arith.addf %134, %135 : vector<8x1024xf32>
    %137 = vector.extract_strided_slice %136 {offsets = [0, 0], sizes = [8, 256], strides = [1, 1]} : vector<8x1024xf32> to vector<8x256xf32>
    %138 = arith.negf %137 : vector<8x256xf32>
    %139 = math.exp %138 : vector<8x256xf32>
    %cst_50 = arith.constant 1.000000e+00 : f32
    %140 = vector.broadcast %cst_50 : f32 to vector<8x256xf32>
    %141 = arith.addf %140, %139 : vector<8x256xf32>
    %142 = arith.divf %140, %141 : vector<8x256xf32>
    %143 = vector.extract_strided_slice %136 {offsets = [0, 256], sizes = [8, 256], strides = [1, 1]} : vector<8x1024xf32> to vector<8x256xf32>
    %144 = arith.negf %143 : vector<8x256xf32>
    %145 = math.exp %144 : vector<8x256xf32>
    %cst_51 = arith.constant 1.000000e+00 : f32
    %146 = vector.broadcast %cst_51 : f32 to vector<8x256xf32>
    %147 = arith.addf %146, %145 : vector<8x256xf32>
    %148 = arith.divf %146, %147 : vector<8x256xf32>
    %149 = vector.extract_strided_slice %136 {offsets = [0, 512], sizes = [8, 256], strides = [1, 1]} : vector<8x1024xf32> to vector<8x256xf32>
    %150 = math.tanh %149 : vector<8x256xf32>
    %151 = vector.extract_strided_slice %136 {offsets = [0, 768], sizes = [8, 256], strides = [1, 1]} : vector<8x1024xf32> to vector<8x256xf32>
    %152 = arith.negf %151 : vector<8x256xf32>
    %153 = math.exp %152 : vector<8x256xf32>
    %cst_52 = arith.constant 1.000000e+00 : f32
    %154 = vector.broadcast %cst_52 : f32 to vector<8x256xf32>
    %155 = arith.addf %154, %153 : vector<8x256xf32>
    %156 = arith.divf %154, %155 : vector<8x256xf32>
    %157 = arith.mulf %148, %127 : vector<8x256xf32>
    %158 = arith.mulf %142, %150 : vector<8x256xf32>
    %159 = arith.addf %157, %158 : vector<8x256xf32>
    %160 = math.tanh %159 : vector<8x256xf32>
    %161 = arith.mulf %156, %160 : vector<8x256xf32>
    %162 = vector.extract_strided_slice %161 {offsets = [0, 0], sizes = [8, 128], strides = [1, 1]} : vector<8x256xf32> to vector<8x128xf32>
    %c24_53 = arith.constant 24 : index
    %c0_54 = arith.constant 0 : index
    %163 = vector.load %arg12[%c24_53, %c0_54] : memref<64x256xf32, #tpu.memory_space<vmem>>, vector<8x128xf32>
    tpu.vector_store %arg12[%c24_53, %c0_54], %162 {strides = array<i32>} : memref<64x256xf32, #tpu.memory_space<vmem>>, vector<8x128xf32>,
    %164 = vector.extract_strided_slice %161 {offsets = [0, 128], sizes = [8, 128], strides = [1, 1]} : vector<8x256xf32> to vector<8x128xf32>
    %c32 = arith.constant 32 : index
    %c128_55 = arith.constant 128 : index
    %165 = vector.load %arg12[%c32, %c128_55] : memref<64x256xf32, #tpu.memory_space<vmem>>, vector<8x128xf32>
    tpu.vector_store %arg12[%c32, %c128_55], %164 {strides = array<i32>} : memref<64x256xf32, #tpu.memory_space<vmem>>, vector<8x128xf32>,
    %cst_56 = arith.constant dense<0.000000e+00> : vector<8x1024xf32>
    %166 = tpu.matmul %161, %35, %cst_56 {dimension_numbers = #tpu.dot_dimension_numbers<[1], [0], [0], [1], [0, 0, 1, 1], [], []>} : vector<8x256xf32>, vector<256x1024xf32>, vector<8x1024xf32> -> vector<8x1024xf32>
    %c32_57 = arith.constant 32 : index
    %c0_58 = arith.constant 0 : index
    %167 = vector.load %arg11[%c32_57, %c0_58] : memref<64x1024xf32, #tpu.memory_space<vmem>>, vector<8x1024xf32>
    %168 = arith.addf %166, %167 : vector<8x1024xf32>
    %169 = vector.extract_strided_slice %168 {offsets = [0, 0], sizes = [8, 256], strides = [1, 1]} : vector<8x1024xf32> to vector<8x256xf32>
    %170 = arith.negf %169 : vector<8x256xf32>
    %171 = math.exp %170 : vector<8x256xf32>
    %cst_59 = arith.constant 1.000000e+00 : f32
    %172 = vector.broadcast %cst_59 : f32 to vector<8x256xf32>
    %173 = arith.addf %172, %171 : vector<8x256xf32>
    %174 = arith.divf %172, %173 : vector<8x256xf32>
    %175 = vector.extract_strided_slice %168 {offsets = [0, 256], sizes = [8, 256], strides = [1, 1]} : vector<8x1024xf32> to vector<8x256xf32>
    %176 = arith.negf %175 : vector<8x256xf32>
    %177 = math.exp %176 : vector<8x256xf32>
    %cst_60 = arith.constant 1.000000e+00 : f32
    %178 = vector.broadcast %cst_60 : f32 to vector<8x256xf32>
    %179 = arith.addf %178, %177 : vector<8x256xf32>
    %180 = arith.divf %178, %179 : vector<8x256xf32>
    %181 = vector.extract_strided_slice %168 {offsets = [0, 512], sizes = [8, 256], strides = [1, 1]} : vector<8x1024xf32> to vector<8x256xf32>
    %182 = math.tanh %181 : vector<8x256xf32>
    %183 = vector.extract_strided_slice %168 {offsets = [0, 768], sizes = [8, 256], strides = [1, 1]} : vector<8x1024xf32> to vector<8x256xf32>
    %184 = arith.negf %183 : vector<8x256xf32>
    %185 = math.exp %184 : vector<8x256xf32>
    %cst_61 = arith.constant 1.000000e+00 : f32
    %186 = vector.broadcast %cst_61 : f32 to vector<8x256xf32>
    %187 = arith.addf %186, %185 : vector<8x256xf32>
    %188 = arith.divf %186, %187 : vector<8x256xf32>
    %189 = arith.mulf %180, %159 : vector<8x256xf32>
    %190 = arith.mulf %174, %182 : vector<8x256xf32>
    %191 = arith.addf %189, %190 : vector<8x256xf32>
    %192 = math.tanh %191 : vector<8x256xf32>
    %193 = arith.mulf %188, %192 : vector<8x256xf32>
    %194 = vector.extract_strided_slice %193 {offsets = [0, 0], sizes = [8, 128], strides = [1, 1]} : vector<8x256xf32> to vector<8x128xf32>
    %c32_62 = arith.constant 32 : index
    %c0_63 = arith.constant 0 : index
    %195 = vector.load %arg12[%c32_62, %c0_63] : memref<64x256xf32, #tpu.memory_space<vmem>>, vector<8x128xf32>
    tpu.vector_store %arg12[%c32_62, %c0_63], %194 {strides = array<i32>} : memref<64x256xf32, #tpu.memory_space<vmem>>, vector<8x128xf32>,
    %196 = vector.extract_strided_slice %193 {offsets = [0, 128], sizes = [8, 128], strides = [1, 1]} : vector<8x256xf32> to vector<8x128xf32>
    %c24_64 = arith.constant 24 : index
    %c128_65 = arith.constant 128 : index
    %197 = vector.load %arg12[%c24_64, %c128_65] : memref<64x256xf32, #tpu.memory_space<vmem>>, vector<8x128xf32>
    tpu.vector_store %arg12[%c24_64, %c128_65], %196 {strides = array<i32>} : memref<64x256xf32, #tpu.memory_space<vmem>>, vector<8x128xf32>,
    %cst_66 = arith.constant dense<0.000000e+00> : vector<8x1024xf32>
    %198 = tpu.matmul %193, %35, %cst_66 {dimension_numbers = #tpu.dot_dimension_numbers<[1], [0], [0], [1], [0, 0, 1, 1], [], []>} : vector<8x256xf32>, vector<256x1024xf32>, vector<8x1024xf32> -> vector<8x1024xf32>
    %c40_67 = arith.constant 40 : index
    %c0_68 = arith.constant 0 : index
    %199 = vector.load %arg11[%c40_67, %c0_68] : memref<64x1024xf32, #tpu.memory_space<vmem>>, vector<8x1024xf32>
    %200 = arith.addf %198, %199 : vector<8x1024xf32>
    %201 = vector.extract_strided_slice %200 {offsets = [0, 0], sizes = [8, 256], strides = [1, 1]} : vector<8x1024xf32> to vector<8x256xf32>
    %202 = arith.negf %201 : vector<8x256xf32>
    %203 = math.exp %202 : vector<8x256xf32>
    %cst_69 = arith.constant 1.000000e+00 : f32
    %204 = vector.broadcast %cst_69 : f32 to vector<8x256xf32>
    %205 = arith.addf %204, %203 : vector<8x256xf32>
    %206 = arith.divf %204, %205 : vector<8x256xf32>
    %207 = vector.extract_strided_slice %200 {offsets = [0, 256], sizes = [8, 256], strides = [1, 1]} : vector<8x1024xf32> to vector<8x256xf32>
    %208 = arith.negf %207 : vector<8x256xf32>
    %209 = math.exp %208 : vector<8x256xf32>
    %cst_70 = arith.constant 1.000000e+00 : f32
    %210 = vector.broadcast %cst_70 : f32 to vector<8x256xf32>
    %211 = arith.addf %210, %209 : vector<8x256xf32>
    %212 = arith.divf %210, %211 : vector<8x256xf32>
    %213 = vector.extract_strided_slice %200 {offsets = [0, 512], sizes = [8, 256], strides = [1, 1]} : vector<8x1024xf32> to vector<8x256xf32>
    %214 = math.tanh %213 : vector<8x256xf32>
    %215 = vector.extract_strided_slice %200 {offsets = [0, 768], sizes = [8, 256], strides = [1, 1]} : vector<8x1024xf32> to vector<8x256xf32>
    %216 = arith.negf %215 : vector<8x256xf32>
    %217 = math.exp %216 : vector<8x256xf32>
    %cst_71 = arith.constant 1.000000e+00 : f32
    %218 = vector.broadcast %cst_71 : f32 to vector<8x256xf32>
    %219 = arith.addf %218, %217 : vector<8x256xf32>
    %220 = arith.divf %218, %219 : vector<8x256xf32>
    %221 = arith.mulf %212, %191 : vector<8x256xf32>
    %222 = arith.mulf %206, %214 : vector<8x256xf32>
    %223 = arith.addf %221, %222 : vector<8x256xf32>
    %224 = math.tanh %223 : vector<8x256xf32>
    %225 = arith.mulf %220, %224 : vector<8x256xf32>
    %226 = vector.extract_strided_slice %225 {offsets = [0, 0], sizes = [8, 128], strides = [1, 1]} : vector<8x256xf32> to vector<8x128xf32>
    %c40_72 = arith.constant 40 : index
    %c0_73 = arith.constant 0 : index
    %227 = vector.load %arg12[%c40_72, %c0_73] : memref<64x256xf32, #tpu.memory_space<vmem>>, vector<8x128xf32>
    tpu.vector_store %arg12[%c40_72, %c0_73], %226 {strides = array<i32>} : memref<64x256xf32, #tpu.memory_space<vmem>>, vector<8x128xf32>,
    %228 = vector.extract_strided_slice %225 {offsets = [0, 128], sizes = [8, 128], strides = [1, 1]} : vector<8x256xf32> to vector<8x128xf32>
    %c16_74 = arith.constant 16 : index
    %c128_75 = arith.constant 128 : index
    %229 = vector.load %arg12[%c16_74, %c128_75] : memref<64x256xf32, #tpu.memory_space<vmem>>, vector<8x128xf32>
    tpu.vector_store %arg12[%c16_74, %c128_75], %228 {strides = array<i32>} : memref<64x256xf32, #tpu.memory_space<vmem>>, vector<8x128xf32>,
    %cst_76 = arith.constant dense<0.000000e+00> : vector<8x1024xf32>
    %230 = tpu.matmul %225, %35, %cst_76 {dimension_numbers = #tpu.dot_dimension_numbers<[1], [0], [0], [1], [0, 0, 1, 1], [], []>} : vector<8x256xf32>, vector<256x1024xf32>, vector<8x1024xf32> -> vector<8x1024xf32>
    %c48_77 = arith.constant 48 : index
    %c0_78 = arith.constant 0 : index
    %231 = vector.load %arg11[%c48_77, %c0_78] : memref<64x1024xf32, #tpu.memory_space<vmem>>, vector<8x1024xf32>
    %232 = arith.addf %230, %231 : vector<8x1024xf32>
    %233 = vector.extract_strided_slice %232 {offsets = [0, 0], sizes = [8, 256], strides = [1, 1]} : vector<8x1024xf32> to vector<8x256xf32>
    %234 = arith.negf %233 : vector<8x256xf32>
    %235 = math.exp %234 : vector<8x256xf32>
    %cst_79 = arith.constant 1.000000e+00 : f32
    %236 = vector.broadcast %cst_79 : f32 to vector<8x256xf32>
    %237 = arith.addf %236, %235 : vector<8x256xf32>
    %238 = arith.divf %236, %237 : vector<8x256xf32>
    %239 = vector.extract_strided_slice %232 {offsets = [0, 256], sizes = [8, 256], strides = [1, 1]} : vector<8x1024xf32> to vector<8x256xf32>
    %240 = arith.negf %239 : vector<8x256xf32>
    %241 = math.exp %240 : vector<8x256xf32>
    %cst_80 = arith.constant 1.000000e+00 : f32
    %242 = vector.broadcast %cst_80 : f32 to vector<8x256xf32>
    %243 = arith.addf %242, %241 : vector<8x256xf32>
    %244 = arith.divf %242, %243 : vector<8x256xf32>
    %245 = vector.extract_strided_slice %232 {offsets = [0, 512], sizes = [8, 256], strides = [1, 1]} : vector<8x1024xf32> to vector<8x256xf32>
    %246 = math.tanh %245 : vector<8x256xf32>
    %247 = vector.extract_strided_slice %232 {offsets = [0, 768], sizes = [8, 256], strides = [1, 1]} : vector<8x1024xf32> to vector<8x256xf32>
    %248 = arith.negf %247 : vector<8x256xf32>
    %249 = math.exp %248 : vector<8x256xf32>
    %cst_81 = arith.constant 1.000000e+00 : f32
    %250 = vector.broadcast %cst_81 : f32 to vector<8x256xf32>
    %251 = arith.addf %250, %249 : vector<8x256xf32>
    %252 = arith.divf %250, %251 : vector<8x256xf32>
    %253 = arith.mulf %244, %223 : vector<8x256xf32>
    %254 = arith.mulf %238, %246 : vector<8x256xf32>
    %255 = arith.addf %253, %254 : vector<8x256xf32>
    %256 = math.tanh %255 : vector<8x256xf32>
    %257 = arith.mulf %252, %256 : vector<8x256xf32>
    %258 = vector.extract_strided_slice %257 {offsets = [0, 0], sizes = [8, 128], strides = [1, 1]} : vector<8x256xf32> to vector<8x128xf32>
    %c48_82 = arith.constant 48 : index
    %c0_83 = arith.constant 0 : index
    %259 = vector.load %arg12[%c48_82, %c0_83] : memref<64x256xf32, #tpu.memory_space<vmem>>, vector<8x128xf32>
    tpu.vector_store %arg12[%c48_82, %c0_83], %258 {strides = array<i32>} : memref<64x256xf32, #tpu.memory_space<vmem>>, vector<8x128xf32>,
    %260 = vector.extract_strided_slice %257 {offsets = [0, 128], sizes = [8, 128], strides = [1, 1]} : vector<8x256xf32> to vector<8x128xf32>
    %c8_84 = arith.constant 8 : index
    %c128_85 = arith.constant 128 : index
    %261 = vector.load %arg12[%c8_84, %c128_85] : memref<64x256xf32, #tpu.memory_space<vmem>>, vector<8x128xf32>
    tpu.vector_store %arg12[%c8_84, %c128_85], %260 {strides = array<i32>} : memref<64x256xf32, #tpu.memory_space<vmem>>, vector<8x128xf32>,
    %cst_86 = arith.constant dense<0.000000e+00> : vector<8x1024xf32>
    %262 = tpu.matmul %257, %35, %cst_86 {dimension_numbers = #tpu.dot_dimension_numbers<[1], [0], [0], [1], [0, 0, 1, 1], [], []>} : vector<8x256xf32>, vector<256x1024xf32>, vector<8x1024xf32> -> vector<8x1024xf32>
    %c56_87 = arith.constant 56 : index
    %c0_88 = arith.constant 0 : index
    %263 = vector.load %arg11[%c56_87, %c0_88] : memref<64x1024xf32, #tpu.memory_space<vmem>>, vector<8x1024xf32>
    %264 = arith.addf %262, %263 : vector<8x1024xf32>
    %265 = vector.extract_strided_slice %264 {offsets = [0, 0], sizes = [8, 256], strides = [1, 1]} : vector<8x1024xf32> to vector<8x256xf32>
    %266 = arith.negf %265 : vector<8x256xf32>
    %267 = math.exp %266 : vector<8x256xf32>
    %cst_89 = arith.constant 1.000000e+00 : f32
    %268 = vector.broadcast %cst_89 : f32 to vector<8x256xf32>
    %269 = arith.addf %268, %267 : vector<8x256xf32>
    %270 = arith.divf %268, %269 : vector<8x256xf32>
    %271 = vector.extract_strided_slice %264 {offsets = [0, 256], sizes = [8, 256], strides = [1, 1]} : vector<8x1024xf32> to vector<8x256xf32>
    %272 = arith.negf %271 : vector<8x256xf32>
    %273 = math.exp %272 : vector<8x256xf32>
    %cst_90 = arith.constant 1.000000e+00 : f32
    %274 = vector.broadcast %cst_90 : f32 to vector<8x256xf32>
    %275 = arith.addf %274, %273 : vector<8x256xf32>
    %276 = arith.divf %274, %275 : vector<8x256xf32>
    %277 = vector.extract_strided_slice %264 {offsets = [0, 512], sizes = [8, 256], strides = [1, 1]} : vector<8x1024xf32> to vector<8x256xf32>
    %278 = math.tanh %277 : vector<8x256xf32>
    %279 = vector.extract_strided_slice %264 {offsets = [0, 768], sizes = [8, 256], strides = [1, 1]} : vector<8x1024xf32> to vector<8x256xf32>
    %280 = arith.negf %279 : vector<8x256xf32>
    %281 = math.exp %280 : vector<8x256xf32>
    %cst_91 = arith.constant 1.000000e+00 : f32
    %282 = vector.broadcast %cst_91 : f32 to vector<8x256xf32>
    %283 = arith.addf %282, %281 : vector<8x256xf32>
    %284 = arith.divf %282, %283 : vector<8x256xf32>
    %285 = arith.mulf %276, %255 : vector<8x256xf32>
    %286 = arith.mulf %270, %278 : vector<8x256xf32>
    %287 = arith.addf %285, %286 : vector<8x256xf32>
    %288 = math.tanh %287 : vector<8x256xf32>
    %289 = arith.mulf %284, %288 : vector<8x256xf32>
    %290 = vector.extract_strided_slice %289 {offsets = [0, 0], sizes = [8, 128], strides = [1, 1]} : vector<8x256xf32> to vector<8x128xf32>
    %c56_92 = arith.constant 56 : index
    %c0_93 = arith.constant 0 : index
    %291 = vector.load %arg12[%c56_92, %c0_93] : memref<64x256xf32, #tpu.memory_space<vmem>>, vector<8x128xf32>
    tpu.vector_store %arg12[%c56_92, %c0_93], %290 {strides = array<i32>} : memref<64x256xf32, #tpu.memory_space<vmem>>, vector<8x128xf32>,
    %292 = vector.extract_strided_slice %289 {offsets = [0, 128], sizes = [8, 128], strides = [1, 1]} : vector<8x256xf32> to vector<8x128xf32>
    %c0_94 = arith.constant 0 : index
    %c128_95 = arith.constant 128 : index
    %293 = vector.load %arg12[%c0_94, %c128_95] : memref<64x256xf32, #tpu.memory_space<vmem>>, vector<8x128xf32>
    tpu.vector_store %arg12[%c0_94, %c128_95], %292 {strides = array<i32>} : memref<64x256xf32, #tpu.memory_space<vmem>>, vector<8x128xf32>,
    %c0_96 = arith.constant 0 : index
    %c0_97 = arith.constant 0 : index
    %294 = vector.load %arg12[%c0_96, %c0_97] : memref<64x256xf32, #tpu.memory_space<vmem>>, vector<64x256xf32>
    %c0_98 = arith.constant 0 : index
    %c0_99 = arith.constant 0 : index
    %295 = vector.load %arg8[%c0_98, %c0_99] : memref<256x128xf32, #tpu.memory_space<vmem>>, vector<256x128xf32>
    %cst_100 = arith.constant dense<0.000000e+00> : vector<64x128xf32>
    %296 = tpu.matmul %294, %295, %cst_100 {dimension_numbers = #tpu.dot_dimension_numbers<[1], [0], [0], [1], [0, 0, 1, 1], [], []>} : vector<64x256xf32>, vector<256x128xf32>, vector<64x128xf32> -> vector<64x128xf32>
    %c0_101 = arith.constant 0 : index
    %c0_102 = arith.constant 0 : index
    %297 = vector.load %arg9[%c0_101, %c0_102] : memref<1x128xf32, #tpu.memory_space<vmem>>, vector<1x128xf32>
    %298 = vector.broadcast %297 : vector<1x128xf32> to vector<64x128xf32>
    %299 = arith.addf %296, %298 : vector<64x128xf32>
    %c0_103 = arith.constant 0 : index
    %c0_104 = arith.constant 0 : index
    %300 = vector.load %arg10[%c0_103, %c0_104] : memref<64x128xf32, #tpu.memory_space<vmem>>, vector<64x128xf32>
    tpu.vector_store %arg10[%c0_103, %c0_104], %299 {strides = array<i32>} : memref<64x128xf32, #tpu.memory_space<vmem>>, vector<64x128xf32>,
    return
  }
}

</mosaic_0001>

<llo_original>
// kernel: model9_forward.1
$region0: #{model9_forward.1}
  #allocation0 [shape = 'u32[]', space=smem, size = 0x4, offset = 0x4, fixed_abs, tag = 'smem constant byte address 0x4 - core index']
  #allocation1 [shape = 'u32[144,128]{1,0:T(1,128)}', space=vmem, size = 0x12000, scoped, tag = 'internal scratch']
  #allocation2 [shape = 'f32[64,1024]{1,0:T(8,128)}', space=vmem, size = 0x40000, scoped, tag = 'scratch operand']
  #allocation3 [shape = 'f32[64,256]{1,0:T(8,128)}', space=vmem, size = 0x10000, scoped, tag = 'scratch operand']
  %s0 = inlined_call_operand.vmem [shape: f32[64,16], index: 0, kind: input, shape index: {}]
  %s1 = inlined_call_operand.vmem [shape: f32[64,16], index: 1, kind: input, shape index: {}]
  %s2 = inlined_call_operand.vmem [shape: f32[16,1024], index: 2, kind: input, shape index: {}]
  %s3 = inlined_call_operand.hbm [shape: f32[16,1024], index: 3, kind: input, shape index: {}]
  %s4 = inlined_call_operand.vmem [shape: f32[1,1024], index: 4, kind: input, shape index: {}]
  %s5 = inlined_call_operand.hbm [shape: f32[256,1024], index: 5, kind: input, shape index: {}]
  %s6 = inlined_call_operand.vmem [shape: f32[8,256], index: 6, kind: input, shape index: {}]
  %s7 = inlined_call_operand.vmem [shape: f32[8,256], index: 7, kind: input, shape index: {}]
  %s8 = inlined_call_operand.vmem [shape: f32[256,128], index: 8, kind: input, shape index: {}]
  %s9 = inlined_call_operand.vmem [shape: f32[1,128], index: 9, kind: input, shape index: {}]
  %s10 = inlined_call_operand.vmem [shape: f32[64,128], index: 10, kind: output, shape index: {}]
  %s11 = sld [smem:[#allocation0]]
  $region58: #{model9_forward.1} parent=0
    _
  %s13 = ssub.s32 1, %s11
  %s14 = scalar_select 0, %s13, %s11
  $region1: #{model9_forward.1} parent=0
    #allocation4 [shape = 'u8[65536]{0}', space=vmem, size = 0x10000, scoped, tag = 'input window, operand 3, single buffered']
    #allocation5 [shape = 's32[1]{0}', space=sflag, size = 0x4, scoped, tag = 'scoped memory for model9_forward.1']
    #allocation6 [shape = 'u8[1048576]{0}', space=vmem, size = 0x100000, scoped, tag = 'input window, operand 5, single buffered']
    #allocation7 [shape = 's32[1]{0}', space=sflag, size = 0x4, scoped, tag = 'scoped memory for model9_forward.1']
    %15 = vsyncpa [#allocation5], 0
    %16 = vsyncpa [#allocation7], 0
    // Predicated region
    $region2: #{model9_forward.1} parent=1 // pred_check
      _
    $region3: #{model9_forward.1} parent=1 // pred_check_branch
      %18 = sbr.rel (0) target = $region5
    $region4: #{model9_forward.1} parent=1 // pred_region
      _
    $region5: #{model9_forward.1} parent=1 // pred_fallthru
      _
    // Predicated region
    $region6: #{model9_forward.1} parent=1 // pred_check
      _
    $region7: #{model9_forward.1} parent=1 // pred_check_branch
      %20 = sbr.rel (0) target = $region9
    $region8: #{model9_forward.1} parent=1 // pred_region
      _
    $region9: #{model9_forward.1} parent=1 // pred_fallthru
      _
    // Predicated region
    $region10: #{model9_forward.1} parent=1 // pred_check
      _
    $region11: #{model9_forward.1} parent=1 // pred_check_branch
      %22 = sbr.rel (0) target = $region13
    $region12: #{model9_forward.1} parent=1 // pred_region
      _
    $region13: #{model9_forward.1} parent=1 // pred_fallthru
      _
    // Predicated region
    $region14: #{model9_forward.1} parent=1 // pred_check
      _
    $region15: #{model9_forward.1} parent=1 // pred_check_branch
      %24 = sbr.rel (0) target = $region17
    $region16: #{model9_forward.1} parent=1 // pred_region
      %s26 = ssub.s32 2048, 2048
      %27 = vsyncadd [#allocation5], %s26
      %s28 = sshll.u32 [#allocation4], 4
      %s29 = int_to_ptr.vmem [resolvable:$true] %s28
      %34 = dma.hbm_to_vmem [thread:$0]  %s3, 2048, %s29, [#allocation5], 1024, 1024, 64
    $region17: #{model9_forward.1} parent=1 // pred_fallthru
      _
    // Predicated region
    $region18: #{model9_forward.1} parent=1 // pred_check
      _
    $region19: #{model9_forward.1} parent=1 // pred_check_branch
      %36 = sbr.rel (0) target = $region21
    $region20: #{model9_forward.1} parent=1 // pred_region
      _
    $region21: #{model9_forward.1} parent=1 // pred_fallthru
      _
    // Predicated region
    $region22: #{model9_forward.1} parent=1 // pred_check
      _
    $region23: #{model9_forward.1} parent=1 // pred_check_branch
      %38 = sbr.rel (0) target = $region25
    $region24: #{model9_forward.1} parent=1 // pred_region
      %s40 = ssub.s32 32768, 32768
      %41 = vsyncadd [#allocation7], %s40
      %s42 = sshll.u32 [#allocation6], 4
      %s43 = int_to_ptr.vmem [resolvable:$true] %s42
      %48 = dma.hbm_to_vmem [thread:$0]  %s5, 32768, %s43, [#allocation7], 1024, 1024, 64
    $region25: #{model9_forward.1} parent=1 // pred_fallthru
      _
    // Predicated region
    $region26: #{model9_forward.1} parent=1 // pred_check
      _
    $region27: #{model9_forward.1} parent=1 // pred_check_branch
      %50 = sbr.rel (0) target = $region29
    $region28: #{model9_forward.1} parent=1 // pred_region
      _
    $region29: #{model9_forward.1} parent=1 // pred_fallthru
      _
    // Predicated region
    $region30: #{model9_forward.1} parent=1 // pred_check
      _
    $region31: #{model9_forward.1} parent=1 // pred_check_branch
      %52 = sbr.rel (0) target = $region33
    $region32: #{model9_forward.1} parent=1 // pred_region
      _
    $region33: #{model9_forward.1} parent=1 // pred_fallthru
      _
    // Predicated region
    $region34: #{model9_forward.1} parent=1 // pred_check
      _
    $region35: #{model9_forward.1} parent=1 // pred_check_branch
      %54 = sbr.rel (0) target = $region37
    $region36: #{model9_forward.1} parent=1 // pred_region
      _
    $region37: #{model9_forward.1} parent=1 // pred_fallthru
      _
    // Predicated region
    $region38: #{model9_forward.1} parent=1 // pred_check
      _
    $region39: #{model9_forward.1} parent=1 // pred_check_branch
      %56 = sbr.rel (0) target = $region41
    $region40: #{model9_forward.1} parent=1 // pred_region
      _
    $region41: #{model9_forward.1} parent=1 // pred_fallthru
      _
    // Predicated region
    $region42: #{model9_forward.1} parent=1 // pred_check
      _
    $region43: #{model9_forward.1} parent=1 // pred_check_branch
      %58 = sbr.rel (0) target = $region45
    $region44: #{model9_forward.1} parent=1 // pred_region
      %59 = dma.done [#allocation5], 2048
    $region45: #{model9_forward.1} parent=1 // pred_fallthru
      _
    // Predicated region
    $region46: #{model9_forward.1} parent=1 // pred_check
      _
    $region47: #{model9_forward.1} parent=1 // pred_check_branch
      %61 = sbr.rel (0) target = $region49
    $region48: #{model9_forward.1} parent=1 // pred_region
      %62 = dma.done [#allocation7], 32768
    $region49: #{model9_forward.1} parent=1 // pred_fallthru
      _
    %v63 = vld [vmem:[%s0] sm:$0xff]
    %v64 = vld [vmem:[%s0 + $0x8] sm:$0xff]
    %v65 = vld [vmem:[%s0 + $0x10] sm:$0xff]
    %v66 = vld [vmem:[%s0 + $0x18] sm:$0xff]
    %v67 = vld [vmem:[%s0 + $0x20] sm:$0xff]
    %v68 = vld [vmem:[%s0 + $0x28] sm:$0xff]
    %v69 = vld [vmem:[%s0 + $0x30] sm:$0xff]
    %v70 = vld [vmem:[%s0 + $0x38] sm:$0xff]
    %vm71 = vcmask 130048
    %v72 = vsel %vm71, %v63, 0.0
    %v73 = vsel %vm71, %v64, 0.0
    %v74 = vadd.f32 %v72, %v73
    %v75 = vsel %vm71, %v65, 0.0
    %v76 = vadd.f32 %v74, %v75
    %v77 = vsel %vm71, %v66, 0.0
    %v78 = vadd.f32 %v76, %v77
    %v79 = vsel %vm71, %v67, 0.0
    %v80 = vadd.f32 %v78, %v79
    %v81 = vsel %vm71, %v68, 0.0
    %v82 = vadd.f32 %v80, %v81
    %v83 = vsel %vm71, %v69, 0.0
    %v84 = vadd.f32 %v82, %v83
    %v85 = vsel %vm71, %v70, 0.0
    %v86 = vadd.f32 %v84, %v85
    %v87 = vrot.slane %v86, 4
    %v88 = vadd.f32 %v86, %v87
    %v89 = vrot.slane %v88, 2
    %v90 = vadd.f32 %v88, %v89
    %v91 = vrot.slane %v90, 1
    %v92 = vadd.f32 %v90, %v91
    %v93 = vrcp.pop 16.0
    %v94 = vmul.f32 %v92, %v93
    %v95 = vsub.f32 %v63, %v94
    %v96 = vsub.f32 %v64, %v94
    %v97 = vsub.f32 %v65, %v94
    %v98 = vsub.f32 %v66, %v94
    %v99 = vsub.f32 %v67, %v94
    %v100 = vsub.f32 %v68, %v94
    %v101 = vsub.f32 %v69, %v94
    %v102 = vsub.f32 %v70, %v94
    %v103 = vmul.f32 %v95, %v95
    %v104 = vmul.f32 %v96, %v96
    %v105 = vmul.f32 %v97, %v97
    %v106 = vmul.f32 %v98, %v98
    %v107 = vmul.f32 %v99, %v99
    %v108 = vmul.f32 %v100, %v100
    %v109 = vmul.f32 %v101, %v101
    %v110 = vmul.f32 %v102, %v102
    %v111 = vsel %vm71, %v103, 0.0
    %v112 = vsel %vm71, %v104, 0.0
    %v113 = vadd.f32 %v111, %v112
    %v114 = vsel %vm71, %v105, 0.0
    %v115 = vadd.f32 %v113, %v114
    %v116 = vsel %vm71, %v106, 0.0
    %v117 = vadd.f32 %v115, %v116
    %v118 = vsel %vm71, %v107, 0.0
    %v119 = vadd.f32 %v117, %v118
    %v120 = vsel %vm71, %v108, 0.0
    %v121 = vadd.f32 %v119, %v120
    %v122 = vsel %vm71, %v109, 0.0
    %v123 = vadd.f32 %v121, %v122
    %v124 = vsel %vm71, %v110, 0.0
    %v125 = vadd.f32 %v123, %v124
    %v126 = vrot.slane %v125, 4
    %v127 = vadd.f32 %v125, %v126
    %v128 = vrot.slane %v127, 2
    %v129 = vadd.f32 %v127, %v128
    %v130 = vrot.slane %v129, 1
    %v131 = vadd.f32 %v129, %v130
    %v132 = vmul.f32 %v94, 48.0
    %v133 = vmul.f32 %v132, %v94
    %v134 = vsub.f32 %v131, %v133
    %v135 = vmul.f32 %v134, %v93
    %v136 = vadd.f32 %v135, 1e-05
    %v137 = vrsqrt.pop %v136
    %v138 = vmul.f32 %v95, %v137
    %v139 = vmul.f32 %v96, %v137
    %v140 = vmul.f32 %v97, %v137
    %v141 = vmul.f32 %v98, %v137
    %v142 = vmul.f32 %v99, %v137
    %v143 = vmul.f32 %v100, %v137
    %v144 = vmul.f32 %v101, %v137
    %v145 = vmul.f32 %v102, %v137
    %v146 = vld [vmem:[%s1] sm:$0xff]
    %v147 = vld [vmem:[%s1 + $0x8] sm:$0xff]
    %v148 = vld [vmem:[%s1 + $0x10] sm:$0xff]
    %v149 = vld [vmem:[%s1 + $0x18] sm:$0xff]
    %v150 = vld [vmem:[%s1 + $0x20] sm:$0xff]
    %v151 = vld [vmem:[%s1 + $0x28] sm:$0xff]
    %v152 = vld [vmem:[%s1 + $0x30] sm:$0xff]
    %v153 = vld [vmem:[%s1 + $0x38] sm:$0xff]
    %v154 = vsub.f32 %v146, %v94
    %v155 = vsub.f32 %v147, %v94
    %v156 = vsub.f32 %v148, %v94
    %v157 = vsub.f32 %v149, %v94
    %v158 = vsub.f32 %v150, %v94
    %v159 = vsub.f32 %v151, %v94
    %v160 = vsub.f32 %v152, %v94
    %v161 = vsub.f32 %v153, %v94
    %v162 = vmul.f32 %v154, %v137
    %v163 = vmul.f32 %v155, %v137
    %v164 = vmul.f32 %v156, %v137
    %v165 = vmul.f32 %v157, %v137
    %v166 = vmul.f32 %v158, %v137
    %v167 = vmul.f32 %v159, %v137
    %v168 = vmul.f32 %v160, %v137
    %v169 = vmul.f32 %v161, %v137
    %v170 = vld [vmem:[%s2] sm:$0xff]
    %v171 = vld [vmem:[%s2 + $0x8] sm:$0xff]
    %v172 = vld [vmem:[%s2 + $0x10] sm:$0xff]
    %v173 = vld [vmem:[%s2 + $0x18] sm:$0xff]
    %v174 = vld [vmem:[%s2 + $0x20] sm:$0xff]
    %v175 = vld [vmem:[%s2 + $0x28] sm:$0xff]
    %v176 = vld [vmem:[%s2 + $0x30] sm:$0xff]
    %v177 = vld [vmem:[%s2 + $0x38] sm:$0xff]
    %v178 = vld [vmem:[%s2 + $0x40] sm:$0xff]
    %v179 = vld [vmem:[%s2 + $0x48] sm:$0xff]
    %v180 = vld [vmem:[%s2 + $0x50] sm:$0xff]
    %v181 = vld [vmem:[%s2 + $0x58] sm:$0xff]
    %v182 = vld [vmem:[%s2 + $0x60] sm:$0xff]
    %v183 = vld [vmem:[%s2 + $0x68] sm:$0xff]
    %v184 = vld [vmem:[%s2 + $0x70] sm:$0xff]
    %v185 = vld [vmem:[%s2 + $0x78] sm:$0xff]
    %v186 = vld [vmem:[#allocation4] sm:$0xff]
    %v187 = vld [vmem:[#allocation4 + $0x8] sm:$0xff]
    %v188 = vld [vmem:[#allocation4 + $0x10] sm:$0xff]
    %v189 = vld [vmem:[#allocation4 + $0x18] sm:$0xff]
    %v190 = vld [vmem:[#allocation4 + $0x20] sm:$0xff]
    %v191 = vld [vmem:[#allocation4 + $0x28] sm:$0xff]
    %v192 = vld [vmem:[#allocation4 + $0x30] sm:$0xff]
    %v193 = vld [vmem:[#allocation4 + $0x38] sm:$0xff]
    %v194 = vld [vmem:[#allocation4 + $0x40] sm:$0xff]
    %v195 = vld [vmem:[#allocation4 + $0x48] sm:$0xff]
    %v196 = vld [vmem:[#allocation4 + $0x50] sm:$0xff]
    %v197 = vld [vmem:[#allocation4 + $0x58] sm:$0xff]
    %v198 = vld [vmem:[#allocation4 + $0x60] sm:$0xff]
    %v199 = vld [vmem:[#allocation4 + $0x68] sm:$0xff]
    %v200 = vld [vmem:[#allocation4 + $0x70] sm:$0xff]
    %v201 = vld [vmem:[#allocation4 + $0x78] sm:$0xff]
    %v203 = vsel %vm71, %v162, 0
    %v206 = vsel %vm71, %v163, 0
    %v209 = vsel %vm71, %v164, 0
    %v212 = vsel %vm71, %v165, 0
    %v215 = vsel %vm71, %v166, 0
    %v218 = vsel %vm71, %v167, 0
    %v221 = vsel %vm71, %v168, 0
    %v224 = vsel %vm71, %v169, 0
    %226 = vmatprep.subr.mxu0 %v187
    %227 = vmatpush1.msra.mxu0 %v186
    %228 = vmatprep.subr.mxu0 %v195
    %229 = vmatpush1.msra.mxu0 %v194
    %230 = vmatprep.subr.mxu0 0.0
    %231 = vmatpush1.msra.mxu0 0.0
    %232 = vmatprep.subr.mxu0 0.0
    %233 = vmatpush1.msra.mxu0 0.0
    %234 = vmatprep.subr.mxu0 0.0
    %235 = vmatpush1.msra.mxu0 0.0
    %236 = vmatprep.subr.mxu0 0.0
    %237 = vmatpush1.msra.mxu0 0.0
    %238 = vmatprep.subr.mxu0 0.0
    %239 = vmatpush1.msra.mxu0 0.0
    %240 = vmatprep.subr.mxu0 0.0
    %241 = vmatpush1.msra.mxu0 0.0
    %242 = vmatprep.subr.mxu0 0.0
    %243 = vmatpush1.msra.mxu0 0.0
    %244 = vmatprep.subr.mxu0 0.0
    %245 = vmatpush1.msra.mxu0 0.0
    %246 = vmatprep.subr.mxu0 0.0
    %247 = vmatpush1.msra.mxu0 0.0
    %248 = vmatprep.subr.mxu0 0.0
    %249 = vmatpush1.msra.mxu0 0.0
    %250 = vmatprep.subr.mxu0 0.0
    %251 = vmatpush1.msra.mxu0 0.0
    %252 = vmatprep.subr.mxu0 0.0
    %253 = vmatpush1.msra.mxu0 0.0
    %254 = vmatprep.subr.mxu0 0.0
    %255 = vmatpush1.msra.mxu0 0.0
    %256 = vmatprep.subr.mxu0 0.0
    %257 = vmatpush1.msra.mxu0 0.0
    %258 = vmatprep.subr.mxu0 0.0
    %259 = vmatpush1.msra.mxu0 0.0
    %260 = vmatprep.subr.mxu0 0.0
    %261 = vmatpush1.msra.mxu0 0.0
    %262 = vmatprep.subr.mxu0 0.0
    %263 = vmatpush1.msra.mxu0 0.0
    %264 = vmatprep.subr.mxu0 0.0
    %265 = vmatpush1.msra.mxu0 0.0
    %266 = vmatprep.subr.mxu0 0.0
    %267 = vmatpush1.msra.mxu0 0.0
    %268 = vmatprep.subr.mxu0 0.0
    %269 = vmatpush1.msra.mxu0 0.0
    %270 = vmatprep.subr.mxu0 0.0
    %271 = vmatpush1.msra.mxu0 0.0
    %272 = vmatprep.subr.mxu0 0.0
    %273 = vmatpush1.msra.mxu0 0.0
    %274 = vmatprep.subr.mxu0 0.0
    %275 = vmatpush1.msra.mxu0 0.0
    %276 = vmatprep.subr.mxu0 0.0
    %277 = vmatpush1.msra.mxu0 0.0
    %278 = vmatprep.subr.mxu0 0.0
    %279 = vmatpush1.msra.mxu0 0.0
    %280 = vmatprep.subr.mxu0 0.0
    %281 = vmatpush1.msra.mxu0 0.0
    %282 = vmatprep.subr.mxu0 0.0
    %283 = vmatpush1.msra.mxu0 0.0
    %284 = vmatprep.subr.mxu0 0.0
    %285 = vmatpush1.msra.mxu0 0.0
    %286 = vmatprep.subr.mxu0 0.0
    %287 = vmatpush1.msra.mxu0 0.0
    %288 = vmatprep.subr.mxu0 0.0
    %289 = vmatpush1.msra.mxu0 0.0
    %290 = vmatprep.mubr.f32.mxu0 0.0
    %291 = vmatmul.mubr.f32.gmra.mrb[0].mxu0 %v203
    %v292 = vpop.f32.mrb[0].mxu0
    %v293 = vadd.f32 0.0, %v292
    %v294 = vpop.f32.mrb[0].mxu0
    %v295 = vadd.f32 0.0, %v294
    %296 = vmatprep.mubr.f32.mxu0 0.0
    %297 = vmatmul.mubr.f32.gmra.mrb[0].mxu0 %v206
    %v298 = vpop.f32.mrb[0].mxu0
    %v299 = vadd.f32 0.0, %v298
    %v300 = vpop.f32.mrb[0].mxu0
    %v301 = vadd.f32 0.0, %v300
    %302 = vmatprep.mubr.f32.mxu0 0.0
    %303 = vmatmul.mubr.f32.gmra.mrb[0].mxu0 %v209
    %v304 = vpop.f32.mrb[0].mxu0
    %v305 = vadd.f32 0.0, %v304
    %v306 = vpop.f32.mrb[0].mxu0
    %v307 = vadd.f32 0.0, %v306
    %308 = vmatprep.mubr.f32.mxu0 0.0
    %309 = vmatmul.mubr.f32.gmra.mrb[0].mxu0 %v212
    %v310 = vpop.f32.mrb[0].mxu0
    %v311 = vadd.f32 0.0, %v310
    %v312 = vpop.f32.mrb[0].mxu0
    %v313 = vadd.f32 0.0, %v312
    %314 = vmatprep.mubr.f32.mxu0 0.0
    %315 = vmatmul.mubr.f32.gmra.mrb[0].mxu0 %v215
    %v316 = vpop.f32.mrb[0].mxu0
    %v317 = vadd.f32 0.0, %v316
    %v318 = vpop.f32.mrb[0].mxu0
    %v319 = vadd.f32 0.0, %v318
    %320 = vmatprep.mubr.f32.mxu0 0.0
    %321 = vmatmul.mubr.f32.gmra.mrb[0].mxu0 %v218
    %v322 = vpop.f32.mrb[0].mxu0
    %v323 = vadd.f32 0.0, %v322
    %v324 = vpop.f32.mrb[0].mxu0
    %v325 = vadd.f32 0.0, %v324
    %326 = vmatprep.mubr.f32.mxu0 0.0
    %327 = vmatmul.mubr.f32.gmra.mrb[0].mxu0 %v221
    %v328 = vpop.f32.mrb[0].mxu0
    %v329 = vadd.f32 0.0, %v328
    %v330 = vpop.f32.mrb[0].mxu0
    %v331 = vadd.f32 0.0, %v330
    %332 = vmatprep.mubr.f32.mxu0 0.0
    %333 = vmatmul.mubr.f32.gmra.mrb[0].mxu0 %v224
    %v334 = vpop.f32.mrb[0].mxu0
    %v335 = vadd.f32 0.0, %v334
    %v336 = vpop.f32.mrb[0].mxu0
    %v337 = vadd.f32 0.0, %v336
    %338 = vdwg.mxu0
    %339 = vmatprep.subr.mxu0 %v189
    %340 = vmatpush1.msra.mxu0 %v188
    %341 = vmatprep.subr.mxu0 %v197
    %342 = vmatpush1.msra.mxu0 %v196
    %343 = vmatprep.subr.mxu0 0.0
    %344 = vmatpush1.msra.mxu0 0.0
    %345 = vmatprep.subr.mxu0 0.0
    %346 = vmatpush1.msra.mxu0 0.0
    %347 = vmatprep.subr.mxu0 0.0
    %348 = vmatpush1.msra.mxu0 0.0
    %349 = vmatprep.subr.mxu0 0.0
    %350 = vmatpush1.msra.mxu0 0.0
    %351 = vmatprep.subr.mxu0 0.0
    %352 = vmatpush1.msra.mxu0 0.0
    %353 = vmatprep.subr.mxu0 0.0
    %354 = vmatpush1.msra.mxu0 0.0
    %355 = vmatprep.subr.mxu0 0.0
    %356 = vmatpush1.msra.mxu0 0.0
    %357 = vmatprep.subr.mxu0 0.0
    %358 = vmatpush1.msra.mxu0 0.0
    %359 = vmatprep.subr.mxu0 0.0
    %360 = vmatpush1.msra.mxu0 0.0
    %361 = vmatprep.subr.mxu0 0.0
    %362 = vmatpush1.msra.mxu0 0.0
    %363 = vmatprep.subr.mxu0 0.0
    %364 = vmatpush1.msra.mxu0 0.0
    %365 = vmatprep.subr.mxu0 0.0
    %366 = vmatpush1.msra.mxu0 0.0
    %367 = vmatprep.subr.mxu0 0.0
    %368 = vmatpush1.msra.mxu0 0.0
    %369 = vmatprep.subr.mxu0 0.0
    %370 = vmatpush1.msra.mxu0 0.0
    %371 = vmatprep.subr.mxu0 0.0
    %372 = vmatpush1.msra.mxu0 0.0
    %373 = vmatprep.subr.mxu0 0.0
    %374 = vmatpush1.msra.mxu0 0.0
    %375 = vmatprep.subr.mxu0 0.0
    %376 = vmatpush1.msra.mxu0 0.0
    %377 = vmatprep.subr.mxu0 0.0
    %378 = vmatpush1.msra.mxu0 0.0
    %379 = vmatprep.subr.mxu0 0.0
    %380 = vmatpush1.msra.mxu0 0.0
    %381 = vmatprep.subr.mxu0 0.0
    %382 = vmatpush1.msra.mxu0 0.0
    %383 = vmatprep.subr.mxu0 0.0
    %384 = vmatpush1.msra.mxu0 0.0
    %385 = vmatprep.subr.mxu0 0.0
    %386 = vmatpush1.msra.mxu0 0.0
    %387 = vmatprep.subr.mxu0 0.0
    %388 = vmatpush1.msra.mxu0 0.0
    %389 = vmatprep.subr.mxu0 0.0
    %390 = vmatpush1.msra.mxu0 0.0
    %391 = vmatprep.subr.mxu0 0.0
    %392 = vmatpush1.msra.mxu0 0.0
    %393 = vmatprep.subr.mxu0 0.0
    %394 = vmatpush1.msra.mxu0 0.0
    %395 = vmatprep.subr.mxu0 0.0
    %396 = vmatpush1.msra.mxu0 0.0
    %397 = vmatprep.subr.mxu0 0.0
    %398 = vmatpush1.msra.mxu0 0.0
    %399 = vmatprep.subr.mxu0 0.0
    %400 = vmatpush1.msra.mxu0 0.0
    %401 = vmatprep.subr.mxu0 0.0
    %402 = vmatpush1.msra.mxu0 0.0
    %403 = vmatprep.mubr.f32.mxu0 0.0
    %404 = vmatmul.mubr.f32.gmra.mrb[0].mxu0 %v203
    %v405 = vpop.f32.mrb[0].mxu0
    %v406 = vadd.f32 0.0, %v405
    %v407 = vpop.f32.mrb[0].mxu0
    %v408 = vadd.f32 0.0, %v407
    %409 = vmatprep.mubr.f32.mxu0 0.0
    %410 = vmatmul.mubr.f32.gmra.mrb[0].mxu0 %v206
    %v411 = vpop.f32.mrb[0].mxu0
    %v412 = vadd.f32 0.0, %v411
    %v413 = vpop.f32.mrb[0].mxu0
    %v414 = vadd.f32 0.0, %v413
    %415 = vmatprep.mubr.f32.mxu0 0.0
    %416 = vmatmul.mubr.f32.gmra.mrb[0].mxu0 %v209
    %v417 = vpop.f32.mrb[0].mxu0
    %v418 = vadd.f32 0.0, %v417
    %v419 = vpop.f32.mrb[0].mxu0
    %v420 = vadd.f32 0.0, %v419
    %421 = vmatprep.mubr.f32.mxu0 0.0
    %422 = vmatmul.mubr.f32.gmra.mrb[0].mxu0 %v212
    %v423 = vpop.f32.mrb[0].mxu0
    %v424 = vadd.f32 0.0, %v423
    %v425 = vpop.f32.mrb[0].mxu0
    %v426 = vadd.f32 0.0, %v425
    %427 = vmatprep.mubr.f32.mxu0 0.0
    %428 = vmatmul.mubr.f32.gmra.mrb[0].mxu0 %v215
    %v429 = vpop.f32.mrb[0].mxu0
    %v430 = vadd.f32 0.0, %v429
    %v431 = vpop.f32.mrb[0].mxu0
    %v432 = vadd.f32 0.0, %v431
    %433 = vmatprep.mubr.f32.mxu0 0.0
    %434 = vmatmul.mubr.f32.gmra.mrb[0].mxu0 %v218
    %v435 = vpop.f32.mrb[0].mxu0
    %v436 = vadd.f32 0.0, %v435
    %v437 = vpop.f32.mrb[0].mxu0
    %v438 = vadd.f32 0.0, %v437
    %439 = vmatprep.mubr.f32.mxu0 0.0
    %440 = vmatmul.mubr.f32.gmra.mrb[0].mxu0 %v221
    %v441 = vpop.f32.mrb[0].mxu0
    %v442 = vadd.f32 0.0, %v441
    %v443 = vpop.f32.mrb[0].mxu0
    %v444 = vadd.f32 0.0, %v443
    %445 = vmatprep.mubr.f32.mxu0 0.0
    %446 = vmatmul.mubr.f32.gmra.mrb[0].mxu0 %v224
    %v447 = vpop.f32.mrb[0].mxu0
    %v448 = vadd.f32 0.0, %v447
    %v449 = vpop.f32.mrb[0].mxu0
    %v450 = vadd.f32 0.0, %v449
    %451 = vdwg.mxu0
    %452 = vmatprep.subr.mxu0 %v191
    %453 = vmatpush1.msra.mxu0 %v190
    %454 = vmatprep.subr.mxu0 %v199
    %455 = vmatpush1.msra.mxu0 %v198
    %456 = vmatprep.subr.mxu0 0.0
    %457 = vmatpush1.msra.mxu0 0.0
    %458 = vmatprep.subr.mxu0 0.0
    %459 = vmatpush1.msra.mxu0 0.0
    %460 = vmatprep.subr.mxu0 0.0
    %461 = vmatpush1.msra.mxu0 0.0
    %462 = vmatprep.subr.mxu0 0.0
    %463 = vmatpush1.msra.mxu0 0.0
    %464 = vmatprep.subr.mxu0 0.0
    %465 = vmatpush1.msra.mxu0 0.0
    %466 = vmatprep.subr.mxu0 0.0
    %467 = vmatpush1.msra.mxu0 0.0
    %468 = vmatprep.subr.mxu0 0.0
    %469 = vmatpush1.msra.mxu0 0.0
    %470 = vmatprep.subr.mxu0 0.0
    %471 = vmatpush1.msra.mxu0 0.0
    %472 = vmatprep.subr.mxu0 0.0
    %473 = vmatpush1.msra.mxu0 0.0
    %474 = vmatprep.subr.mxu0 0.0
    %475 = vmatpush1.msra.mxu0 0.0
    %476 = vmatprep.subr.mxu0 0.0
    %477 = vmatpush1.msra.mxu0 0.0
    %478 = vmatprep.subr.mxu0 0.0
    %479 = vmatpush1.msra.mxu0 0.0
    %480 = vmatprep.subr.mxu0 0.0
    %481 = vmatpush1.msra.mxu0 0.0
    %482 = vmatprep.subr.mxu0 0.0
    %483 = vmatpush1.msra.mxu0 0.0
    %484 = vmatprep.subr.mxu0 0.0
    %485 = vmatpush1.msra.mxu0 0.0
    %486 = vmatprep.subr.mxu0 0.0
    %487 = vmatpush1.msra.mxu0 0.0
    %488 = vmatprep.subr.mxu0 0.0
    %489 = vmatpush1.msra.mxu0 0.0
    %490 = vmatprep.subr.mxu0 0.0
    %491 = vmatpush1.msra.mxu0 0.0
    %492 = vmatprep.subr.mxu0 0.0
    %493 = vmatpush1.msra.mxu0 0.0
    %494 = vmatprep.subr.mxu0 0.0
    %495 = vmatpush1.msra.mxu0 0.0
    %496 = vmatprep.subr.mxu0 0.0
    %497 = vmatpush1.msra.mxu0 0.0
    %498 = vmatprep.subr.mxu0 0.0
    %499 = vmatpush1.msra.mxu0 0.0
    %500 = vmatprep.subr.mxu0 0.0
    %501 = vmatpush1.msra.mxu0 0.0
    %502 = vmatprep.subr.mxu0 0.0
    %503 = vmatpush1.msra.mxu0 0.0
    %504 = vmatprep.subr.mxu0 0.0
    %505 = vmatpush1.msra.mxu0 0.0
    %506 = vmatprep.subr.mxu0 0.0
    %507 = vmatpush1.msra.mxu0 0.0
    %508 = vmatprep.subr.mxu0 0.0
    %509 = vmatpush1.msra.mxu0 0.0
    %510 = vmatprep.subr.mxu0 0.0
    %511 = vmatpush1.msra.mxu0 0.0
    %512 = vmatprep.subr.mxu0 0.0
    %513 = vmatpush1.msra.mxu0 0.0
    %514 = vmatprep.subr.mxu0 0.0
    %515 = vmatpush1.msra.mxu0 0.0
    %516 = vmatprep.mubr.f32.mxu0 0.0
    %517 = vmatmul.mubr.f32.gmra.mrb[0].mxu0 %v203
    %v518 = vpop.f32.mrb[0].mxu0
    %v519 = vadd.f32 0.0, %v518
    %v520 = vpop.f32.mrb[0].mxu0
    %v521 = vadd.f32 0.0, %v520
    %522 = vmatprep.mubr.f32.mxu0 0.0
    %523 = vmatmul.mubr.f32.gmra.mrb[0].mxu0 %v206
    %v524 = vpop.f32.mrb[0].mxu0
    %v525 = vadd.f32 0.0, %v524
    %v526 = vpop.f32.mrb[0].mxu0
    %v527 = vadd.f32 0.0, %v526
    %528 = vmatprep.mubr.f32.mxu0 0.0
    %529 = vmatmul.mubr.f32.gmra.mrb[0].mxu0 %v209
    %v530 = vpop.f32.mrb[0].mxu0
    %v531 = vadd.f32 0.0, %v530
    %v532 = vpop.f32.mrb[0].mxu0
    %v533 = vadd.f32 0.0, %v532
    %534 = vmatprep.mubr.f32.mxu0 0.0
    %535 = vmatmul.mubr.f32.gmra.mrb[0].mxu0 %v212
    %v536 = vpop.f32.mrb[0].mxu0
    %v537 = vadd.f32 0.0, %v536
    %v538 = vpop.f32.mrb[0].mxu0
    %v539 = vadd.f32 0.0, %v538
    %540 = vmatprep.mubr.f32.mxu0 0.0
    %541 = vmatmul.mubr.f32.gmra.mrb[0].mxu0 %v215
    %v542 = vpop.f32.mrb[0].mxu0
    %v543 = vadd.f32 0.0, %v542
    %v544 = vpop.f32.mrb[0].mxu0
    %v545 = vadd.f32 0.0, %v544
    %546 = vmatprep.mubr.f32.mxu0 0.0
    %547 = vmatmul.mubr.f32.gmra.mrb[0].mxu0 %v218
    %v548 = vpop.f32.mrb[0].mxu0
    %v549 = vadd.f32 0.0, %v548
    %v550 = vpop.f32.mrb[0].mxu0
    %v551 = vadd.f32 0.0, %v550
    %552 = vmatprep.mubr.f32.mxu0 0.0
    %553 = vmatmul.mubr.f32.gmra.mrb[0].mxu0 %v221
    %v554 = vpop.f32.mrb[0].mxu0
    %v555 = vadd.f32 0.0, %v554
    %v556 = vpop.f32.mrb[0].mxu0
    %v557 = vadd.f32 0.0, %v556
    %558 = vmatprep.mubr.f32.mxu0 0.0
    %559 = vmatmul.mubr.f32.gmra.mrb[0].mxu0 %v224
    %v560 = vpop.f32.mrb[0].mxu0
    %v561 = vadd.f32 0.0, %v560
    %v562 = vpop.f32.mrb[0].mxu0
    %v563 = vadd.f32 0.0, %v562
    %564 = vdwg.mxu0
    %565 = vmatprep.subr.mxu0 %v193
    %566 = vmatpush1.msra.mxu0 %v192
    %567 = vmatprep.subr.mxu0 %v201
    %568 = vmatpush1.msra.mxu0 %v200
    %569 = vmatprep.subr.mxu0 0.0
    %570 = vmatpush1.msra.mxu0 0.0
    %571 = vmatprep.subr.mxu0 0.0
    %572 = vmatpush1.msra.mxu0 0.0
    %573 = vmatprep.subr.mxu0 0.0
    %574 = vmatpush1.msra.mxu0 0.0
    %575 = vmatprep.subr.mxu0 0.0
    %576 = vmatpush1.msra.mxu0 0.0
    %577 = vmatprep.subr.mxu0 0.0
    %578 = vmatpush1.msra.mxu0 0.0
    %579 = vmatprep.subr.mxu0 0.0
    %580 = vmatpush1.msra.mxu0 0.0
    %581 = vmatprep.subr.mxu0 0.0
    %582 = vmatpush1.msra.mxu0 0.0
    %583 = vmatprep.subr.mxu0 0.0
    %584 = vmatpush1.msra.mxu0 0.0
    %585 = vmatprep.subr.mxu0 0.0
    %586 = vmatpush1.msra.mxu0 0.0
    %587 = vmatprep.subr.mxu0 0.0
    %588 = vmatpush1.msra.mxu0 0.0
    %589 = vmatprep.subr.mxu0 0.0
    %590 = vmatpush1.msra.mxu0 0.0
    %591 = vmatprep.subr.mxu0 0.0
    %592 = vmatpush1.msra.mxu0 0.0
    %593 = vmatprep.subr.mxu0 0.0
    %594 = vmatpush1.msra.mxu0 0.0
    %595 = vmatprep.subr.mxu0 0.0
    %596 = vmatpush1.msra.mxu0 0.0
    %597 = vmatprep.subr.mxu0 0.0
    %598 = vmatpush1.msra.mxu0 0.0
    %599 = vmatprep.subr.mxu0 0.0
    %600 = vmatpush1.msra.mxu0 0.0
    %601 = vmatprep.subr.mxu0 0.0
    %602 = vmatpush1.msra.mxu0 0.0
    %603 = vmatprep.subr.mxu0 0.0
    %604 = vmatpush1.msra.mxu0 0.0
    %605 = vmatprep.subr.mxu0 0.0
    %606 = vmatpush1.msra.mxu0 0.0
    %607 = vmatprep.subr.mxu0 0.0
    %608 = vmatpush1.msra.mxu0 0.0
    %609 = vmatprep.subr.mxu0 0.0
    %610 = vmatpush1.msra.mxu0 0.0
    %611 = vmatprep.subr.mxu0 0.0
    %612 = vmatpush1.msra.mxu0 0.0
    %613 = vmatprep.subr.mxu0 0.0
    %614 = vmatpush1.msra.mxu0 0.0
    %615 = vmatprep.subr.mxu0 0.0
    %616 = vmatpush1.msra.mxu0 0.0
    %617 = vmatprep.subr.mxu0 0.0
    %618 = vmatpush1.msra.mxu0 0.0
    %619 = vmatprep.subr.mxu0 0.0
    %620 = vmatpush1.msra.mxu0 0.0
    %621 = vmatprep.subr.mxu0 0.0
    %622 = vmatpush1.msra.mxu0 0.0
    %623 = vmatprep.subr.mxu0 0.0
    %624 = vmatpush1.msra.mxu0 0.0
    %625 = vmatprep.subr.mxu0 0.0
    %626 = vmatpush1.msra.mxu0 0.0
    %627 = vmatprep.subr.mxu0 0.0
    %628 = vmatpush1.msra.mxu0 0.0
    %629 = vmatprep.mubr.f32.mxu0 0.0
    %630 = vmatmul.mubr.f32.gmra.mrb[0].mxu0 %v203
    %v631 = vpop.f32.mrb[0].mxu0
    %v632 = vadd.f32 0.0, %v631
    %v633 = vpop.f32.mrb[0].mxu0
    %v634 = vadd.f32 0.0, %v633
    %635 = vmatprep.mubr.f32.mxu0 0.0
    %636 = vmatmul.mubr.f32.gmra.mrb[0].mxu0 %v206
    %v637 = vpop.f32.mrb[0].mxu0
    %v638 = vadd.f32 0.0, %v637
    %v639 = vpop.f32.mrb[0].mxu0
    %v640 = vadd.f32 0.0, %v639
    %641 = vmatprep.mubr.f32.mxu0 0.0
    %642 = vmatmul.mubr.f32.gmra.mrb[0].mxu0 %v209
    %v643 = vpop.f32.mrb[0].mxu0
    %v644 = vadd.f32 0.0, %v643
    %v645 = vpop.f32.mrb[0].mxu0
    %v646 = vadd.f32 0.0, %v645
    %647 = vmatprep.mubr.f32.mxu0 0.0
    %648 = vmatmul.mubr.f32.gmra.mrb[0].mxu0 %v212
    %v649 = vpop.f32.mrb[0].mxu0
    %v650 = vadd.f32 0.0, %v649
    %v651 = vpop.f32.mrb[0].mxu0
    %v652 = vadd.f32 0.0, %v651
    %653 = vmatprep.mubr.f32.mxu0 0.0
    %654 = vmatmul.mubr.f32.gmra.mrb[0].mxu0 %v215
    %v655 = vpop.f32.mrb[0].mxu0
    %v656 = vadd.f32 0.0, %v655
    %v657 = vpop.f32.mrb[0].mxu0
    %v658 = vadd.f32 0.0, %v657
    %659 = vmatprep.mubr.f32.mxu0 0.0
    %660 = vmatmul.mubr.f32.gmra.mrb[0].mxu0 %v218
    %v661 = vpop.f32.mrb[0].mxu0
    %v662 = vadd.f32 0.0, %v661
    %v663 = vpop.f32.mrb[0].mxu0
    %v664 = vadd.f32 0.0, %v663
    %665 = vmatprep.mubr.f32.mxu0 0.0
    %666 = vmatmul.mubr.f32.gmra.mrb[0].mxu0 %v221
    %v667 = vpop.f32.mrb[0].mxu0
    %v668 = vadd.f32 0.0, %v667
    %v669 = vpop.f32.mrb[0].mxu0
    %v670 = vadd.f32 0.0, %v669
    %671 = vmatprep.mubr.f32.mxu0 0.0
    %672 = vmatmul.mubr.f32.gmra.mrb[0].mxu0 %v224
    %v673 = vpop.f32.mrb[0].mxu0
    %v674 = vadd.f32 0.0, %v673
    %v675 = vpop.f32.mrb[0].mxu0
    %v676 = vadd.f32 0.0, %v675
    %677 = vdwg.mxu0
    %v679 = vsel %vm71, %v138, 0
    %v682 = vsel %vm71, %v139, 0
    %v685 = vsel %vm71, %v140, 0
    %v688 = vsel %vm71, %v141, 0
    %v691 = vsel %vm71, %v142, 0
    %v694 = vsel %vm71, %v143, 0
    %v697 = vsel %vm71, %v144, 0
    %v700 = vsel %vm71, %v145, 0
    %702 = vmatprep.subr.mxu0 %v171
    %703 = vmatpush1.msra.mxu0 %v170
    %704 = vmatprep.subr.mxu0 %v179
    %705 = vmatpush1.msra.mxu0 %v178
    %706 = vmatprep.subr.mxu0 0.0
    %707 = vmatpush1.msra.mxu0 0.0
    %708 = vmatprep.subr.mxu0 0.0
    %709 = vmatpush1.msra.mxu0 0.0
    %710 = vmatprep.subr.mxu0 0.0
    %711 = vmatpush1.msra.mxu0 0.0
    %712 = vmatprep.subr.mxu0 0.0
    %713 = vmatpush1.msra.mxu0 0.0
    %714 = vmatprep.subr.mxu0 0.0
    %715 = vmatpush1.msra.mxu0 0.0
    %716 = vmatprep.subr.mxu0 0.0
    %717 = vmatpush1.msra.mxu0 0.0
    %718 = vmatprep.subr.mxu0 0.0
    %719 = vmatpush1.msra.mxu0 0.0
    %720 = vmatprep.subr.mxu0 0.0
    %721 = vmatpush1.msra.mxu0 0.0
    %722 = vmatprep.subr.mxu0 0.0
    %723 = vmatpush1.msra.mxu0 0.0
    %724 = vmatprep.subr.mxu0 0.0
    %725 = vmatpush1.msra.mxu0 0.0
    %726 = vmatprep.subr.mxu0 0.0
    %727 = vmatpush1.msra.mxu0 0.0
    %728 = vmatprep.subr.mxu0 0.0
    %729 = vmatpush1.msra.mxu0 0.0
    %730 = vmatprep.subr.mxu0 0.0
    %731 = vmatpush1.msra.mxu0 0.0
    %732 = vmatprep.subr.mxu0 0.0
    %733 = vmatpush1.msra.mxu0 0.0
    %734 = vmatprep.subr.mxu0 0.0
    %735 = vmatpush1.msra.mxu0 0.0
    %736 = vmatprep.subr.mxu0 0.0
    %737 = vmatpush1.msra.mxu0 0.0
    %738 = vmatprep.subr.mxu0 0.0
    %739 = vmatpush1.msra.mxu0 0.0
    %740 = vmatprep.subr.mxu0 0.0
    %741 = vmatpush1.msra.mxu0 0.0
    %742 = vmatprep.subr.mxu0 0.0
    %743 = vmatpush1.msra.mxu0 0.0
    %744 = vmatprep.subr.mxu0 0.0
    %745 = vmatpush1.msra.mxu0 0.0
    %746 = vmatprep.subr.mxu0 0.0
    %747 = vmatpush1.msra.mxu0 0.0
    %748 = vmatprep.subr.mxu0 0.0
    %749 = vmatpush1.msra.mxu0 0.0
    %750 = vmatprep.subr.mxu0 0.0
    %751 = vmatpush1.msra.mxu0 0.0
    %752 = vmatprep.subr.mxu0 0.0
    %753 = vmatpush1.msra.mxu0 0.0
    %754 = vmatprep.subr.mxu0 0.0
    %755 = vmatpush1.msra.mxu0 0.0
    %756 = vmatprep.subr.mxu0 0.0
    %757 = vmatpush1.msra.mxu0 0.0
    %758 = vmatprep.subr.mxu0 0.0
    %759 = vmatpush1.msra.mxu0 0.0
    %760 = vmatprep.subr.mxu0 0.0
    %761 = vmatpush1.msra.mxu0 0.0
    %762 = vmatprep.subr.mxu0 0.0
    %763 = vmatpush1.msra.mxu0 0.0
    %764 = vmatprep.subr.mxu0 0.0
    %765 = vmatpush1.msra.mxu0 0.0
    %766 = vmatprep.mubr.f32.mxu0 0.0
    %767 = vmatmul.mubr.f32.gmra.mrb[0].mxu0 %v679
    %v768 = vpop.f32.mrb[0].mxu0
    %v769 = vadd.f32 %v293, %v768
    %v770 = vpop.f32.mrb[0].mxu0
    %v771 = vadd.f32 %v295, %v770
    %772 = vmatprep.mubr.f32.mxu0 0.0
    %773 = vmatmul.mubr.f32.gmra.mrb[0].mxu0 %v682
    %v774 = vpop.f32.mrb[0].mxu0
    %v775 = vadd.f32 %v299, %v774
    %v776 = vpop.f32.mrb[0].mxu0
    %v777 = vadd.f32 %v301, %v776
    %778 = vmatprep.mubr.f32.mxu0 0.0
    %779 = vmatmul.mubr.f32.gmra.mrb[0].mxu0 %v685
    %v780 = vpop.f32.mrb[0].mxu0
    %v781 = vadd.f32 %v305, %v780
    %v782 = vpop.f32.mrb[0].mxu0
    %v783 = vadd.f32 %v307, %v782
    %784 = vmatprep.mubr.f32.mxu0 0.0
    %785 = vmatmul.mubr.f32.gmra.mrb[0].mxu0 %v688
    %v786 = vpop.f32.mrb[0].mxu0
    %v787 = vadd.f32 %v311, %v786
    %v788 = vpop.f32.mrb[0].mxu0
    %v789 = vadd.f32 %v313, %v788
    %790 = vmatprep.mubr.f32.mxu0 0.0
    %791 = vmatmul.mubr.f32.gmra.mrb[0].mxu0 %v691
    %v792 = vpop.f32.mrb[0].mxu0
    %v793 = vadd.f32 %v317, %v792
    %v794 = vpop.f32.mrb[0].mxu0
    %v795 = vadd.f32 %v319, %v794
    %796 = vmatprep.mubr.f32.mxu0 0.0
    %797 = vmatmul.mubr.f32.gmra.mrb[0].mxu0 %v694
    %v798 = vpop.f32.mrb[0].mxu0
    %v799 = vadd.f32 %v323, %v798
    %v800 = vpop.f32.mrb[0].mxu0
    %v801 = vadd.f32 %v325, %v800
    %802 = vmatprep.mubr.f32.mxu0 0.0
    %803 = vmatmul.mubr.f32.gmra.mrb[0].mxu0 %v697
    %v804 = vpop.f32.mrb[0].mxu0
    %v805 = vadd.f32 %v329, %v804
    %v806 = vpop.f32.mrb[0].mxu0
    %v807 = vadd.f32 %v331, %v806
    %808 = vmatprep.mubr.f32.mxu0 0.0
    %809 = vmatmul.mubr.f32.gmra.mrb[0].mxu0 %v700
    %v810 = vpop.f32.mrb[0].mxu0
    %v811 = vadd.f32 %v335, %v810
    %v812 = vpop.f32.mrb[0].mxu0
    %v813 = vadd.f32 %v337, %v812
    %814 = vdwg.mxu0
    %815 = vmatprep.subr.mxu0 %v173
    %816 = vmatpush1.msra.mxu0 %v172
    %817 = vmatprep.subr.mxu0 %v181
    %818 = vmatpush1.msra.mxu0 %v180
    %819 = vmatprep.subr.mxu0 0.0
    %820 = vmatpush1.msra.mxu0 0.0
    %821 = vmatprep.subr.mxu0 0.0
    %822 = vmatpush1.msra.mxu0 0.0
    %823 = vmatprep.subr.mxu0 0.0
    %824 = vmatpush1.msra.mxu0 0.0
    %825 = vmatprep.subr.mxu0 0.0
    %826 = vmatpush1.msra.mxu0 0.0
    %827 = vmatprep.subr.mxu0 0.0
    %828 = vmatpush1.msra.mxu0 0.0
    %829 = vmatprep.subr.mxu0 0.0
    %830 = vmatpush1.msra.mxu0 0.0
    %831 = vmatprep.subr.mxu0 0.0
    %832 = vmatpush1.msra.mxu0 0.0
    %833 = vmatprep.subr.mxu0 0.0
    %834 = vmatpush1.msra.mxu0 0.0
    %835 = vmatprep.subr.mxu0 0.0
    %836 = vmatpush1.msra.mxu0 0.0
    %837 = vmatprep.subr.mxu0 0.0
    %838 = vmatpush1.msra.mxu0 0.0
    %839 = vmatprep.subr.mxu0 0.0
    %840 = vmatpush1.msra.mxu0 0.0
    %841 = vmatprep.subr.mxu0 0.0
    %842 = vmatpush1.msra.mxu0 0.0
    %843 = vmatprep.subr.mxu0 0.0
    %844 = vmatpush1.msra.mxu0 0.0
    %845 = vmatprep.subr.mxu0 0.0
    %846 = vmatpush1.msra.mxu0 0.0
    %847 = vmatprep.subr.mxu0 0.0
    %848 = vmatpush1.msra.mxu0 0.0
    %849 = vmatprep.subr.mxu0 0.0
    %850 = vmatpush1.msra.mxu0 0.0
    %851 = vmatprep.subr.mxu0 0.0
    %852 = vmatpush1.msra.mxu0 0.0
    %853 = vmatprep.subr.mxu0 0.0
    %854 = vmatpush1.msra.mxu0 0.0
    %855 = vmatprep.subr.mxu0 0.0
    %856 = vmatpush1.msra.mxu0 0.0
    %857 = vmatprep.subr.mxu0 0.0
    %858 = vmatpush1.msra.mxu0 0.0
    %859 = vmatprep.subr.mxu0 0.0
    %860 = vmatpush1.msra.mxu0 0.0
    %861 = vmatprep.subr.mxu0 0.0
    %862 = vmatpush1.msra.mxu0 0.0
    %863 = vmatprep.subr.mxu0 0.0
    %864 = vmatpush1.msra.mxu0 0.0
    %865 = vmatprep.subr.mxu0 0.0
    %866 = vmatpush1.msra.mxu0 0.0
    %867 = vmatprep.subr.mxu0 0.0
    %868 = vmatpush1.msra.mxu0 0.0
    %869 = vmatprep.subr.mxu0 0.0
    %870 = vmatpush1.msra.mxu0 0.0
    %871 = vmatprep.subr.mxu0 0.0
    %872 = vmatpush1.msra.mxu0 0.0
    %873 = vmatprep.subr.mxu0 0.0
    %874 = vmatpush1.msra.mxu0 0.0
    %875 = vmatprep.subr.mxu0 0.0
    %876 = vmatpush1.msra.mxu0 0.0
    %877 = vmatprep.subr.mxu0 0.0
    %878 = vmatpush1.msra.mxu0 0.0
    %879 = vmatprep.mubr.f32.mxu0 0.0
    %880 = vmatmul.mubr.f32.gmra.mrb[0].mxu0 %v679
    %v881 = vpop.f32.mrb[0].mxu0
    %v882 = vadd.f32 %v406, %v881
    %v883 = vpop.f32.mrb[0].mxu0
    %v884 = vadd.f32 %v408, %v883
    %885 = vmatprep.mubr.f32.mxu0 0.0
    %886 = vmatmul.mubr.f32.gmra.mrb[0].mxu0 %v682
    %v887 = vpop.f32.mrb[0].mxu0
    %v888 = vadd.f32 %v412, %v887
    %v889 = vpop.f32.mrb[0].mxu0
    %v890 = vadd.f32 %v414, %v889
    %891 = vmatprep.mubr.f32.mxu0 0.0
    %892 = vmatmul.mubr.f32.gmra.mrb[0].mxu0 %v685
    %v893 = vpop.f32.mrb[0].mxu0
    %v894 = vadd.f32 %v418, %v893
    %v895 = vpop.f32.mrb[0].mxu0
    %v896 = vadd.f32 %v420, %v895
    %897 = vmatprep.mubr.f32.mxu0 0.0
    %898 = vmatmul.mubr.f32.gmra.mrb[0].mxu0 %v688
    %v899 = vpop.f32.mrb[0].mxu0
    %v900 = vadd.f32 %v424, %v899
    %v901 = vpop.f32.mrb[0].mxu0
    %v902 = vadd.f32 %v426, %v901
    %903 = vmatprep.mubr.f32.mxu0 0.0
    %904 = vmatmul.mubr.f32.gmra.mrb[0].mxu0 %v691
    %v905 = vpop.f32.mrb[0].mxu0
    %v906 = vadd.f32 %v430, %v905
    %v907 = vpop.f32.mrb[0].mxu0
    %v908 = vadd.f32 %v432, %v907
    %909 = vmatprep.mubr.f32.mxu0 0.0
    %910 = vmatmul.mubr.f32.gmra.mrb[0].mxu0 %v694
    %v911 = vpop.f32.mrb[0].mxu0
    %v912 = vadd.f32 %v436, %v911
    %v913 = vpop.f32.mrb[0].mxu0
    %v914 = vadd.f32 %v438, %v913
    %915 = vmatprep.mubr.f32.mxu0 0.0
    %916 = vmatmul.mubr.f32.gmra.mrb[0].mxu0 %v697
    %v917 = vpop.f32.mrb[0].mxu0
    %v918 = vadd.f32 %v442, %v917
    %v919 = vpop.f32.mrb[0].mxu0
    %v920 = vadd.f32 %v444, %v919
    %921 = vmatprep.mubr.f32.mxu0 0.0
    %922 = vmatmul.mubr.f32.gmra.mrb[0].mxu0 %v700
    %v923 = vpop.f32.mrb[0].mxu0
    %v924 = vadd.f32 %v448, %v923
    %v925 = vpop.f32.mrb[0].mxu0
    %v926 = vadd.f32 %v450, %v925
    %927 = vdwg.mxu0
    %928 = vmatprep.subr.mxu0 %v175
    %929 = vmatpush1.msra.mxu0 %v174
    %930 = vmatprep.subr.mxu0 %v183
    %931 = vmatpush1.msra.mxu0 %v182
    %932 = vmatprep.subr.mxu0 0.0
    %933 = vmatpush1.msra.mxu0 0.0
    %934 = vmatprep.subr.mxu0 0.0
    %935 = vmatpush1.msra.mxu0 0.0
    %936 = vmatprep.subr.mxu0 0.0
    %937 = vmatpush1.msra.mxu0 0.0
    %938 = vmatprep.subr.mxu0 0.0
    %939 = vmatpush1.msra.mxu0 0.0
    %940 = vmatprep.subr.mxu0 0.0
    %941 = vmatpush1.msra.mxu0 0.0
    %942 = vmatprep.subr.mxu0 0.0
    %943 = vmatpush1.msra.mxu0 0.0
    %944 = vmatprep.subr.mxu0 0.0
    %945 = vmatpush1.msra.mxu0 0.0
    %946 = vmatprep.subr.mxu0 0.0
    %947 = vmatpush1.msra.mxu0 0.0
    %948 = vmatprep.subr.mxu0 0.0
    %949 = vmatpush1.msra.mxu0 0.0
    %950 = vmatprep.subr.mxu0 0.0
    %951 = vmatpush1.msra.mxu0 0.0
    %952 = vmatprep.subr.mxu0 0.0
    %953 = vmatpush1.msra.mxu0 0.0
    %954 = vmatprep.subr.mxu0 0.0
    %955 = vmatpush1.msra.mxu0 0.0
    %956 = vmatprep.subr.mxu0 0.0
    %957 = vmatpush1.msra.mxu0 0.0
    %958 = vmatprep.subr.mxu0 0.0
    %959 = vmatpush1.msra.mxu0 0.0
    %960 = vmatprep.subr.mxu0 0.0
    %961 = vmatpush1.msra.mxu0 0.0
    %962 = vmatprep.subr.mxu0 0.0
    %963 = vmatpush1.msra.mxu0 0.0
    %964 = vmatprep.subr.mxu0 0.0
    %965 = vmatpush1.msra.mxu0 0.0
    %966 = vmatprep.subr.mxu0 0.0
    %967 = vmatpush1.msra.mxu0 0.0
    %968 = vmatprep.subr.mxu0 0.0
    %969 = vmatpush1.msra.mxu0 0.0
    %970 = vmatprep.subr.mxu0 0.0
    %971 = vmatpush1.msra.mxu0 0.0
    %972 = vmatprep.subr.mxu0 0.0
    %973 = vmatpush1.msra.mxu0 0.0
    %974 = vmatprep.subr.mxu0 0.0
    %975 = vmatpush1.msra.mxu0 0.0
    %976 = vmatprep.subr.mxu0 0.0
    %977 = vmatpush1.msra.mxu0 0.0
    %978 = vmatprep.subr.mxu0 0.0
    %979 = vmatpush1.msra.mxu0 0.0
    %980 = vmatprep.subr.mxu0 0.0
    %981 = vmatpush1.msra.mxu0 0.0
    %982 = vmatprep.subr.mxu0 0.0
    %983 = vmatpush1.msra.mxu0 0.0
    %984 = vmatprep.subr.mxu0 0.0
    %985 = vmatpush1.msra.mxu0 0.0
    %986 = vmatprep.subr.mxu0 0.0
    %987 = vmatpush1.msra.mxu0 0.0
    %988 = vmatprep.subr.mxu0 0.0
    %989 = vmatpush1.msra.mxu0 0.0
    %990 = vmatprep.subr.mxu0 0.0
    %991 = vmatpush1.msra.mxu0 0.0
    %992 = vmatprep.mubr.f32.mxu0 0.0
    %993 = vmatmul.mubr.f32.gmra.mrb[0].mxu0 %v679
    %v994 = vpop.f32.mrb[0].mxu0
    %v995 = vadd.f32 %v519, %v994
    %v996 = vpop.f32.mrb[0].mxu0
    %v997 = vadd.f32 %v521, %v996
    %998 = vmatprep.mubr.f32.mxu0 0.0
    %999 = vmatmul.mubr.f32.gmra.mrb[0].mxu0 %v682
    %v1000 = vpop.f32.mrb[0].mxu0
    %v1001 = vadd.f32 %v525, %v1000
    %v1002 = vpop.f32.mrb[0].mxu0
    %v1003 = vadd.f32 %v527, %v1002
    %1004 = vmatprep.mubr.f32.mxu0 0.0
    %1005 = vmatmul.mubr.f32.gmra.mrb[0].mxu0 %v685
    %v1006 = vpop.f32.mrb[0].mxu0
    %v1007 = vadd.f32 %v531, %v1006
    %v1008 = vpop.f32.mrb[0].mxu0
    %v1009 = vadd.f32 %v533, %v1008
    %1010 = vmatprep.mubr.f32.mxu0 0.0
    %1011 = vmatmul.mubr.f32.gmra.mrb[0].mxu0 %v688
    %v1012 = vpop.f32.mrb[0].mxu0
    %v1013 = vadd.f32 %v537, %v1012
    %v1014 = vpop.f32.mrb[0].mxu0
    %v1015 = vadd.f32 %v539, %v1014
    %1016 = vmatprep.mubr.f32.mxu0 0.0
    %1017 = vmatmul.mubr.f32.gmra.mrb[0].mxu0 %v691
    %v1018 = vpop.f32.mrb[0].mxu0
    %v1019 = vadd.f32 %v543, %v1018
    %v1020 = vpop.f32.mrb[0].mxu0
    %v1021 = vadd.f32 %v545, %v1020
    %1022 = vmatprep.mubr.f32.mxu0 0.0
    %1023 = vmatmul.mubr.f32.gmra.mrb[0].mxu0 %v694
    %v1024 = vpop.f32.mrb[0].mxu0
    %v1025 = vadd.f32 %v549, %v1024
    %v1026 = vpop.f32.mrb[0].mxu0
    %v1027 = vadd.f32 %v551, %v1026
    %1028 = vmatprep.mubr.f32.mxu0 0.0
    %1029 = vmatmul.mubr.f32.gmra.mrb[0].mxu0 %v697
    %v1030 = vpop.f32.mrb[0].mxu0
    %v1031 = vadd.f32 %v555, %v1030
    %v1032 = vpop.f32.mrb[0].mxu0
    %v1033 = vadd.f32 %v557, %v1032
    %1034 = vmatprep.mubr.f32.mxu0 0.0
    %1035 = vmatmul.mubr.f32.gmra.mrb[0].mxu0 %v700
    %v1036 = vpop.f32.mrb[0].mxu0
    %v1037 = vadd.f32 %v561, %v1036
    %v1038 = vpop.f32.mrb[0].mxu0
    %v1039 = vadd.f32 %v563, %v1038
    %1040 = vdwg.mxu0
    %1041 = vmatprep.subr.mxu0 %v177
    %1042 = vmatpush1.msra.mxu0 %v176
    %1043 = vmatprep.subr.mxu0 %v185
    %1044 = vmatpush1.msra.mxu0 %v184
    %1045 = vmatprep.subr.mxu0 0.0
    %1046 = vmatpush1.msra.mxu0 0.0
    %1047 = vmatprep.subr.mxu0 0.0
    %1048 = vmatpush1.msra.mxu0 0.0
    %1049 = vmatprep.subr.mxu0 0.0
    %1050 = vmatpush1.msra.mxu0 0.0
    %1051 = vmatprep.subr.mxu0 0.0
    %1052 = vmatpush1.msra.mxu0 0.0
    %1053 = vmatprep.subr.mxu0 0.0
    %1054 = vmatpush1.msra.mxu0 0.0
    %1055 = vmatprep.subr.mxu0 0.0
    %1056 = vmatpush1.msra.mxu0 0.0
    %1057 = vmatprep.subr.mxu0 0.0
    %1058 = vmatpush1.msra.mxu0 0.0
    %1059 = vmatprep.subr.mxu0 0.0
    %1060 = vmatpush1.msra.mxu0 0.0
    %1061 = vmatprep.subr.mxu0 0.0
    %1062 = vmatpush1.msra.mxu0 0.0
    %1063 = vmatprep.subr.mxu0 0.0
    %1064 = vmatpush1.msra.mxu0 0.0
    %1065 = vmatprep.subr.mxu0 0.0
    %1066 = vmatpush1.msra.mxu0 0.0
    %1067 = vmatprep.subr.mxu0 0.0
    %1068 = vmatpush1.msra.mxu0 0.0
    %1069 = vmatprep.subr.mxu0 0.0
    %1070 = vmatpush1.msra.mxu0 0.0
    %1071 = vmatprep.subr.mxu0 0.0
    %1072 = vmatpush1.msra.mxu0 0.0
    %1073 = vmatprep.subr.mxu0 0.0
    %1074 = vmatpush1.msra.mxu0 0.0
    %1075 = vmatprep.subr.mxu0 0.0
    %1076 = vmatpush1.msra.mxu0 0.0
    %1077 = vmatprep.subr.mxu0 0.0
    %1078 = vmatpush1.msra.mxu0 0.0
    %1079 = vmatprep.subr.mxu0 0.0
    %1080 = vmatpush1.msra.mxu0 0.0
    %1081 = vmatprep.subr.mxu0 0.0
    %1082 = vmatpush1.msra.mxu0 0.0
    %1083 = vmatprep.subr.mxu0 0.0
    %1084 = vmatpush1.msra.mxu0 0.0
    %1085 = vmatprep.subr.mxu0 0.0
    %1086 = vmatpush1.msra.mxu0 0.0
    %1087 = vmatprep.subr.mxu0 0.0
    %1088 = vmatpush1.msra.mxu0 0.0
    %1089 = vmatprep.subr.mxu0 0.0
    %1090 = vmatpush1.msra.mxu0 0.0
    %1091 = vmatprep.subr.mxu0 0.0
    %1092 = vmatpush1.msra.mxu0 0.0
    %1093 = vmatprep.subr.mxu0 0.0
    %1094 = vmatpush1.msra.mxu0 0.0
    %1095 = vmatprep.subr.mxu0 0.0
    %1096 = vmatpush1.msra.mxu0 0.0
    %1097 = vmatprep.subr.mxu0 0.0
    %1098 = vmatpush1.msra.mxu0 0.0
    %1099 = vmatprep.subr.mxu0 0.0
    %1100 = vmatpush1.msra.mxu0 0.0
    %1101 = vmatprep.subr.mxu0 0.0
    %1102 = vmatpush1.msra.mxu0 0.0
    %1103 = vmatprep.subr.mxu0 0.0
    %1104 = vmatpush1.msra.mxu0 0.0
    %1105 = vmatprep.mubr.f32.mxu0 0.0
    %1106 = vmatmul.mubr.f32.gmra.mrb[0].mxu0 %v679
    %v1107 = vpop.f32.mrb[0].mxu0
    %v1108 = vadd.f32 %v632, %v1107
    %v1109 = vpop.f32.mrb[0].mxu0
    %v1110 = vadd.f32 %v634, %v1109
    %1111 = vmatprep.mubr.f32.mxu0 0.0
    %1112 = vmatmul.mubr.f32.gmra.mrb[0].mxu0 %v682
    %v1113 = vpop.f32.mrb[0].mxu0
    %v1114 = vadd.f32 %v638, %v1113
    %v1115 = vpop.f32.mrb[0].mxu0
    %v1116 = vadd.f32 %v640, %v1115
    %1117 = vmatprep.mubr.f32.mxu0 0.0
    %1118 = vmatmul.mubr.f32.gmra.mrb[0].mxu0 %v685
    %v1119 = vpop.f32.mrb[0].mxu0
    %v1120 = vadd.f32 %v644, %v1119
    %v1121 = vpop.f32.mrb[0].mxu0
    %v1122 = vadd.f32 %v646, %v1121
    %1123 = vmatprep.mubr.f32.mxu0 0.0
    %1124 = vmatmul.mubr.f32.gmra.mrb[0].mxu0 %v688
    %v1125 = vpop.f32.mrb[0].mxu0
    %v1126 = vadd.f32 %v650, %v1125
    %v1127 = vpop.f32.mrb[0].mxu0
    %v1128 = vadd.f32 %v652, %v1127
    %1129 = vmatprep.mubr.f32.mxu0 0.0
    %1130 = vmatmul.mubr.f32.gmra.mrb[0].mxu0 %v691
    %v1131 = vpop.f32.mrb[0].mxu0
    %v1132 = vadd.f32 %v656, %v1131
    %v1133 = vpop.f32.mrb[0].mxu0
    %v1134 = vadd.f32 %v658, %v1133
    %1135 = vmatprep.mubr.f32.mxu0 0.0
    %1136 = vmatmul.mubr.f32.gmra.mrb[0].mxu0 %v694
    %v1137 = vpop.f32.mrb[0].mxu0
    %v1138 = vadd.f32 %v662, %v1137
    %v1139 = vpop.f32.mrb[0].mxu0
    %v1140 = vadd.f32 %v664, %v1139
    %1141 = vmatprep.mubr.f32.mxu0 0.0
    %1142 = vmatmul.mubr.f32.gmra.mrb[0].mxu0 %v697
    %v1143 = vpop.f32.mrb[0].mxu0
    %v1144 = vadd.f32 %v668, %v1143
    %v1145 = vpop.f32.mrb[0].mxu0
    %v1146 = vadd.f32 %v670, %v1145
    %1147 = vmatprep.mubr.f32.mxu0 0.0
    %1148 = vmatmul.mubr.f32.gmra.mrb[0].mxu0 %v700
    %v1149 = vpop.f32.mrb[0].mxu0
    %v1150 = vadd.f32 %v674, %v1149
    %v1151 = vpop.f32.mrb[0].mxu0
    %v1152 = vadd.f32 %v676, %v1151
    %1153 = vdwg.mxu0
    %v1154 = vld [vmem:[%s4] sm:$0xff]
    %v1156 = vlaneseq
    %v1157 = vshrl.u32 %v1156, 7
    %v1158 = vsub.s32 0, %v1157
    %v1159 = vrot.slane %v1154, %v1158
    %v1160 = vlaneseq
    %v1161 = vshrl.u32 %v1160, 7
    %v1162 = vsub.s32 1, %v1161
    %v1163 = vrot.slane %v1154, %v1162
    %v1164 = vlaneseq
    %v1165 = vshrl.u32 %v1164, 7
    %v1166 = vsub.s32 2, %v1165
    %v1167 = vrot.slane %v1154, %v1166
    %v1168 = vlaneseq
    %v1169 = vshrl.u32 %v1168, 7
    %v1170 = vsub.s32 3, %v1169
    %v1171 = vrot.slane %v1154, %v1170
    %v1172 = vlaneseq
    %v1173 = vshrl.u32 %v1172, 7
    %v1174 = vsub.s32 4, %v1173
    %v1175 = vrot.slane %v1154, %v1174
    %v1176 = vlaneseq
    %v1177 = vshrl.u32 %v1176, 7
    %v1178 = vsub.s32 5, %v1177
    %v1179 = vrot.slane %v1154, %v1178
    %v1180 = vlaneseq
    %v1181 = vshrl.u32 %v1180, 7
    %v1182 = vsub.s32 6, %v1181
    %v1183 = vrot.slane %v1154, %v1182
    %v1184 = vlaneseq
    %v1185 = vshrl.u32 %v1184, 7
    %v1186 = vsub.s32 7, %v1185
    %v1187 = vrot.slane %v1154, %v1186
    %v1196 = vadd.f32 %v769, %v1159
    %v1197 = vadd.f32 %v771, %v1163
    %v1198 = vadd.f32 %v882, %v1167
    %v1199 = vadd.f32 %v884, %v1171
    %v1200 = vadd.f32 %v995, %v1175
    %v1201 = vadd.f32 %v997, %v1179
    %v1202 = vadd.f32 %v1108, %v1183
    %v1203 = vadd.f32 %v1110, %v1187
    %v1204 = vadd.f32 %v775, %v1159
    %v1205 = vadd.f32 %v777, %v1163
    %v1206 = vadd.f32 %v888, %v1167
    %v1207 = vadd.f32 %v890, %v1171
    %v1208 = vadd.f32 %v1001, %v1175
    %v1209 = vadd.f32 %v1003, %v1179
    %v1210 = vadd.f32 %v1114, %v1183
    %v1211 = vadd.f32 %v1116, %v1187
    %v1212 = vadd.f32 %v781, %v1159
    %v1213 = vadd.f32 %v783, %v1163
    %v1214 = vadd.f32 %v894, %v1167
    %v1215 = vadd.f32 %v896, %v1171
    %v1216 = vadd.f32 %v1007, %v1175
    %v1217 = vadd.f32 %v1009, %v1179
    %v1218 = vadd.f32 %v1120, %v1183
    %v1219 = vadd.f32 %v1122, %v1187
    %v1220 = vadd.f32 %v787, %v1159
    %v1221 = vadd.f32 %v789, %v1163
    %v1222 = vadd.f32 %v900, %v1167
    %v1223 = vadd.f32 %v902, %v1171
    %v1224 = vadd.f32 %v1013, %v1175
    %v1225 = vadd.f32 %v1015, %v1179
    %v1226 = vadd.f32 %v1126, %v1183
    %v1227 = vadd.f32 %v1128, %v1187
    %v1228 = vadd.f32 %v793, %v1159
    %v1229 = vadd.f32 %v795, %v1163
    %v1230 = vadd.f32 %v906, %v1167
    %v1231 = vadd.f32 %v908, %v1171
    %v1232 = vadd.f32 %v1019, %v1175
    %v1233 = vadd.f32 %v1021, %v1179
    %v1234 = vadd.f32 %v1132, %v1183
    %v1235 = vadd.f32 %v1134, %v1187
    %v1236 = vadd.f32 %v799, %v1159
    %v1237 = vadd.f32 %v801, %v1163
    %v1238 = vadd.f32 %v912, %v1167
    %v1239 = vadd.f32 %v914, %v1171
    %v1240 = vadd.f32 %v1025, %v1175
    %v1241 = vadd.f32 %v1027, %v1179
    %v1242 = vadd.f32 %v1138, %v1183
    %v1243 = vadd.f32 %v1140, %v1187
    %v1244 = vadd.f32 %v805, %v1159
    %v1245 = vadd.f32 %v807, %v1163
    %v1246 = vadd.f32 %v918, %v1167
    %v1247 = vadd.f32 %v920, %v1171
    %v1248 = vadd.f32 %v1031, %v1175
    %v1249 = vadd.f32 %v1033, %v1179
    %v1250 = vadd.f32 %v1144, %v1183
    %v1251 = vadd.f32 %v1146, %v1187
    %v1252 = vadd.f32 %v811, %v1159
    %v1253 = vadd.f32 %v813, %v1163
    %v1254 = vadd.f32 %v924, %v1167
    %v1255 = vadd.f32 %v926, %v1171
    %v1256 = vadd.f32 %v1037, %v1175
    %v1257 = vadd.f32 %v1039, %v1179
    %v1258 = vadd.f32 %v1150, %v1183
    %v1259 = vadd.f32 %v1152, %v1187
    %1260 = vst [vmem:[#allocation2] sm:$0xff] %v1196
    %1261 = vst [vmem:[#allocation2 + $0x8] sm:$0xff] %v1197
    %1262 = vst [vmem:[#allocation2 + $0x10] sm:$0xff] %v1198
    %1263 = vst [vmem:[#allocation2 + $0x18] sm:$0xff] %v1199
    %1264 = vst [vmem:[#allocation2 + $0x20] sm:$0xff] %v1200
    %1265 = vst [vmem:[#allocation2 + $0x28] sm:$0xff] %v1201
    %1266 = vst [vmem:[#allocation2 + $0x30] sm:$0xff] %v1202
    %1267 = vst [vmem:[#allocation2 + $0x38] sm:$0xff] %v1203
    %1268 = vst [vmem:[#allocation2 + $0x40] sm:$0xff] %v1204
    %1269 = vst [vmem:[#allocation2 + $0x48] sm:$0xff] %v1205
    %1270 = vst [vmem:[#allocation2 + $0x50] sm:$0xff] %v1206
    %1271 = vst [vmem:[#allocation2 + $0x58] sm:$0xff] %v1207
    %1272 = vst [vmem:[#allocation2 + $0x60] sm:$0xff] %v1208
    %1273 = vst [vmem:[#allocation2 + $0x68] sm:$0xff] %v1209
    %1274 = vst [vmem:[#allocation2 + $0x70] sm:$0xff] %v1210
    %1275 = vst [vmem:[#allocation2 + $0x78] sm:$0xff] %v1211
    %1276 = vst [vmem:[#allocation2 + $0x80] sm:$0xff] %v1212
    %1277 = vst [vmem:[#allocation2 + $0x88] sm:$0xff] %v1213
    %1278 = vst [vmem:[#allocation2 + $0x90] sm:$0xff] %v1214
    %1279 = vst [vmem:[#allocation2 + $0x98] sm:$0xff] %v1215
    %1280 = vst [vmem:[#allocation2 + $0xa0] sm:$0xff] %v1216
    %1281 = vst [vmem:[#allocation2 + $0xa8] sm:$0xff] %v1217
    %1282 = vst [vmem:[#allocation2 + $0xb0] sm:$0xff] %v1218
    %1283 = vst [vmem:[#allocation2 + $0xb8] sm:$0xff] %v1219
    %1284 = vst [vmem:[#allocation2 + $0xc0] sm:$0xff] %v1220
    %1285 = vst [vmem:[#allocation2 + $0xc8] sm:$0xff] %v1221
    %1286 = vst [vmem:[#allocation2 + $0xd0] sm:$0xff] %v1222
    %1287 = vst [vmem:[#allocation2 + $0xd8] sm:$0xff] %v1223
    %1288 = vst [vmem:[#allocation2 + $0xe0] sm:$0xff] %v1224
    %1289 = vst [vmem:[#allocation2 + $0xe8] sm:$0xff] %v1225
    %1290 = vst [vmem:[#allocation2 + $0xf0] sm:$0xff] %v1226
    %1291 = vst [vmem:[#allocation2 + $0xf8] sm:$0xff] %v1227
    %1292 = vst [vmem:[#allocation2 + $0x100] sm:$0xff] %v1228
    %1293 = vst [vmem:[#allocation2 + $0x108] sm:$0xff] %v1229
    %1294 = vst [vmem:[#allocation2 + $0x110] sm:$0xff] %v1230
    %1295 = vst [vmem:[#allocation2 + $0x118] sm:$0xff] %v1231
    %1296 = vst [vmem:[#allocation2 + $0x120] sm:$0xff] %v1232
    %1297 = vst [vmem:[#allocation2 + $0x128] sm:$0xff] %v1233
    %1298 = vst [vmem:[#allocation2 + $0x130] sm:$0xff] %v1234
    %1299 = vst [vmem:[#allocation2 + $0x138] sm:$0xff] %v1235
    %1300 = vst [vmem:[#allocation2 + $0x140] sm:$0xff] %v1236
    %1301 = vst [vmem:[#allocation2 + $0x148] sm:$0xff] %v1237
    %1302 = vst [vmem:[#allocation2 + $0x150] sm:$0xff] %v1238
    %1303 = vst [vmem:[#allocation2 + $0x158] sm:$0xff] %v1239
    %1304 = vst [vmem:[#allocation2 + $0x160] sm:$0xff] %v1240
    %1305 = vst [vmem:[#allocation2 + $0x168] sm:$0xff] %v1241
    %1306 = vst [vmem:[#allocation2 + $0x170] sm:$0xff] %v1242
    %1307 = vst [vmem:[#allocation2 + $0x178] sm:$0xff] %v1243
    %1308 = vst [vmem:[#allocation2 + $0x180] sm:$0xff] %v1244
    %1309 = vst [vmem:[#allocation2 + $0x188] sm:$0xff] %v1245
    %1310 = vst [vmem:[#allocation2 + $0x190] sm:$0xff] %v1246
    %1311 = vst [vmem:[#allocation2 + $0x198] sm:$0xff] %v1247
    %1312 = vst [vmem:[#allocation2 + $0x1a0] sm:$0xff] %v1248
    %1313 = vst [vmem:[#allocation2 + $0x1a8] sm:$0xff] %v1249
    %1314 = vst [vmem:[#allocation2 + $0x1b0] sm:$0xff] %v1250
    %1315 = vst [vmem:[#allocation2 + $0x1b8] sm:$0xff] %v1251
    %1316 = vst [vmem:[#allocation2 + $0x1c0] sm:$0xff] %v1252
    %1317 = vst [vmem:[#allocation2 + $0x1c8] sm:$0xff] %v1253
    %1318 = vst [vmem:[#allocation2 + $0x1d0] sm:$0xff] %v1254
    %1319 = vst [vmem:[#allocation2 + $0x1d8] sm:$0xff] %v1255
    %1320 = vst [vmem:[#allocation2 + $0x1e0] sm:$0xff] %v1256
    %1321 = vst [vmem:[#allocation2 + $0x1e8] sm:$0xff] %v1257
    %1322 = vst [vmem:[#allocation2 + $0x1f0] sm:$0xff] %v1258
    %1323 = vst [vmem:[#allocation2 + $0x1f8] sm:$0xff] %v1259
    %v1324 = vld [vmem:[#allocation6] sm:$0xff]
    %v1325 = vld [vmem:[#allocation6 + $0x8] sm:$0xff]
    %v1326 = vld [vmem:[#allocation6 + $0x10] sm:$0xff]
    %v1327 = vld [vmem:[#allocation6 + $0x18] sm:$0xff]
    %v1328 = vld [vmem:[#allocation6 + $0x20] sm:$0xff]
    %v1329 = vld [vmem:[#allocation6 + $0x28] sm:$0xff]
    %v1330 = vld [vmem:[#allocation6 + $0x30] sm:$0xff]
    %v1331 = vld [vmem:[#allocation6 + $0x38] sm:$0xff]
    %v1332 = vld [vmem:[#allocation6 + $0x40] sm:$0xff]
    %v1333 = vld [vmem:[#allocation6 + $0x48] sm:$0xff]
    %v1334 = vld [vmem:[#allocation6 + $0x50] sm:$0xff]
    %v1335 = vld [vmem:[#allocation6 + $0x58] sm:$0xff]
    %v1336 = vld [vmem:[#allocation6 + $0x60] sm:$0xff]
    %v1337 = vld [vmem:[#allocation6 + $0x68] sm:$0xff]
    %v1338 = vld [vmem:[#allocation6 + $0x70] sm:$0xff]
    %v1339 = vld [vmem:[#allocation6 + $0x78] sm:$0xff]
    %v1340 = vld [vmem:[#allocation6 + $0x80] sm:$0xff]
    %v1341 = vld [vmem:[#allocation6 + $0x88] sm:$0xff]
    %v1342 = vld [vmem:[#allocation6 + $0x90] sm:$0xff]
    %v1343 = vld [vmem:[#allocation6 + $0x98] sm:$0xff]
    %v1344 = vld [vmem:[#allocation6 + $0xa0] sm:$0xff]
    %v1345 = vld [vmem:[#allocation6 + $0xa8] sm:$0xff]
    %v1346 = vld [vmem:[#allocation6 + $0xb0] sm:$0xff]
    %v1347 = vld [vmem:[#allocation6 + $0xb8] sm:$0xff]
    %v1348 = vld [vmem:[#allocation6 + $0xc0] sm:$0xff]
    %v1349 = vld [vmem:[#allocation6 + $0xc8] sm:$0xff]
    %v1350 = vld [vmem:[#allocation6 + $0xd0] sm:$0xff]
    %v1351 = vld [vmem:[#allocation6 + $0xd8] sm:$0xff]
    %v1352 = vld [vmem:[#allocation6 + $0xe0] sm:$0xff]
    %v1353 = vld [vmem:[#allocation6 + $0xe8] sm:$0xff]
    %v1354 = vld [vmem:[#allocation6 + $0xf0] sm:$0xff]
    %v1355 = vld [vmem:[#allocation6 + $0xf8] sm:$0xff]
    %v1356 = vld [vmem:[#allocation6 + $0x100] sm:$0xff]
    %v1357 = vld [vmem:[#allocation6 + $0x108] sm:$0xff]
    %v1358 = vld [vmem:[#allocation6 + $0x110] sm:$0xff]
    %v1359 = vld [vmem:[#allocation6 + $0x118] sm:$0xff]
    %v1360 = vld [vmem:[#allocation6 + $0x120] sm:$0xff]
    %v1361 = vld [vmem:[#allocation6 + $0x128] sm:$0xff]
    %v1362 = vld [vmem:[#allocation6 + $0x130] sm:$0xff]
    %v1363 = vld [vmem:[#allocation6 + $0x138] sm:$0xff]
    %v1364 = vld [vmem:[#allocation6 + $0x140] sm:$0xff]
    %v1365 = vld [vmem:[#allocation6 + $0x148] sm:$0xff]
    %v1366 = vld [vmem:[#allocation6 + $0x150] sm:$0xff]
    %v1367 = vld [vmem:[#allocation6 + $0x158] sm:$0xff]
    %v1368 = vld [vmem:[#allocation6 + $0x160] sm:$0xff]
    %v1369 = vld [vmem:[#allocation6 + $0x168] sm:$0xff]
    %v1370 = vld [vmem:[#allocation6 + $0x170] sm:$0xff]
    %v1371 = vld [vmem:[#allocation6 + $0x178] sm:$0xff]
    %v1372 = vld [vmem:[#allocation6 + $0x180] sm:$0xff]
    %v1373 = vld [vmem:[#allocation6 + $0x188] sm:$0xff]
    %v1374 = vld [vmem:[#allocation6 + $0x190] sm:$0xff]
    %v1375 = vld [vmem:[#allocation6 + $0x198] sm:$0xff]
    %v1376 = vld [vmem:[#allocation6 + $0x1a0] sm:$0xff]
    %v1377 = vld [vmem:[#allocation6 + $0x1a8] sm:$0xff]
    %v1378 = vld [vmem:[#allocation6 + $0x1b0] sm:$0xff]
    %v1379 = vld [vmem:[#allocation6 + $0x1b8] sm:$0xff]
    %v1380 = vld [vmem:[#allocation6 + $0x1c0] sm:$0xff]
    %v1381 = vld [vmem:[#allocation6 + $0x1c8] sm:$0xff]
    %v1382 = vld [vmem:[#allocation6 + $0x1d0] sm:$0xff]
    %v1383 = vld [vmem:[#allocation6 + $0x1d8] sm:$0xff]
    %v1384 = vld [vmem:[#allocation6 + $0x1e0] sm:$0xff]
    %v1385 = vld [vmem:[#allocation6 + $0x1e8] sm:$0xff]
    %v1386 = vld [vmem:[#allocation6 + $0x1f0] sm:$0xff]
    %v1387 = vld [vmem:[#allocation6 + $0x1f8] sm:$0xff]
    %v1388 = vld [vmem:[#allocation6 + $0x200] sm:$0xff]
    %v1389 = vld [vmem:[#allocation6 + $0x208] sm:$0xff]
    %v1390 = vld [vmem:[#allocation6 + $0x210] sm:$0xff]
    %v1391 = vld [vmem:[#allocation6 + $0x218] sm:$0xff]
    %v1392 = vld [vmem:[#allocation6 + $0x220] sm:$0xff]
    %v1393 = vld [vmem:[#allocation6 + $0x228] sm:$0xff]
    %v1394 = vld [vmem:[#allocation6 + $0x230] sm:$0xff]
    %v1395 = vld [vmem:[#allocation6 + $0x238] sm:$0xff]
    %v1396 = vld [vmem:[#allocation6 + $0x240] sm:$0xff]
    %v1397 = vld [vmem:[#allocation6 + $0x248] sm:$0xff]
    %v1398 = vld [vmem:[#allocation6 + $0x250] sm:$0xff]
    %v1399 = vld [vmem:[#allocation6 + $0x258] sm:$0xff]
    %v1400 = vld [vmem:[#allocation6 + $0x260] sm:$0xff]
    %v1401 = vld [vmem:[#allocation6 + $0x268] sm:$0xff]
    %v1402 = vld [vmem:[#allocation6 + $0x270] sm:$0xff]
    %v1403 = vld [vmem:[#allocation6 + $0x278] sm:$0xff]
    %v1404 = vld [vmem:[#allocation6 + $0x280] sm:$0xff]
    %v1405 = vld [vmem:[#allocation6 + $0x288] sm:$0xff]
    %v1406 = vld [vmem:[#allocation6 + $0x290] sm:$0xff]
    %v1407 = vld [vmem:[#allocation6 + $0x298] sm:$0xff]
    %v1408 = vld [vmem:[#allocation6 + $0x2a0] sm:$0xff]
    %v1409 = vld [vmem:[#allocation6 + $0x2a8] sm:$0xff]
    %v1410 = vld [vmem:[#allocation6 + $0x2b0] sm:$0xff]
    %v1411 = vld [vmem:[#allocation6 + $0x2b8] sm:$0xff]
    %v1412 = vld [vmem:[#allocation6 + $0x2c0] sm:$0xff]
    %v1413 = vld [vmem:[#allocation6 + $0x2c8] sm:$0xff]
    %v1414 = vld [vmem:[#allocation6 + $0x2d0] sm:$0xff]
    %v1415 = vld [vmem:[#allocation6 + $0x2d8] sm:$0xff]
    %v1416 = vld [vmem:[#allocation6 + $0x2e0] sm:$0xff]
    %v1417 = vld [vmem:[#allocation6 + $0x2e8] sm:$0xff]
    %v1418 = vld [vmem:[#allocation6 + $0x2f0] sm:$0xff]
    %v1419 = vld [vmem:[#allocation6 + $0x2f8] sm:$0xff]
    %v1420 = vld [vmem:[#allocation6 + $0x300] sm:$0xff]
    %v1421 = vld [vmem:[#allocation6 + $0x308] sm:$0xff]
    %v1422 = vld [vmem:[#allocation6 + $0x310] sm:$0xff]
    %v1423 = vld [vmem:[#allocation6 + $0x318] sm:$0xff]
    %v1424 = vld [vmem:[#allocation6 + $0x320] sm:$0xff]
    %v1425 = vld [vmem:[#allocation6 + $0x328] sm:$0xff]
    %v1426 = vld [vmem:[#allocation6 + $0x330] sm:$0xff]
    %v1427 = vld [vmem:[#allocation6 + $0x338] sm:$0xff]
    %v1428 = vld [vmem:[#allocation6 + $0x340] sm:$0xff]
    %v1429 = vld [vmem:[#allocation6 + $0x348] sm:$0xff]
    %v1430 = vld [vmem:[#allocation6 + $0x350] sm:$0xff]
    %v1431 = vld [vmem:[#allocation6 + $0x358] sm:$0xff]
    %v1432 = vld [vmem:[#allocation6 + $0x360] sm:$0xff]
    %v1433 = vld [vmem:[#allocation6 + $0x368] sm:$0xff]
    %v1434 = vld [vmem:[#allocation6 + $0x370] sm:$0xff]
    %v1435 = vld [vmem:[#allocation6 + $0x378] sm:$0xff]
    %v1436 = vld [vmem:[#allocation6 + $0x380] sm:$0xff]
    %v1437 = vld [vmem:[#allocation6 + $0x388] sm:$0xff]
    %v1438 = vld [vmem:[#allocation6 + $0x390] sm:$0xff]
    %v1439 = vld [vmem:[#allocation6 + $0x398] sm:$0xff]
    %v1440 = vld [vmem:[#allocation6 + $0x3a0] sm:$0xff]
    %v1441 = vld [vmem:[#allocation6 + $0x3a8] sm:$0xff]
    %v1442 = vld [vmem:[#allocation6 + $0x3b0] sm:$0xff]
    %v1443 = vld [vmem:[#allocation6 + $0x3b8] sm:$0xff]
    %v1444 = vld [vmem:[#allocation6 + $0x3c0] sm:$0xff]
    %v1445 = vld [vmem:[#allocation6 + $0x3c8] sm:$0xff]
    %v1446 = vld [vmem:[#allocation6 + $0x3d0] sm:$0xff]
    %v1447 = vld [vmem:[#allocation6 + $0x3d8] sm:$0xff]
    %v1448 = vld [vmem:[#allocation6 + $0x3e0] sm:$0xff]
    %v1449 = vld [vmem:[#allocation6 + $0x3e8] sm:$0xff]
    %v1450 = vld [vmem:[#allocation6 + $0x3f0] sm:$0xff]
    %v1451 = vld [vmem:[#allocation6 + $0x3f8] sm:$0xff]
    %v1452 = vld [vmem:[#allocation6 + $0x400] sm:$0xff]
    %v1453 = vld [vmem:[#allocation6 + $0x408] sm:$0xff]
    %v1454 = vld [vmem:[#allocation6 + $0x410] sm:$0xff]
    %v1455 = vld [vmem:[#allocation6 + $0x418] sm:$0xff]
    %v1456 = vld [vmem:[#allocation6 + $0x420] sm:$0xff]
    %v1457 = vld [vmem:[#allocation6 + $0x428] sm:$0xff]
    %v1458 = vld [vmem:[#allocation6 + $0x430] sm:$0xff]
    %v1459 = vld [vmem:[#allocation6 + $0x438] sm:$0xff]
    %v1460 = vld [vmem:[#allocation6 + $0x440] sm:$0xff]
    %v1461 = vld [vmem:[#allocation6 + $0x448] sm:$0xff]
    %v1462 = vld [vmem:[#allocation6 + $0x450] sm:$0xff]
    %v1463 = vld [vmem:[#allocation6 + $0x458] sm:$0xff]
    %v1464 = vld [vmem:[#allocation6 + $0x460] sm:$0xff]
    %v1465 = vld [vmem:[#allocation6 + $0x468] sm:$0xff]
    %v1466 = vld [vmem:[#allocation6 + $0x470] sm:$0xff]
    %v1467 = vld [vmem:[#allocation6 + $0x478] sm:$0xff]
    %v1468 = vld [vmem:[#allocation6 + $0x480] sm:$0xff]
    %v1469 = vld [vmem:[#allocation6 + $0x488] sm:$0xff]
    %v1470 = vld [vmem:[#allocation6 + $0x490] sm:$0xff]
    %v1471 = vld [vmem:[#allocation6 + $0x498] sm:$0xff]
    %v1472 = vld [vmem:[#allocation6 + $0x4a0] sm:$0xff]
    %v1473 = vld [vmem:[#allocation6 + $0x4a8] sm:$0xff]
    %v1474 = vld [vmem:[#allocation6 + $0x4b0] sm:$0xff]
    %v1475 = vld [vmem:[#allocation6 + $0x4b8] sm:$0xff]
    %v1476 = vld [vmem:[#allocation6 + $0x4c0] sm:$0xff]
    %v1477 = vld [vmem:[#allocation6 + $0x4c8] sm:$0xff]
    %v1478 = vld [vmem:[#allocation6 + $0x4d0] sm:$0xff]
    %v1479 = vld [vmem:[#allocation6 + $0x4d8] sm:$0xff]
    %v1480 = vld [vmem:[#allocation6 + $0x4e0] sm:$0xff]
    %v1481 = vld [vmem:[#allocation6 + $0x4e8] sm:$0xff]
    %v1482 = vld [vmem:[#allocation6 + $0x4f0] sm:$0xff]
    %v1483 = vld [vmem:[#allocation6 + $0x4f8] sm:$0xff]
    %v1484 = vld [vmem:[#allocation6 + $0x500] sm:$0xff]
    %v1485 = vld [vmem:[#allocation6 + $0x508] sm:$0xff]
    %v1486 = vld [vmem:[#allocation6 + $0x510] sm:$0xff]
    %v1487 = vld [vmem:[#allocation6 + $0x518] sm:$0xff]
    %v1488 = vld [vmem:[#allocation6 + $0x520] sm:$0xff]
    %v1489 = vld [vmem:[#allocation6 + $0x528] sm:$0xff]
    %v1490 = vld [vmem:[#allocation6 + $0x530] sm:$0xff]
    %v1491 = vld [vmem:[#allocation6 + $0x538] sm:$0xff]
    %v1492 = vld [vmem:[#allocation6 + $0x540] sm:$0xff]
    %v1493 = vld [vmem:[#allocation6 + $0x548] sm:$0xff]
    %v1494 = vld [vmem:[#allocation6 + $0x550] sm:$0xff]
    %v1495 = vld [vmem:[#allocation6 + $0x558] sm:$0xff]
    %v1496 = vld [vmem:[#allocation6 + $0x560] sm:$0xff]
    %v1497 = vld [vmem:[#allocation6 + $0x568] sm:$0xff]
    %v1498 = vld [vmem:[#allocation6 + $0x570] sm:$0xff]
    %v1499 = vld [vmem:[#allocation6 + $0x578] sm:$0xff]
    %v1500 = vld [vmem:[#allocation6 + $0x580] sm:$0xff]
    %v1501 = vld [vmem:[#allocation6 + $0x588] sm:$0xff]
    %v1502 = vld [vmem:[#allocation6 + $0x590] sm:$0xff]
    %v1503 = vld [vmem:[#allocation6 + $0x598] sm:$0xff]
    %v1504 = vld [vmem:[#allocation6 + $0x5a0] sm:$0xff]
    %v1505 = vld [vmem:[#allocation6 + $0x5a8] sm:$0xff]
    %v1506 = vld [vmem:[#allocation6 + $0x5b0] sm:$0xff]
    %v1507 = vld [vmem:[#allocation6 + $0x5b8] sm:$0xff]
    %v1508 = vld [vmem:[#allocation6 + $0x5c0] sm:$0xff]
    %v1509 = vld [vmem:[#allocation6 + $0x5c8] sm:$0xff]
    %v1510 = vld [vmem:[#allocation6 + $0x5d0] sm:$0xff]
    %v1511 = vld [vmem:[#allocation6 + $0x5d8] sm:$0xff]
    %v1512 = vld [vmem:[#allocation6 + $0x5e0] sm:$0xff]
    %v1513 = vld [vmem:[#allocation6 + $0x5e8] sm:$0xff]
    %v1514 = vld [vmem:[#allocation6 + $0x5f0] sm:$0xff]
    %v1515 = vld [vmem:[#allocation6 + $0x5f8] sm:$0xff]
    %v1516 = vld [vmem:[#allocation6 + $0x600] sm:$0xff]
    %v1517 = vld [vmem:[#allocation6 + $0x608] sm:$0xff]
    %v1518 = vld [vmem:[#allocation6 + $0x610] sm:$0xff]
    %v1519 = vld [vmem:[#allocation6 + $0x618] sm:$0xff]
    %v1520 = vld [vmem:[#allocation6 + $0x620] sm:$0xff]
    %v1521 = vld [vmem:[#allocation6 + $0x628] sm:$0xff]
    %v1522 = vld [vmem:[#allocation6 + $0x630] sm:$0xff]
    %v1523 = vld [vmem:[#allocation6 + $0x638] sm:$0xff]
    %v1524 = vld [vmem:[#allocation6 + $0x640] sm:$0xff]
    %v1525 = vld [vmem:[#allocation6 + $0x648] sm:$0xff]
    %v1526 = vld [vmem:[#allocation6 + $0x650] sm:$0xff]
    %v1527 = vld [vmem:[#allocation6 + $0x658] sm:$0xff]
    %v1528 = vld [vmem:[#allocation6 + $0x660] sm:$0xff]
    %v1529 = vld [vmem:[#allocation6 + $0x668] sm:$0xff]
    %v1530 = vld [vmem:[#allocation6 + $0x670] sm:$0xff]
    %v1531 = vld [vmem:[#allocation6 + $0x678] sm:$0xff]
    %v1532 = vld [vmem:[#allocation6 + $0x680] sm:$0xff]
    %v1533 = vld [vmem:[#allocation6 + $0x688] sm:$0xff]
    %v1534 = vld [vmem:[#allocation6 + $0x690] sm:$0xff]
    %v1535 = vld [vmem:[#allocation6 + $0x698] sm:$0xff]
    %v1536 = vld [vmem:[#allocation6 + $0x6a0] sm:$0xff]
    %v1537 = vld [vmem:[#allocation6 + $0x6a8] sm:$0xff]
    %v1538 = vld [vmem:[#allocation6 + $0x6b0] sm:$0xff]
    %v1539 = vld [vmem:[#allocation6 + $0x6b8] sm:$0xff]
    %v1540 = vld [vmem:[#allocation6 + $0x6c0] sm:$0xff]
    %v1541 = vld [vmem:[#allocation6 + $0x6c8] sm:$0xff]
    %v1542 = vld [vmem:[#allocation6 + $0x6d0] sm:$0xff]
    %v1543 = vld [vmem:[#allocation6 + $0x6d8] sm:$0xff]
    %v1544 = vld [vmem:[#allocation6 + $0x6e0] sm:$0xff]
    %v1545 = vld [vmem:[#allocation6 + $0x6e8] sm:$0xff]
    %v1546 = vld [vmem:[#allocation6 + $0x6f0] sm:$0xff]
    %v1547 = vld [vmem:[#allocation6 + $0x6f8] sm:$0xff]
    %v1548 = vld [vmem:[#allocation6 + $0x700] sm:$0xff]
    %v1549 = vld [vmem:[#allocation6 + $0x708] sm:$0xff]
    %v1550 = vld [vmem:[#allocation6 + $0x710] sm:$0xff]
    %v1551 = vld [vmem:[#allocation6 + $0x718] sm:$0xff]
    %v1552 = vld [vmem:[#allocation6 + $0x720] sm:$0xff]
    %v1553 = vld [vmem:[#allocation6 + $0x728] sm:$0xff]
    %v1554 = vld [vmem:[#allocation6 + $0x730] sm:$0xff]
    %v1555 = vld [vmem:[#allocation6 + $0x738] sm:$0xff]
    %v1556 = vld [vmem:[#allocation6 + $0x740] sm:$0xff]
    %v1557 = vld [vmem:[#allocation6 + $0x748] sm:$0xff]
    %v1558 = vld [vmem:[#allocation6 + $0x750] sm:$0xff]
    %v1559 = vld [vmem:[#allocation6 + $0x758] sm:$0xff]
    %v1560 = vld [vmem:[#allocation6 + $0x760] sm:$0xff]
    %v1561 = vld [vmem:[#allocation6 + $0x768] sm:$0xff]
    %v1562 = vld [vmem:[#allocation6 + $0x770] sm:$0xff]
    %v1563 = vld [vmem:[#allocation6 + $0x778] sm:$0xff]
    %v1564 = vld [vmem:[#allocation6 + $0x780] sm:$0xff]
    %v1565 = vld [vmem:[#allocation6 + $0x788] sm:$0xff]
    %v1566 = vld [vmem:[#allocation6 + $0x790] sm:$0xff]
    %v1567 = vld [vmem:[#allocation6 + $0x798] sm:$0xff]
    %v1568 = vld [vmem:[#allocation6 + $0x7a0] sm:$0xff]
    %v1569 = vld [vmem:[#allocation6 + $0x7a8] sm:$0xff]
    %v1570 = vld [vmem:[#allocation6 + $0x7b0] sm:$0xff]
    %v1571 = vld [vmem:[#allocation6 + $0x7b8] sm:$0xff]
    %v1572 = vld [vmem:[#allocation6 + $0x7c0] sm:$0xff]
    %v1573 = vld [vmem:[#allocation6 + $0x7c8] sm:$0xff]
    %v1574 = vld [vmem:[#allocation6 + $0x7d0] sm:$0xff]
    %v1575 = vld [vmem:[#allocation6 + $0x7d8] sm:$0xff]
    %v1576 = vld [vmem:[#allocation6 + $0x7e0] sm:$0xff]
    %v1577 = vld [vmem:[#allocation6 + $0x7e8] sm:$0xff]
    %v1578 = vld [vmem:[#allocation6 + $0x7f0] sm:$0xff]
    %v1579 = vld [vmem:[#allocation6 + $0x7f8] sm:$0xff]
    %v1580 = vld [vmem:[%s6] sm:$0xff]
    %v1581 = vld [vmem:[%s6 + $0x8] sm:$0xff]
    %v1582 = vld [vmem:[%s7] sm:$0xff]
    %v1583 = vld [vmem:[%s7 + $0x8] sm:$0xff]
    %v1584 = vld [vmem:[#allocation2] sm:$0xff]
    %v1585 = vld [vmem:[#allocation2 + $0x8] sm:$0xff]
    %v1586 = vld [vmem:[#allocation2 + $0x10] sm:$0xff]
    %v1587 = vld [vmem:[#allocation2 + $0x18] sm:$0xff]
    %v1588 = vld [vmem:[#allocation2 + $0x20] sm:$0xff]
    %v1589 = vld [vmem:[#allocation2 + $0x28] sm:$0xff]
    %v1590 = vld [vmem:[#allocation2 + $0x30] sm:$0xff]
    %v1591 = vld [vmem:[#allocation2 + $0x38] sm:$0xff]
    %1592 = vmatprep.subr.mxu0 %v1325
    %1593 = vmatpush1.msra.mxu0 %v1324
    %1594 = vmatprep.subr.mxu0 %v1333
    %1595 = vmatpush1.msra.mxu0 %v1332
    %1596 = vmatprep.subr.mxu0 %v1341
    %1597 = vmatpush1.msra.mxu0 %v1340
    %1598 = vmatprep.subr.mxu0 %v1349
    %1599 = vmatpush1.msra.mxu0 %v1348
    %1600 = vmatprep.subr.mxu0 %v1357
    %1601 = vmatpush1.msra.mxu0 %v1356
    %1602 = vmatprep.subr.mxu0 %v1365
    %1603 = vmatpush1.msra.mxu0 %v1364
    %1604 = vmatprep.subr.mxu0 %v1373
    %1605 = vmatpush1.msra.mxu0 %v1372
    %1606 = vmatprep.subr.mxu0 %v1381
    %1607 = vmatpush1.msra.mxu0 %v1380
    %1608 = vmatprep.subr.mxu0 %v1389
    %1609 = vmatpush1.msra.mxu0 %v1388
    %1610 = vmatprep.subr.mxu0 %v1397
    %1611 = vmatpush1.msra.mxu0 %v1396
    %1612 = vmatprep.subr.mxu0 %v1405
    %1613 = vmatpush1.msra.mxu0 %v1404
    %1614 = vmatprep.subr.mxu0 %v1413
    %1615 = vmatpush1.msra.mxu0 %v1412
    %1616 = vmatprep.subr.mxu0 %v1421
    %1617 = vmatpush1.msra.mxu0 %v1420
    %1618 = vmatprep.subr.mxu0 %v1429
    %1619 = vmatpush1.msra.mxu0 %v1428
    %1620 = vmatprep.subr.mxu0 %v1437
    %1621 = vmatpush1.msra.mxu0 %v1436
    %1622 = vmatprep.subr.mxu0 %v1445
    %1623 = vmatpush1.msra.mxu0 %v1444
    %1624 = vmatprep.subr.mxu0 %v1453
    %1625 = vmatpush1.msra.mxu0 %v1452
    %1626 = vmatprep.subr.mxu0 %v1461
    %1627 = vmatpush1.msra.mxu0 %v1460
    %1628 = vmatprep.subr.mxu0 %v1469
    %1629 = vmatpush1.msra.mxu0 %v1468
    %1630 = vmatprep.subr.mxu0 %v1477
    %1631 = vmatpush1.msra.mxu0 %v1476
    %1632 = vmatprep.subr.mxu0 %v1485
    %1633 = vmatpush1.msra.mxu0 %v1484
    %1634 = vmatprep.subr.mxu0 %v1493
    %1635 = vmatpush1.msra.mxu0 %v1492
    %1636 = vmatprep.subr.mxu0 %v1501
    %1637 = vmatpush1.msra.mxu0 %v1500
    %1638 = vmatprep.subr.mxu0 %v1509
    %1639 = vmatpush1.msra.mxu0 %v1508
    %1640 = vmatprep.subr.mxu0 %v1517
    %1641 = vmatpush1.msra.mxu0 %v1516
    %1642 = vmatprep.subr.mxu0 %v1525
    %1643 = vmatpush1.msra.mxu0 %v1524
    %1644 = vmatprep.subr.mxu0 %v1533
    %1645 = vmatpush1.msra.mxu0 %v1532
    %1646 = vmatprep.subr.mxu0 %v1541
    %1647 = vmatpush1.msra.mxu0 %v1540
    %1648 = vmatprep.subr.mxu0 %v1549
    %1649 = vmatpush1.msra.mxu0 %v1548
    %1650 = vmatprep.subr.mxu0 %v1557
    %1651 = vmatpush1.msra.mxu0 %v1556
    %1652 = vmatprep.subr.mxu0 %v1565
    %1653 = vmatpush1.msra.mxu0 %v1564
    %1654 = vmatprep.subr.mxu0 %v1573
    %1655 = vmatpush1.msra.mxu0 %v1572
    %1656 = vmatprep.mubr.f32.mxu0 %v1581
    %1657 = vmatmul.mubr.f32.gmra.mrb[0].mxu0 %v1580
    %v1658 = vpop.f32.mrb[0].mxu0
    %v1659 = vadd.f32 %v1584, %v1658
    %v1660 = vpop.f32.mrb[0].mxu0
    %v1661 = vadd.f32 %v1585, %v1660
    %1662 = vdwg.mxu0
    %1663 = vmatprep.subr.mxu0 %v1327
    %1664 = vmatpush1.msra.mxu0 %v1326
    %1665 = vmatprep.subr.mxu0 %v1335
    %1666 = vmatpush1.msra.mxu0 %v1334
    %1667 = vmatprep.subr.mxu0 %v1343
    %1668 = vmatpush1.msra.mxu0 %v1342
    %1669 = vmatprep.subr.mxu0 %v1351
    %1670 = vmatpush1.msra.mxu0 %v1350
    %1671 = vmatprep.subr.mxu0 %v1359
    %1672 = vmatpush1.msra.mxu0 %v1358
    %1673 = vmatprep.subr.mxu0 %v1367
    %1674 = vmatpush1.msra.mxu0 %v1366
    %1675 = vmatprep.subr.mxu0 %v1375
    %1676 = vmatpush1.msra.mxu0 %v1374
    %1677 = vmatprep.subr.mxu0 %v1383
    %1678 = vmatpush1.msra.mxu0 %v1382
    %1679 = vmatprep.subr.mxu0 %v1391
    %1680 = vmatpush1.msra.mxu0 %v1390
    %1681 = vmatprep.subr.mxu0 %v1399
    %1682 = vmatpush1.msra.mxu0 %v1398
    %1683 = vmatprep.subr.mxu0 %v1407
    %1684 = vmatpush1.msra.mxu0 %v1406
    %1685 = vmatprep.subr.mxu0 %v1415
    %1686 = vmatpush1.msra.mxu0 %v1414
    %1687 = vmatprep.subr.mxu0 %v1423
    %1688 = vmatpush1.msra.mxu0 %v1422
    %1689 = vmatprep.subr.mxu0 %v1431
    %1690 = vmatpush1.msra.mxu0 %v1430
    %1691 = vmatprep.subr.mxu0 %v1439
    %1692 = vmatpush1.msra.mxu0 %v1438
    %1693 = vmatprep.subr.mxu0 %v1447
    %1694 = vmatpush1.msra.mxu0 %v1446
    %1695 = vmatprep.subr.mxu0 %v1455
    %1696 = vmatpush1.msra.mxu0 %v1454
    %1697 = vmatprep.subr.mxu0 %v1463
    %1698 = vmatpush1.msra.mxu0 %v1462
    %1699 = vmatprep.subr.mxu0 %v1471
    %1700 = vmatpush1.msra.mxu0 %v1470
    %1701 = vmatprep.subr.mxu0 %v1479
    %1702 = vmatpush1.msra.mxu0 %v1478
    %1703 = vmatprep.subr.mxu0 %v1487
    %1704 = vmatpush1.msra.mxu0 %v1486
    %1705 = vmatprep.subr.mxu0 %v1495
    %1706 = vmatpush1.msra.mxu0 %v1494
    %1707 = vmatprep.subr.mxu0 %v1503
    %1708 = vmatpush1.msra.mxu0 %v1502
    %1709 = vmatprep.subr.mxu0 %v1511
    %1710 = vmatpush1.msra.mxu0 %v1510
    %1711 = vmatprep.subr.mxu0 %v1519
    %1712 = vmatpush1.msra.mxu0 %v1518
    %1713 = vmatprep.subr.mxu0 %v1527
    %1714 = vmatpush1.msra.mxu0 %v1526
    %1715 = vmatprep.subr.mxu0 %v1535
    %1716 = vmatpush1.msra.mxu0 %v1534
    %1717 = vmatprep.subr.mxu0 %v1543
    %1718 = vmatpush1.msra.mxu0 %v1542
    %1719 = vmatprep.subr.mxu0 %v1551
    %1720 = vmatpush1.msra.mxu0 %v1550
    %1721 = vmatprep.subr.mxu0 %v1559
    %1722 = vmatpush1.msra.mxu0 %v1558
    %1723 = vmatprep.subr.mxu0 %v1567
    %1724 = vmatpush1.msra.mxu0 %v1566
    %1725 = vmatprep.subr.mxu0 %v1575
    %1726 = vmatpush1.msra.mxu0 %v1574
    %1727 = vmatprep.mubr.f32.mxu0 %v1581
    %1728 = vmatmul.mubr.f32.gmra.mrb[0].mxu0 %v1580
    %v1729 = vpop.f32.mrb[0].mxu0
    %v1730 = vadd.f32 %v1586, %v1729
    %v1731 = vpop.f32.mrb[0].mxu0
    %v1732 = vadd.f32 %v1587, %v1731
    %1733 = vdwg.mxu0
    %1734 = vmatprep.subr.mxu0 %v1329
    %1735 = vmatpush1.msra.mxu0 %v1328
    %1736 = vmatprep.subr.mxu0 %v1337
    %1737 = vmatpush1.msra.mxu0 %v1336
    %1738 = vmatprep.subr.mxu0 %v1345
    %1739 = vmatpush1.msra.mxu0 %v1344
    %1740 = vmatprep.subr.mxu0 %v1353
    %1741 = vmatpush1.msra.mxu0 %v1352
    %1742 = vmatprep.subr.mxu0 %v1361
    %1743 = vmatpush1.msra.mxu0 %v1360
    %1744 = vmatprep.subr.mxu0 %v1369
    %1745 = vmatpush1.msra.mxu0 %v1368
    %1746 = vmatprep.subr.mxu0 %v1377
    %1747 = vmatpush1.msra.mxu0 %v1376
    %1748 = vmatprep.subr.mxu0 %v1385
    %1749 = vmatpush1.msra.mxu0 %v1384
    %1750 = vmatprep.subr.mxu0 %v1393
    %1751 = vmatpush1.msra.mxu0 %v1392
    %1752 = vmatprep.subr.mxu0 %v1401
    %1753 = vmatpush1.msra.mxu0 %v1400
    %1754 = vmatprep.subr.mxu0 %v1409
    %1755 = vmatpush1.msra.mxu0 %v1408
    %1756 = vmatprep.subr.mxu0 %v1417
    %1757 = vmatpush1.msra.mxu0 %v1416
    %1758 = vmatprep.subr.mxu0 %v1425
    %1759 = vmatpush1.msra.mxu0 %v1424
    %1760 = vmatprep.subr.mxu0 %v1433
    %1761 = vmatpush1.msra.mxu0 %v1432
    %1762 = vmatprep.subr.mxu0 %v1441
    %1763 = vmatpush1.msra.mxu0 %v1440
    %1764 = vmatprep.subr.mxu0 %v1449
    %1765 = vmatpush1.msra.mxu0 %v1448
    %1766 = vmatprep.subr.mxu0 %v1457
    %1767 = vmatpush1.msra.mxu0 %v1456
    %1768 = vmatprep.subr.mxu0 %v1465
    %1769 = vmatpush1.msra.mxu0 %v1464
    %1770 = vmatprep.subr.mxu0 %v1473
    %1771 = vmatpush1.msra.mxu0 %v1472
    %1772 = vmatprep.subr.mxu0 %v1481
    %1773 = vmatpush1.msra.mxu0 %v1480
    %1774 = vmatprep.subr.mxu0 %v1489
    %1775 = vmatpush1.msra.mxu0 %v1488
    %1776 = vmatprep.subr.mxu0 %v1497
    %1777 = vmatpush1.msra.mxu0 %v1496
    %1778 = vmatprep.subr.mxu0 %v1505
    %1779 = vmatpush1.msra.mxu0 %v1504
    %1780 = vmatprep.subr.mxu0 %v1513
    %1781 = vmatpush1.msra.mxu0 %v1512
    %1782 = vmatprep.subr.mxu0 %v1521
    %1783 = vmatpush1.msra.mxu0 %v1520
    %1784 = vmatprep.subr.mxu0 %v1529
    %1785 = vmatpush1.msra.mxu0 %v1528
    %1786 = vmatprep.subr.mxu0 %v1537
    %1787 = vmatpush1.msra.mxu0 %v1536
    %1788 = vmatprep.subr.mxu0 %v1545
    %1789 = vmatpush1.msra.mxu0 %v1544
    %1790 = vmatprep.subr.mxu0 %v1553
    %1791 = vmatpush1.msra.mxu0 %v1552
    %1792 = vmatprep.subr.mxu0 %v1561
    %1793 = vmatpush1.msra.mxu0 %v1560
    %1794 = vmatprep.subr.mxu0 %v1569
    %1795 = vmatpush1.msra.mxu0 %v1568
    %1796 = vmatprep.subr.mxu0 %v1577
    %1797 = vmatpush1.msra.mxu0 %v1576
    %1798 = vmatprep.mubr.f32.mxu0 %v1581
    %1799 = vmatmul.mubr.f32.gmra.mrb[0].mxu0 %v1580
    %v1800 = vpop.f32.mrb[0].mxu0
    %v1801 = vadd.f32 %v1588, %v1800
    %v1802 = vpop.f32.mrb[0].mxu0
    %v1803 = vadd.f32 %v1589, %v1802
    %1804 = vdwg.mxu0
    %1805 = vmatprep.subr.mxu0 %v1331
    %1806 = vmatpush1.msra.mxu0 %v1330
    %1807 = vmatprep.subr.mxu0 %v1339
    %1808 = vmatpush1.msra.mxu0 %v1338
    %1809 = vmatprep.subr.mxu0 %v1347
    %1810 = vmatpush1.msra.mxu0 %v1346
    %1811 = vmatprep.subr.mxu0 %v1355
    %1812 = vmatpush1.msra.mxu0 %v1354
    %1813 = vmatprep.subr.mxu0 %v1363
    %1814 = vmatpush1.msra.mxu0 %v1362
    %1815 = vmatprep.subr.mxu0 %v1371
    %1816 = vmatpush1.msra.mxu0 %v1370
    %1817 = vmatprep.subr.mxu0 %v1379
    %1818 = vmatpush1.msra.mxu0 %v1378
    %1819 = vmatprep.subr.mxu0 %v1387
    %1820 = vmatpush1.msra.mxu0 %v1386
    %1821 = vmatprep.subr.mxu0 %v1395
    %1822 = vmatpush1.msra.mxu0 %v1394
    %1823 = vmatprep.subr.mxu0 %v1403
    %1824 = vmatpush1.msra.mxu0 %v1402
    %1825 = vmatprep.subr.mxu0 %v1411
    %1826 = vmatpush1.msra.mxu0 %v1410
    %1827 = vmatprep.subr.mxu0 %v1419
    %1828 = vmatpush1.msra.mxu0 %v1418
    %1829 = vmatprep.subr.mxu0 %v1427
    %1830 = vmatpush1.msra.mxu0 %v1426
    %1831 = vmatprep.subr.mxu0 %v1435
    %1832 = vmatpush1.msra.mxu0 %v1434
    %1833 = vmatprep.subr.mxu0 %v1443
    %1834 = vmatpush1.msra.mxu0 %v1442
    %1835 = vmatprep.subr.mxu0 %v1451
    %1836 = vmatpush1.msra.mxu0 %v1450
    %1837 = vmatprep.subr.mxu0 %v1459
    %1838 = vmatpush1.msra.mxu0 %v1458
    %1839 = vmatprep.subr.mxu0 %v1467
    %1840 = vmatpush1.msra.mxu0 %v1466
    %1841 = vmatprep.subr.mxu0 %v1475
    %1842 = vmatpush1.msra.mxu0 %v1474
    %1843 = vmatprep.subr.mxu0 %v1483
    %1844 = vmatpush1.msra.mxu0 %v1482
    %1845 = vmatprep.subr.mxu0 %v1491
    %1846 = vmatpush1.msra.mxu0 %v1490
    %1847 = vmatprep.subr.mxu0 %v1499
    %1848 = vmatpush1.msra.mxu0 %v1498
    %1849 = vmatprep.subr.mxu0 %v1507
    %1850 = vmatpush1.msra.mxu0 %v1506
    %1851 = vmatprep.subr.mxu0 %v1515
    %1852 = vmatpush1.msra.mxu0 %v1514
    %1853 = vmatprep.subr.mxu0 %v1523
    %1854 = vmatpush1.msra.mxu0 %v1522
    %1855 = vmatprep.subr.mxu0 %v1531
    %1856 = vmatpush1.msra.mxu0 %v1530
    %1857 = vmatprep.subr.mxu0 %v1539
    %1858 = vmatpush1.msra.mxu0 %v1538
    %1859 = vmatprep.subr.mxu0 %v1547
    %1860 = vmatpush1.msra.mxu0 %v1546
    %1861 = vmatprep.subr.mxu0 %v1555
    %1862 = vmatpush1.msra.mxu0 %v1554
    %1863 = vmatprep.subr.mxu0 %v1563
    %1864 = vmatpush1.msra.mxu0 %v1562
    %1865 = vmatprep.subr.mxu0 %v1571
    %1866 = vmatpush1.msra.mxu0 %v1570
    %1867 = vmatprep.subr.mxu0 %v1579
    %1868 = vmatpush1.msra.mxu0 %v1578
    %1869 = vmatprep.mubr.f32.mxu0 %v1581
    %1870 = vmatmul.mubr.f32.gmra.mrb[0].mxu0 %v1580
    %v1871 = vpop.f32.mrb[0].mxu0
    %v1872 = vadd.f32 %v1590, %v1871
    %v1873 = vpop.f32.mrb[0].mxu0
    %v1874 = vadd.f32 %v1591, %v1873
    %1875 = vdwg.mxu0
    %v1876 = vxor.u32 %v1659, 2147483648
    %v1877 = vxor.u32 %v1661, 2147483648
    %v1878 = vmul.f32 %v1876, 1.442695
    %v1879 = vpow.pop %v1878
    %v1880 = vmul.f32 %v1877, 1.442695
    %v1881 = vpow.pop %v1880
    %v1882 = vadd.f32 %v1879, 1.0
    %v1883 = vadd.f32 %v1881, 1.0
    %v1884 = vrcp.pop %v1882
    %v1885 = vmul.f32 1.0, %v1884
    %v1886 = vrcp.pop %v1883
    %v1887 = vmul.f32 1.0, %v1886
    %v1888 = vxor.u32 %v1730, 2147483648
    %v1889 = vxor.u32 %v1732, 2147483648
    %v1890 = vmul.f32 %v1888, 1.442695
    %v1891 = vpow.pop %v1890
    %v1892 = vmul.f32 %v1889, 1.442695
    %v1893 = vpow.pop %v1892
    %v1894 = vadd.f32 %v1891, 1.0
    %v1895 = vadd.f32 %v1893, 1.0
    %v1896 = vrcp.pop %v1894
    %v1897 = vmul.f32 1.0, %v1896
    %v1898 = vrcp.pop %v1895
    %v1899 = vmul.f32 1.0, %v1898
    %v1900 = vtanh.pop %v1801
    %v1901 = vtanh.pop %v1803
    %v1902 = vxor.u32 %v1872, 2147483648
    %v1903 = vxor.u32 %v1874, 2147483648
    %v1904 = vmul.f32 %v1902, 1.442695
    %v1905 = vpow.pop %v1904
    %v1906 = vmul.f32 %v1903, 1.442695
    %v1907 = vpow.pop %v1906
    %v1908 = vadd.f32 %v1905, 1.0
    %v1909 = vadd.f32 %v1907, 1.0
    %v1910 = vrcp.pop %v1908
    %v1911 = vmul.f32 1.0, %v1910
    %v1912 = vrcp.pop %v1909
    %v1913 = vmul.f32 1.0, %v1912
    %v1914 = vmul.f32 %v1897, %v1582
    %v1915 = vmul.f32 %v1899, %v1583
    %v1916 = vmul.f32 %v1885, %v1900
    %v1917 = vmul.f32 %v1887, %v1901
    %v1918 = vadd.f32 %v1914, %v1916
    %v1919 = vadd.f32 %v1915, %v1917
    %v1920 = vtanh.pop %v1918
    %v1921 = vtanh.pop %v1919
    %v1922 = vmul.f32 %v1911, %v1920
    %v1923 = vmul.f32 %v1913, %v1921
    %1924 = vst [vmem:[#allocation3] sm:$0xff] %v1922
    %1925 = vst [vmem:[#allocation3 + $0x78] sm:$0xff] %v1923
    %v1926 = vld [vmem:[#allocation2 + $0x40] sm:$0xff]
    %v1927 = vld [vmem:[#allocation2 + $0x48] sm:$0xff]
    %v1928 = vld [vmem:[#allocation2 + $0x50] sm:$0xff]
    %v1929 = vld [vmem:[#allocation2 + $0x58] sm:$0xff]
    %v1930 = vld [vmem:[#allocation2 + $0x60] sm:$0xff]
    %v1931 = vld [vmem:[#allocation2 + $0x68] sm:$0xff]
    %v1932 = vld [vmem:[#allocation2 + $0x70] sm:$0xff]
    %v1933 = vld [vmem:[#allocation2 + $0x78] sm:$0xff]
    %1934 = vmatprep.subr.mxu0 %v1325
    %1935 = vmatpush1.msra.mxu0 %v1324
    %1936 = vmatprep.subr.mxu0 %v1333
    %1937 = vmatpush1.msra.mxu0 %v1332
    %1938 = vmatprep.subr.mxu0 %v1341
    %1939 = vmatpush1.msra.mxu0 %v1340
    %1940 = vmatprep.subr.mxu0 %v1349
    %1941 = vmatpush1.msra.mxu0 %v1348
    %1942 = vmatprep.subr.mxu0 %v1357
    %1943 = vmatpush1.msra.mxu0 %v1356
    %1944 = vmatprep.subr.mxu0 %v1365
    %1945 = vmatpush1.msra.mxu0 %v1364
    %1946 = vmatprep.subr.mxu0 %v1373
    %1947 = vmatpush1.msra.mxu0 %v1372
    %1948 = vmatprep.subr.mxu0 %v1381
    %1949 = vmatpush1.msra.mxu0 %v1380
    %1950 = vmatprep.subr.mxu0 %v1389
    %1951 = vmatpush1.msra.mxu0 %v1388
    %1952 = vmatprep.subr.mxu0 %v1397
    %1953 = vmatpush1.msra.mxu0 %v1396
    %1954 = vmatprep.subr.mxu0 %v1405
    %1955 = vmatpush1.msra.mxu0 %v1404
    %1956 = vmatprep.subr.mxu0 %v1413
    %1957 = vmatpush1.msra.mxu0 %v1412
    %1958 = vmatprep.subr.mxu0 %v1421
    %1959 = vmatpush1.msra.mxu0 %v1420
    %1960 = vmatprep.subr.mxu0 %v1429
    %1961 = vmatpush1.msra.mxu0 %v1428
    %1962 = vmatprep.subr.mxu0 %v1437
    %1963 = vmatpush1.msra.mxu0 %v1436
    %1964 = vmatprep.subr.mxu0 %v1445
    %1965 = vmatpush1.msra.mxu0 %v1444
    %1966 = vmatprep.subr.mxu0 %v1453
    %1967 = vmatpush1.msra.mxu0 %v1452
    %1968 = vmatprep.subr.mxu0 %v1461
    %1969 = vmatpush1.msra.mxu0 %v1460
    %1970 = vmatprep.subr.mxu0 %v1469
    %1971 = vmatpush1.msra.mxu0 %v1468
    %1972 = vmatprep.subr.mxu0 %v1477
    %1973 = vmatpush1.msra.mxu0 %v1476
    %1974 = vmatprep.subr.mxu0 %v1485
    %1975 = vmatpush1.msra.mxu0 %v1484
    %1976 = vmatprep.subr.mxu0 %v1493
    %1977 = vmatpush1.msra.mxu0 %v1492
    %1978 = vmatprep.subr.mxu0 %v1501
    %1979 = vmatpush1.msra.mxu0 %v1500
    %1980 = vmatprep.subr.mxu0 %v1509
    %1981 = vmatpush1.msra.mxu0 %v1508
    %1982 = vmatprep.subr.mxu0 %v1517
    %1983 = vmatpush1.msra.mxu0 %v1516
    %1984 = vmatprep.subr.mxu0 %v1525
    %1985 = vmatpush1.msra.mxu0 %v1524
    %1986 = vmatprep.subr.mxu0 %v1533
    %1987 = vmatpush1.msra.mxu0 %v1532
    %1988 = vmatprep.subr.mxu0 %v1541
    %1989 = vmatpush1.msra.mxu0 %v1540
    %1990 = vmatprep.subr.mxu0 %v1549
    %1991 = vmatpush1.msra.mxu0 %v1548
    %1992 = vmatprep.subr.mxu0 %v1557
    %1993 = vmatpush1.msra.mxu0 %v1556
    %1994 = vmatprep.subr.mxu0 %v1565
    %1995 = vmatpush1.msra.mxu0 %v1564
    %1996 = vmatprep.subr.mxu0 %v1573
    %1997 = vmatpush1.msra.mxu0 %v1572
    %1998 = vmatprep.mubr.f32.mxu0 %v1923
    %1999 = vmatmul.mubr.f32.gmra.mrb[0].mxu0 %v1922
    %v2000 = vpop.f32.mrb[0].mxu0
    %v2001 = vadd.f32 %v1926, %v2000
    %v2002 = vpop.f32.mrb[0].mxu0
    %v2003 = vadd.f32 %v1927, %v2002
    %2004 = vdwg.mxu0
    %2005 = vmatprep.subr.mxu0 %v1327
    %2006 = vmatpush1.msra.mxu0 %v1326
    %2007 = vmatprep.subr.mxu0 %v1335
    %2008 = vmatpush1.msra.mxu0 %v1334
    %2009 = vmatprep.subr.mxu0 %v1343
    %2010 = vmatpush1.msra.mxu0 %v1342
    %2011 = vmatprep.subr.mxu0 %v1351
    %2012 = vmatpush1.msra.mxu0 %v1350
    %2013 = vmatprep.subr.mxu0 %v1359
    %2014 = vmatpush1.msra.mxu0 %v1358
    %2015 = vmatprep.subr.mxu0 %v1367
    %2016 = vmatpush1.msra.mxu0 %v1366
    %2017 = vmatprep.subr.mxu0 %v1375
    %2018 = vmatpush1.msra.mxu0 %v1374
    %2019 = vmatprep.subr.mxu0 %v1383
    %2020 = vmatpush1.msra.mxu0 %v1382
    %2021 = vmatprep.subr.mxu0 %v1391
    %2022 = vmatpush1.msra.mxu0 %v1390
    %2023 = vmatprep.subr.mxu0 %v1399
    %2024 = vmatpush1.msra.mxu0 %v1398
    %2025 = vmatprep.subr.mxu0 %v1407
    %2026 = vmatpush1.msra.mxu0 %v1406
    %2027 = vmatprep.subr.mxu0 %v1415
    %2028 = vmatpush1.msra.mxu0 %v1414
    %2029 = vmatprep.subr.mxu0 %v1423
    %2030 = vmatpush1.msra.mxu0 %v1422
    %2031 = vmatprep.subr.mxu0 %v1431
    %2032 = vmatpush1.msra.mxu0 %v1430
    %2033 = vmatprep.subr.mxu0 %v1439
    %2034 = vmatpush1.msra.mxu0 %v1438
    %2035 = vmatprep.subr.mxu0 %v1447
    %2036 = vmatpush1.msra.mxu0 %v1446
    %2037 = vmatprep.subr.mxu0 %v1455
    %2038 = vmatpush1.msra.mxu0 %v1454
    %2039 = vmatprep.subr.mxu0 %v1463
    %2040 = vmatpush1.msra.mxu0 %v1462
    %2041 = vmatprep.subr.mxu0 %v1471
    %2042 = vmatpush1.msra.mxu0 %v1470
    %2043 = vmatprep.subr.mxu0 %v1479
    %2044 = vmatpush1.msra.mxu0 %v1478
    %2045 = vmatprep.subr.mxu0 %v1487
    %2046 = vmatpush1.msra.mxu0 %v1486
    %2047 = vmatprep.subr.mxu0 %v1495
    %2048 = vmatpush1.msra.mxu0 %v1494
    %2049 = vmatprep.subr.mxu0 %v1503
    %2050 = vmatpush1.msra.mxu0 %v1502
    %2051 = vmatprep.subr.mxu0 %v1511
    %2052 = vmatpush1.msra.mxu0 %v1510
    %2053 = vmatprep.subr.mxu0 %v1519
    %2054 = vmatpush1.msra.mxu0 %v1518
    %2055 = vmatprep.subr.mxu0 %v1527
    %2056 = vmatpush1.msra.mxu0 %v1526
    %2057 = vmatprep.subr.mxu0 %v1535
    %2058 = vmatpush1.msra.mxu0 %v1534
    %2059 = vmatprep.subr.mxu0 %v1543
    %2060 = vmatpush1.msra.mxu0 %v1542
    %2061 = vmatprep.subr.mxu0 %v1551
    %2062 = vmatpush1.msra.mxu0 %v1550
    %2063 = vmatprep.subr.mxu0 %v1559
    %2064 = vmatpush1.msra.mxu0 %v1558
    %2065 = vmatprep.subr.mxu0 %v1567
    %2066 = vmatpush1.msra.mxu0 %v1566
    %2067 = vmatprep.subr.mxu0 %v1575
    %2068 = vmatpush1.msra.mxu0 %v1574
    %2069 = vmatprep.mubr.f32.mxu0 %v1923
    %2070 = vmatmul.mubr.f32.gmra.mrb[0].mxu0 %v1922
    %v2071 = vpop.f32.mrb[0].mxu0
    %v2072 = vadd.f32 %v1928, %v2071
    %v2073 = vpop.f32.mrb[0].mxu0
    %v2074 = vadd.f32 %v1929, %v2073
    %2075 = vdwg.mxu0
    %2076 = vmatprep.subr.mxu0 %v1329
    %2077 = vmatpush1.msra.mxu0 %v1328
    %2078 = vmatprep.subr.mxu0 %v1337
    %2079 = vmatpush1.msra.mxu0 %v1336
    %2080 = vmatprep.subr.mxu0 %v1345
    %2081 = vmatpush1.msra.mxu0 %v1344
    %2082 = vmatprep.subr.mxu0 %v1353
    %2083 = vmatpush1.msra.mxu0 %v1352
    %2084 = vmatprep.subr.mxu0 %v1361
    %2085 = vmatpush1.msra.mxu0 %v1360
    %2086 = vmatprep.subr.mxu0 %v1369
    %2087 = vmatpush1.msra.mxu0 %v1368
    %2088 = vmatprep.subr.mxu0 %v1377
    %2089 = vmatpush1.msra.mxu0 %v1376
    %2090 = vmatprep.subr.mxu0 %v1385
    %2091 = vmatpush1.msra.mxu0 %v1384
    %2092 = vmatprep.subr.mxu0 %v1393
    %2093 = vmatpush1.msra.mxu0 %v1392
    %2094 = vmatprep.subr.mxu0 %v1401
    %2095 = vmatpush1.msra.mxu0 %v1400
    %2096 = vmatprep.subr.mxu0 %v1409
    %2097 = vmatpush1.msra.mxu0 %v1408
    %2098 = vmatprep.subr.mxu0 %v1417
    %2099 = vmatpush1.msra.mxu0 %v1416
    %2100 = vmatprep.subr.mxu0 %v1425
    %2101 = vmatpush1.msra.mxu0 %v1424
    %2102 = vmatprep.subr.mxu0 %v1433
    %2103 = vmatpush1.msra.mxu0 %v1432
    %2104 = vmatprep.subr.mxu0 %v1441
    %2105 = vmatpush1.msra.mxu0 %v1440
    %2106 = vmatprep.subr.mxu0 %v1449
    %2107 = vmatpush1.msra.mxu0 %v1448
    %2108 = vmatprep.subr.mxu0 %v1457
    %2109 = vmatpush1.msra.mxu0 %v1456
    %2110 = vmatprep.subr.mxu0 %v1465
    %2111 = vmatpush1.msra.mxu0 %v1464
    %2112 = vmatprep.subr.mxu0 %v1473
    %2113 = vmatpush1.msra.mxu0 %v1472
    %2114 = vmatprep.subr.mxu0 %v1481
    %2115 = vmatpush1.msra.mxu0 %v1480
    %2116 = vmatprep.subr.mxu0 %v1489
    %2117 = vmatpush1.msra.mxu0 %v1488
    %2118 = vmatprep.subr.mxu0 %v1497
    %2119 = vmatpush1.msra.mxu0 %v1496
    %2120 = vmatprep.subr.mxu0 %v1505
    %2121 = vmatpush1.msra.mxu0 %v1504
    %2122 = vmatprep.subr.mxu0 %v1513
    %2123 = vmatpush1.msra.mxu0 %v1512
    %2124 = vmatprep.subr.mxu0 %v1521
    %2125 = vmatpush1.msra.mxu0 %v1520
    %2126 = vmatprep.subr.mxu0 %v1529
    %2127 = vmatpush1.msra.mxu0 %v1528
    %2128 = vmatprep.subr.mxu0 %v1537
    %2129 = vmatpush1.msra.mxu0 %v1536
    %2130 = vmatprep.subr.mxu0 %v1545
    %2131 = vmatpush1.msra.mxu0 %v1544
    %2132 = vmatprep.subr.mxu0 %v1553
    %2133 = vmatpush1.msra.mxu0 %v1552
    %2134 = vmatprep.subr.mxu0 %v1561
    %2135 = vmatpush1.msra.mxu0 %v1560
    %2136 = vmatprep.subr.mxu0 %v1569
    %2137 = vmatpush1.msra.mxu0 %v1568
    %2138 = vmatprep.subr.mxu0 %v1577
    %2139 = vmatpush1.msra.mxu0 %v1576
    %2140 = vmatprep.mubr.f32.mxu0 %v1923
    %2141 = vmatmul.mubr.f32.gmra.mrb[0].mxu0 %v1922
    %v2142 = vpop.f32.mrb[0].mxu0
    %v2143 = vadd.f32 %v1930, %v2142
    %v2144 = vpop.f32.mrb[0].mxu0
    %v2145 = vadd.f32 %v1931, %v2144
    %2146 = vdwg.mxu0
    %2147 = vmatprep.subr.mxu0 %v1331
    %2148 = vmatpush1.msra.mxu0 %v1330
    %2149 = vmatprep.subr.mxu0 %v1339
    %2150 = vmatpush1.msra.mxu0 %v1338
    %2151 = vmatprep.subr.mxu0 %v1347
    %2152 = vmatpush1.msra.mxu0 %v1346
    %2153 = vmatprep.subr.mxu0 %v1355
    %2154 = vmatpush1.msra.mxu0 %v1354
    %2155 = vmatprep.subr.mxu0 %v1363
    %2156 = vmatpush1.msra.mxu0 %v1362
    %2157 = vmatprep.subr.mxu0 %v1371
    %2158 = vmatpush1.msra.mxu0 %v1370
    %2159 = vmatprep.subr.mxu0 %v1379
    %2160 = vmatpush1.msra.mxu0 %v1378
    %2161 = vmatprep.subr.mxu0 %v1387
    %2162 = vmatpush1.msra.mxu0 %v1386
    %2163 = vmatprep.subr.mxu0 %v1395
    %2164 = vmatpush1.msra.mxu0 %v1394
    %2165 = vmatprep.subr.mxu0 %v1403
    %2166 = vmatpush1.msra.mxu0 %v1402
    %2167 = vmatprep.subr.mxu0 %v1411
    %2168 = vmatpush1.msra.mxu0 %v1410
    %2169 = vmatprep.subr.mxu0 %v1419
    %2170 = vmatpush1.msra.mxu0 %v1418
    %2171 = vmatprep.subr.mxu0 %v1427
    %2172 = vmatpush1.msra.mxu0 %v1426
    %2173 = vmatprep.subr.mxu0 %v1435
    %2174 = vmatpush1.msra.mxu0 %v1434
    %2175 = vmatprep.subr.mxu0 %v1443
    %2176 = vmatpush1.msra.mxu0 %v1442
    %2177 = vmatprep.subr.mxu0 %v1451
    %2178 = vmatpush1.msra.mxu0 %v1450
    %2179 = vmatprep.subr.mxu0 %v1459
    %2180 = vmatpush1.msra.mxu0 %v1458
    %2181 = vmatprep.subr.mxu0 %v1467
    %2182 = vmatpush1.msra.mxu0 %v1466
    %2183 = vmatprep.subr.mxu0 %v1475
    %2184 = vmatpush1.msra.mxu0 %v1474
    %2185 = vmatprep.subr.mxu0 %v1483
    %2186 = vmatpush1.msra.mxu0 %v1482
    %2187 = vmatprep.subr.mxu0 %v1491
    %2188 = vmatpush1.msra.mxu0 %v1490
    %2189 = vmatprep.subr.mxu0 %v1499
    %2190 = vmatpush1.msra.mxu0 %v1498
    %2191 = vmatprep.subr.mxu0 %v1507
    %2192 = vmatpush1.msra.mxu0 %v1506
    %2193 = vmatprep.subr.mxu0 %v1515
    %2194 = vmatpush1.msra.mxu0 %v1514
    %2195 = vmatprep.subr.mxu0 %v1523
    %2196 = vmatpush1.msra.mxu0 %v1522
    %2197 = vmatprep.subr.mxu0 %v1531
    %2198 = vmatpush1.msra.mxu0 %v1530
    %2199 = vmatprep.subr.mxu0 %v1539
    %2200 = vmatpush1.msra.mxu0 %v1538
    %2201 = vmatprep.subr.mxu0 %v1547
    %2202 = vmatpush1.msra.mxu0 %v1546
    %2203 = vmatprep.subr.mxu0 %v1555
    %2204 = vmatpush1.msra.mxu0 %v1554
    %2205 = vmatprep.subr.mxu0 %v1563
    %2206 = vmatpush1.msra.mxu0 %v1562
    %2207 = vmatprep.subr.mxu0 %v1571
    %2208 = vmatpush1.msra.mxu0 %v1570
    %2209 = vmatprep.subr.mxu0 %v1579
    %2210 = vmatpush1.msra.mxu0 %v1578
    %2211 = vmatprep.mubr.f32.mxu0 %v1923
    %2212 = vmatmul.mubr.f32.gmra.mrb[0].mxu0 %v1922
    %v2213 = vpop.f32.mrb[0].mxu0
    %v2214 = vadd.f32 %v1932, %v2213
    %v2215 = vpop.f32.mrb[0].mxu0
    %v2216 = vadd.f32 %v1933, %v2215
    %2217 = vdwg.mxu0
    %v2218 = vxor.u32 %v2001, 2147483648
    %v2219 = vxor.u32 %v2003, 2147483648
    %v2220 = vmul.f32 %v2218, 1.442695
    %v2221 = vpow.pop %v2220
    %v2222 = vmul.f32 %v2219, 1.442695
    %v2223 = vpow.pop %v2222
    %v2224 = vadd.f32 %v2221, 1.0
    %v2225 = vadd.f32 %v2223, 1.0
    %v2226 = vrcp.pop %v2224
    %v2227 = vmul.f32 1.0, %v2226
    %v2228 = vrcp.pop %v2225
    %v2229 = vmul.f32 1.0, %v2228
    %v2230 = vxor.u32 %v2072, 2147483648
    %v2231 = vxor.u32 %v2074, 2147483648
    %v2232 = vmul.f32 %v2230, 1.442695
    %v2233 = vpow.pop %v2232
    %v2234 = vmul.f32 %v2231, 1.442695
    %v2235 = vpow.pop %v2234
    %v2236 = vadd.f32 %v2233, 1.0
    %v2237 = vadd.f32 %v2235, 1.0
    %v2238 = vrcp.pop %v2236
    %v2239 = vmul.f32 1.0, %v2238
    %v2240 = vrcp.pop %v2237
    %v2241 = vmul.f32 1.0, %v2240
    %v2242 = vtanh.pop %v2143
    %v2243 = vtanh.pop %v2145
    %v2244 = vxor.u32 %v2214, 2147483648
    %v2245 = vxor.u32 %v2216, 2147483648
    %v2246 = vmul.f32 %v2244, 1.442695
    %v2247 = vpow.pop %v2246
    %v2248 = vmul.f32 %v2245, 1.442695
    %v2249 = vpow.pop %v2248
    %v2250 = vadd.f32 %v2247, 1.0
    %v2251 = vadd.f32 %v2249, 1.0
    %v2252 = vrcp.pop %v2250
    %v2253 = vmul.f32 1.0, %v2252
    %v2254 = vrcp.pop %v2251
    %v2255 = vmul.f32 1.0, %v2254
    %v2256 = vmul.f32 %v2239, %v1918
    %v2257 = vmul.f32 %v2241, %v1919
    %v2258 = vmul.f32 %v2227, %v2242
    %v2259 = vmul.f32 %v2229, %v2243
    %v2260 = vadd.f32 %v2256, %v2258
    %v2261 = vadd.f32 %v2257, %v2259
    %v2262 = vtanh.pop %v2260
    %v2263 = vtanh.pop %v2261
    %v2264 = vmul.f32 %v2253, %v2262
    %v2265 = vmul.f32 %v2255, %v2263
    %2266 = vst [vmem:[#allocation3 + $0x10] sm:$0xff] %v2264
    %2267 = vst [vmem:[#allocation3 + $0x68] sm:$0xff] %v2265
    %v2268 = vld [vmem:[#allocation2 + $0x80] sm:$0xff]
    %v2269 = vld [vmem:[#allocation2 + $0x88] sm:$0xff]
    %v2270 = vld [vmem:[#allocation2 + $0x90] sm:$0xff]
    %v2271 = vld [vmem:[#allocation2 + $0x98] sm:$0xff]
    %v2272 = vld [vmem:[#allocation2 + $0xa0] sm:$0xff]
    %v2273 = vld [vmem:[#allocation2 + $0xa8] sm:$0xff]
    %v2274 = vld [vmem:[#allocation2 + $0xb0] sm:$0xff]
    %v2275 = vld [vmem:[#allocation2 + $0xb8] sm:$0xff]
    %2276 = vmatprep.subr.mxu0 %v1325
    %2277 = vmatpush1.msra.mxu0 %v1324
    %2278 = vmatprep.subr.mxu0 %v1333
    %2279 = vmatpush1.msra.mxu0 %v1332
    %2280 = vmatprep.subr.mxu0 %v1341
    %2281 = vmatpush1.msra.mxu0 %v1340
    %2282 = vmatprep.subr.mxu0 %v1349
    %2283 = vmatpush1.msra.mxu0 %v1348
    %2284 = vmatprep.subr.mxu0 %v1357
    %2285 = vmatpush1.msra.mxu0 %v1356
    %2286 = vmatprep.subr.mxu0 %v1365
    %2287 = vmatpush1.msra.mxu0 %v1364
    %2288 = vmatprep.subr.mxu0 %v1373
    %2289 = vmatpush1.msra.mxu0 %v1372
    %2290 = vmatprep.subr.mxu0 %v1381
    %2291 = vmatpush1.msra.mxu0 %v1380
    %2292 = vmatprep.subr.mxu0 %v1389
    %2293 = vmatpush1.msra.mxu0 %v1388
    %2294 = vmatprep.subr.mxu0 %v1397
    %2295 = vmatpush1.msra.mxu0 %v1396
    %2296 = vmatprep.subr.mxu0 %v1405
    %2297 = vmatpush1.msra.mxu0 %v1404
    %2298 = vmatprep.subr.mxu0 %v1413
    %2299 = vmatpush1.msra.mxu0 %v1412
    %2300 = vmatprep.subr.mxu0 %v1421
    %2301 = vmatpush1.msra.mxu0 %v1420
    %2302 = vmatprep.subr.mxu0 %v1429
    %2303 = vmatpush1.msra.mxu0 %v1428
    %2304 = vmatprep.subr.mxu0 %v1437
    %2305 = vmatpush1.msra.mxu0 %v1436
    %2306 = vmatprep.subr.mxu0 %v1445
    %2307 = vmatpush1.msra.mxu0 %v1444
    %2308 = vmatprep.subr.mxu0 %v1453
    %2309 = vmatpush1.msra.mxu0 %v1452
    %2310 = vmatprep.subr.mxu0 %v1461
    %2311 = vmatpush1.msra.mxu0 %v1460
    %2312 = vmatprep.subr.mxu0 %v1469
    %2313 = vmatpush1.msra.mxu0 %v1468
    %2314 = vmatprep.subr.mxu0 %v1477
    %2315 = vmatpush1.msra.mxu0 %v1476
    %2316 = vmatprep.subr.mxu0 %v1485
    %2317 = vmatpush1.msra.mxu0 %v1484
    %2318 = vmatprep.subr.mxu0 %v1493
    %2319 = vmatpush1.msra.mxu0 %v1492
    %2320 = vmatprep.subr.mxu0 %v1501
    %2321 = vmatpush1.msra.mxu0 %v1500
    %2322 = vmatprep.subr.mxu0 %v1509
    %2323 = vmatpush1.msra.mxu0 %v1508
    %2324 = vmatprep.subr.mxu0 %v1517
    %2325 = vmatpush1.msra.mxu0 %v1516
    %2326 = vmatprep.subr.mxu0 %v1525
    %2327 = vmatpush1.msra.mxu0 %v1524
    %2328 = vmatprep.subr.mxu0 %v1533
    %2329 = vmatpush1.msra.mxu0 %v1532
    %2330 = vmatprep.subr.mxu0 %v1541
    %2331 = vmatpush1.msra.mxu0 %v1540
    %2332 = vmatprep.subr.mxu0 %v1549
    %2333 = vmatpush1.msra.mxu0 %v1548
    %2334 = vmatprep.subr.mxu0 %v1557
    %2335 = vmatpush1.msra.mxu0 %v1556
    %2336 = vmatprep.subr.mxu0 %v1565
    %2337 = vmatpush1.msra.mxu0 %v1564
    %2338 = vmatprep.subr.mxu0 %v1573
    %2339 = vmatpush1.msra.mxu0 %v1572
    %2340 = vmatprep.mubr.f32.mxu0 %v2265
    %2341 = vmatmul.mubr.f32.gmra.mrb[0].mxu0 %v2264
    %v2342 = vpop.f32.mrb[0].mxu0
    %v2343 = vadd.f32 %v2268, %v2342
    %v2344 = vpop.f32.mrb[0].mxu0
    %v2345 = vadd.f32 %v2269, %v2344
    %2346 = vdwg.mxu0
    %2347 = vmatprep.subr.mxu0 %v1327
    %2348 = vmatpush1.msra.mxu0 %v1326
    %2349 = vmatprep.subr.mxu0 %v1335
    %2350 = vmatpush1.msra.mxu0 %v1334
    %2351 = vmatprep.subr.mxu0 %v1343
    %2352 = vmatpush1.msra.mxu0 %v1342
    %2353 = vmatprep.subr.mxu0 %v1351
    %2354 = vmatpush1.msra.mxu0 %v1350
    %2355 = vmatprep.subr.mxu0 %v1359
    %2356 = vmatpush1.msra.mxu0 %v1358
    %2357 = vmatprep.subr.mxu0 %v1367
    %2358 = vmatpush1.msra.mxu0 %v1366
    %2359 = vmatprep.subr.mxu0 %v1375
    %2360 = vmatpush1.msra.mxu0 %v1374
    %2361 = vmatprep.subr.mxu0 %v1383
    %2362 = vmatpush1.msra.mxu0 %v1382
    %2363 = vmatprep.subr.mxu0 %v1391
    %2364 = vmatpush1.msra.mxu0 %v1390
    %2365 = vmatprep.subr.mxu0 %v1399
    %2366 = vmatpush1.msra.mxu0 %v1398
    %2367 = vmatprep.subr.mxu0 %v1407
    %2368 = vmatpush1.msra.mxu0 %v1406
    %2369 = vmatprep.subr.mxu0 %v1415
    %2370 = vmatpush1.msra.mxu0 %v1414
    %2371 = vmatprep.subr.mxu0 %v1423
    %2372 = vmatpush1.msra.mxu0 %v1422
    %2373 = vmatprep.subr.mxu0 %v1431
    %2374 = vmatpush1.msra.mxu0 %v1430
    %2375 = vmatprep.subr.mxu0 %v1439
    %2376 = vmatpush1.msra.mxu0 %v1438
    %2377 = vmatprep.subr.mxu0 %v1447
    %2378 = vmatpush1.msra.mxu0 %v1446
    %2379 = vmatprep.subr.mxu0 %v1455
    %2380 = vmatpush1.msra.mxu0 %v1454
    %2381 = vmatprep.subr.mxu0 %v1463
    %2382 = vmatpush1.msra.mxu0 %v1462
    %2383 = vmatprep.subr.mxu0 %v1471
    %2384 = vmatpush1.msra.mxu0 %v1470
    %2385 = vmatprep.subr.mxu0 %v1479
    %2386 = vmatpush1.msra.mxu0 %v1478
    %2387 = vmatprep.subr.mxu0 %v1487
    %2388 = vmatpush1.msra.mxu0 %v1486
    %2389 = vmatprep.subr.mxu0 %v1495
    %2390 = vmatpush1.msra.mxu0 %v1494
    %2391 = vmatprep.subr.mxu0 %v1503
    %2392 = vmatpush1.msra.mxu0 %v1502
    %2393 = vmatprep.subr.mxu0 %v1511
    %2394 = vmatpush1.msra.mxu0 %v1510
    %2395 = vmatprep.subr.mxu0 %v1519
    %2396 = vmatpush1.msra.mxu0 %v1518
    %2397 = vmatprep.subr.mxu0 %v1527
    %2398 = vmatpush1.msra.mxu0 %v1526
    %2399 = vmatprep.subr.mxu0 %v1535
    %2400 = vmatpush1.msra.mxu0 %v1534
    %2401 = vmatprep.subr.mxu0 %v1543
    %2402 = vmatpush1.msra.mxu0 %v1542
    %2403 = vmatprep.subr.mxu0 %v1551
    %2404 = vmatpush1.msra.mxu0 %v1550
    %2405 = vmatprep.subr.mxu0 %v1559
    %2406 = vmatpush1.msra.mxu0 %v1558
    %2407 = vmatprep.subr.mxu0 %v1567
    %2408 = vmatpush1.msra.mxu0 %v1566
    %2409 = vmatprep.subr.mxu0 %v1575
    %2410 = vmatpush1.msra.mxu0 %v1574
    %2411 = vmatprep.mubr.f32.mxu0 %v2265
    %2412 = vmatmul.mubr.f32.gmra.mrb[0].mxu0 %v2264
    %v2413 = vpop.f32.mrb[0].mxu0
    %v2414 = vadd.f32 %v2270, %v2413
    %v2415 = vpop.f32.mrb[0].mxu0
    %v2416 = vadd.f32 %v2271, %v2415
    %2417 = vdwg.mxu0
    %2418 = vmatprep.subr.mxu0 %v1329
    %2419 = vmatpush1.msra.mxu0 %v1328
    %2420 = vmatprep.subr.mxu0 %v1337
    %2421 = vmatpush1.msra.mxu0 %v1336
    %2422 = vmatprep.subr.mxu0 %v1345
    %2423 = vmatpush1.msra.mxu0 %v1344
    %2424 = vmatprep.subr.mxu0 %v1353
    %2425 = vmatpush1.msra.mxu0 %v1352
    %2426 = vmatprep.subr.mxu0 %v1361
    %2427 = vmatpush1.msra.mxu0 %v1360
    %2428 = vmatprep.subr.mxu0 %v1369
    %2429 = vmatpush1.msra.mxu0 %v1368
    %2430 = vmatprep.subr.mxu0 %v1377
    %2431 = vmatpush1.msra.mxu0 %v1376
    %2432 = vmatprep.subr.mxu0 %v1385
    %2433 = vmatpush1.msra.mxu0 %v1384
    %2434 = vmatprep.subr.mxu0 %v1393
    %2435 = vmatpush1.msra.mxu0 %v1392
    %2436 = vmatprep.subr.mxu0 %v1401
    %2437 = vmatpush1.msra.mxu0 %v1400
    %2438 = vmatprep.subr.mxu0 %v1409
    %2439 = vmatpush1.msra.mxu0 %v1408
    %2440 = vmatprep.subr.mxu0 %v1417
    %2441 = vmatpush1.msra.mxu0 %v1416
    %2442 = vmatprep.subr.mxu0 %v1425
    %2443 = vmatpush1.msra.mxu0 %v1424
    %2444 = vmatprep.subr.mxu0 %v1433
    %2445 = vmatpush1.msra.mxu0 %v1432
    %2446 = vmatprep.subr.mxu0 %v1441
    %2447 = vmatpush1.msra.mxu0 %v1440
    %2448 = vmatprep.subr.mxu0 %v1449
    %2449 = vmatpush1.msra.mxu0 %v1448
    %2450 = vmatprep.subr.mxu0 %v1457
    %2451 = vmatpush1.msra.mxu0 %v1456
    %2452 = vmatprep.subr.mxu0 %v1465
    %2453 = vmatpush1.msra.mxu0 %v1464
    %2454 = vmatprep.subr.mxu0 %v1473
    %2455 = vmatpush1.msra.mxu0 %v1472
    %2456 = vmatprep.subr.mxu0 %v1481
    %2457 = vmatpush1.msra.mxu0 %v1480
    %2458 = vmatprep.subr.mxu0 %v1489
    %2459 = vmatpush1.msra.mxu0 %v1488
    %2460 = vmatprep.subr.mxu0 %v1497
    %2461 = vmatpush1.msra.mxu0 %v1496
    %2462 = vmatprep.subr.mxu0 %v1505
    %2463 = vmatpush1.msra.mxu0 %v1504
    %2464 = vmatprep.subr.mxu0 %v1513
    %2465 = vmatpush1.msra.mxu0 %v1512
    %2466 = vmatprep.subr.mxu0 %v1521
    %2467 = vmatpush1.msra.mxu0 %v1520
    %2468 = vmatprep.subr.mxu0 %v1529
    %2469 = vmatpush1.msra.mxu0 %v1528
    %2470 = vmatprep.subr.mxu0 %v1537
    %2471 = vmatpush1.msra.mxu0 %v1536
    %2472 = vmatprep.subr.mxu0 %v1545
    %2473 = vmatpush1.msra.mxu0 %v1544
    %2474 = vmatprep.subr.mxu0 %v1553
    %2475 = vmatpush1.msra.mxu0 %v1552
    %2476 = vmatprep.subr.mxu0 %v1561
    %2477 = vmatpush1.msra.mxu0 %v1560
    %2478 = vmatprep.subr.mxu0 %v1569
    %2479 = vmatpush1.msra.mxu0 %v1568
    %2480 = vmatprep.subr.mxu0 %v1577
    %2481 = vmatpush1.msra.mxu0 %v1576
    %2482 = vmatprep.mubr.f32.mxu0 %v2265
    %2483 = vmatmul.mubr.f32.gmra.mrb[0].mxu0 %v2264
    %v2484 = vpop.f32.mrb[0].mxu0
    %v2485 = vadd.f32 %v2272, %v2484
    %v2486 = vpop.f32.mrb[0].mxu0
    %v2487 = vadd.f32 %v2273, %v2486
    %2488 = vdwg.mxu0
    %2489 = vmatprep.subr.mxu0 %v1331
    %2490 = vmatpush1.msra.mxu0 %v1330
    %2491 = vmatprep.subr.mxu0 %v1339
    %2492 = vmatpush1.msra.mxu0 %v1338
    %2493 = vmatprep.subr.mxu0 %v1347
    %2494 = vmatpush1.msra.mxu0 %v1346
    %2495 = vmatprep.subr.mxu0 %v1355
    %2496 = vmatpush1.msra.mxu0 %v1354
    %2497 = vmatprep.subr.mxu0 %v1363
    %2498 = vmatpush1.msra.mxu0 %v1362
    %2499 = vmatprep.subr.mxu0 %v1371
    %2500 = vmatpush1.msra.mxu0 %v1370
    %2501 = vmatprep.subr.mxu0 %v1379
    %2502 = vmatpush1.msra.mxu0 %v1378
    %2503 = vmatprep.subr.mxu0 %v1387
    %2504 = vmatpush1.msra.mxu0 %v1386
    %2505 = vmatprep.subr.mxu0 %v1395
    %2506 = vmatpush1.msra.mxu0 %v1394
    %2507 = vmatprep.subr.mxu0 %v1403
    %2508 = vmatpush1.msra.mxu0 %v1402
    %2509 = vmatprep.subr.mxu0 %v1411
    %2510 = vmatpush1.msra.mxu0 %v1410
    %2511 = vmatprep.subr.mxu0 %v1419
    %2512 = vmatpush1.msra.mxu0 %v1418
    %2513 = vmatprep.subr.mxu0 %v1427
    %2514 = vmatpush1.msra.mxu0 %v1426
    %2515 = vmatprep.subr.mxu0 %v1435
    %2516 = vmatpush1.msra.mxu0 %v1434
    %2517 = vmatprep.subr.mxu0 %v1443
    %2518 = vmatpush1.msra.mxu0 %v1442
    %2519 = vmatprep.subr.mxu0 %v1451
    %2520 = vmatpush1.msra.mxu0 %v1450
    %2521 = vmatprep.subr.mxu0 %v1459
    %2522 = vmatpush1.msra.mxu0 %v1458
    %2523 = vmatprep.subr.mxu0 %v1467
    %2524 = vmatpush1.msra.mxu0 %v1466
    %2525 = vmatprep.subr.mxu0 %v1475
    %2526 = vmatpush1.msra.mxu0 %v1474
    %2527 = vmatprep.subr.mxu0 %v1483
    %2528 = vmatpush1.msra.mxu0 %v1482
    %2529 = vmatprep.subr.mxu0 %v1491
    %2530 = vmatpush1.msra.mxu0 %v1490
    %2531 = vmatprep.subr.mxu0 %v1499
    %2532 = vmatpush1.msra.mxu0 %v1498
    %2533 = vmatprep.subr.mxu0 %v1507
    %2534 = vmatpush1.msra.mxu0 %v1506
    %2535 = vmatprep.subr.mxu0 %v1515
    %2536 = vmatpush1.msra.mxu0 %v1514
    %2537 = vmatprep.subr.mxu0 %v1523
    %2538 = vmatpush1.msra.mxu0 %v1522
    %2539 = vmatprep.subr.mxu0 %v1531
    %2540 = vmatpush1.msra.mxu0 %v1530
    %2541 = vmatprep.subr.mxu0 %v1539
    %2542 = vmatpush1.msra.mxu0 %v1538
    %2543 = vmatprep.subr.mxu0 %v1547
    %2544 = vmatpush1.msra.mxu0 %v1546
    %2545 = vmatprep.subr.mxu0 %v1555
    %2546 = vmatpush1.msra.mxu0 %v1554
    %2547 = vmatprep.subr.mxu0 %v1563
    %2548 = vmatpush1.msra.mxu0 %v1562
    %2549 = vmatprep.subr.mxu0 %v1571
    %2550 = vmatpush1.msra.mxu0 %v1570
    %2551 = vmatprep.subr.mxu0 %v1579
    %2552 = vmatpush1.msra.mxu0 %v1578
    %2553 = vmatprep.mubr.f32.mxu0 %v2265
    %2554 = vmatmul.mubr.f32.gmra.mrb[0].mxu0 %v2264
    %v2555 = vpop.f32.mrb[0].mxu0
    %v2556 = vadd.f32 %v2274, %v2555
    %v2557 = vpop.f32.mrb[0].mxu0
    %v2558 = vadd.f32 %v2275, %v2557
    %2559 = vdwg.mxu0
    %v2560 = vxor.u32 %v2343, 2147483648
    %v2561 = vxor.u32 %v2345, 2147483648
    %v2562 = vmul.f32 %v2560, 1.442695
    %v2563 = vpow.pop %v2562
    %v2564 = vmul.f32 %v2561, 1.442695
    %v2565 = vpow.pop %v2564
    %v2566 = vadd.f32 %v2563, 1.0
    %v2567 = vadd.f32 %v2565, 1.0
    %v2568 = vrcp.pop %v2566
    %v2569 = vmul.f32 1.0, %v2568
    %v2570 = vrcp.pop %v2567
    %v2571 = vmul.f32 1.0, %v2570
    %v2572 = vxor.u32 %v2414, 2147483648
    %v2573 = vxor.u32 %v2416, 2147483648
    %v2574 = vmul.f32 %v2572, 1.442695
    %v2575 = vpow.pop %v2574
    %v2576 = vmul.f32 %v2573, 1.442695
    %v2577 = vpow.pop %v2576
    %v2578 = vadd.f32 %v2575, 1.0
    %v2579 = vadd.f32 %v2577, 1.0
    %v2580 = vrcp.pop %v2578
    %v2581 = vmul.f32 1.0, %v2580
    %v2582 = vrcp.pop %v2579
    %v2583 = vmul.f32 1.0, %v2582
    %v2584 = vtanh.pop %v2485
    %v2585 = vtanh.pop %v2487
    %v2586 = vxor.u32 %v2556, 2147483648
    %v2587 = vxor.u32 %v2558, 2147483648
    %v2588 = vmul.f32 %v2586, 1.442695
    %v2589 = vpow.pop %v2588
    %v2590 = vmul.f32 %v2587, 1.442695
    %v2591 = vpow.pop %v2590
    %v2592 = vadd.f32 %v2589, 1.0
    %v2593 = vadd.f32 %v2591, 1.0
    %v2594 = vrcp.pop %v2592
    %v2595 = vmul.f32 1.0, %v2594
    %v2596 = vrcp.pop %v2593
    %v2597 = vmul.f32 1.0, %v2596
    %v2598 = vmul.f32 %v2581, %v2260
    %v2599 = vmul.f32 %v2583, %v2261
    %v2600 = vmul.f32 %v2569, %v2584
    %v2601 = vmul.f32 %v2571, %v2585
    %v2602 = vadd.f32 %v2598, %v2600
    %v2603 = vadd.f32 %v2599, %v2601
    %v2604 = vtanh.pop %v2602
    %v2605 = vtanh.pop %v2603
    %v2606 = vmul.f32 %v2595, %v2604
    %v2607 = vmul.f32 %v2597, %v2605
    %2608 = vst [vmem:[#allocation3 + $0x20] sm:$0xff] %v2606
    %2609 = vst [vmem:[#allocation3 + $0x58] sm:$0xff] %v2607
    %v2610 = vld [vmem:[#allocation2 + $0xc0] sm:$0xff]
    %v2611 = vld [vmem:[#allocation2 + $0xc8] sm:$0xff]
    %v2612 = vld [vmem:[#allocation2 + $0xd0] sm:$0xff]
    %v2613 = vld [vmem:[#allocation2 + $0xd8] sm:$0xff]
    %v2614 = vld [vmem:[#allocation2 + $0xe0] sm:$0xff]
    %v2615 = vld [vmem:[#allocation2 + $0xe8] sm:$0xff]
    %v2616 = vld [vmem:[#allocation2 + $0xf0] sm:$0xff]
    %v2617 = vld [vmem:[#allocation2 + $0xf8] sm:$0xff]
    %2618 = vmatprep.subr.mxu0 %v1325
    %2619 = vmatpush1.msra.mxu0 %v1324
    %2620 = vmatprep.subr.mxu0 %v1333
    %2621 = vmatpush1.msra.mxu0 %v1332
    %2622 = vmatprep.subr.mxu0 %v1341
    %2623 = vmatpush1.msra.mxu0 %v1340
    %2624 = vmatprep.subr.mxu0 %v1349
    %2625 = vmatpush1.msra.mxu0 %v1348
    %2626 = vmatprep.subr.mxu0 %v1357
    %2627 = vmatpush1.msra.mxu0 %v1356
    %2628 = vmatprep.subr.mxu0 %v1365
    %2629 = vmatpush1.msra.mxu0 %v1364
    %2630 = vmatprep.subr.mxu0 %v1373
    %2631 = vmatpush1.msra.mxu0 %v1372
    %2632 = vmatprep.subr.mxu0 %v1381
    %2633 = vmatpush1.msra.mxu0 %v1380
    %2634 = vmatprep.subr.mxu0 %v1389
    %2635 = vmatpush1.msra.mxu0 %v1388
    %2636 = vmatprep.subr.mxu0 %v1397
    %2637 = vmatpush1.msra.mxu0 %v1396
    %2638 = vmatprep.subr.mxu0 %v1405
    %2639 = vmatpush1.msra.mxu0 %v1404
    %2640 = vmatprep.subr.mxu0 %v1413
    %2641 = vmatpush1.msra.mxu0 %v1412
    %2642 = vmatprep.subr.mxu0 %v1421
    %2643 = vmatpush1.msra.mxu0 %v1420
    %2644 = vmatprep.subr.mxu0 %v1429
    %2645 = vmatpush1.msra.mxu0 %v1428
    %2646 = vmatprep.subr.mxu0 %v1437
    %2647 = vmatpush1.msra.mxu0 %v1436
    %2648 = vmatprep.subr.mxu0 %v1445
    %2649 = vmatpush1.msra.mxu0 %v1444
    %2650 = vmatprep.subr.mxu0 %v1453
    %2651 = vmatpush1.msra.mxu0 %v1452
    %2652 = vmatprep.subr.mxu0 %v1461
    %2653 = vmatpush1.msra.mxu0 %v1460
    %2654 = vmatprep.subr.mxu0 %v1469
    %2655 = vmatpush1.msra.mxu0 %v1468
    %2656 = vmatprep.subr.mxu0 %v1477
    %2657 = vmatpush1.msra.mxu0 %v1476
    %2658 = vmatprep.subr.mxu0 %v1485
    %2659 = vmatpush1.msra.mxu0 %v1484
    %2660 = vmatprep.subr.mxu0 %v1493
    %2661 = vmatpush1.msra.mxu0 %v1492
    %2662 = vmatprep.subr.mxu0 %v1501
    %2663 = vmatpush1.msra.mxu0 %v1500
    %2664 = vmatprep.subr.mxu0 %v1509
    %2665 = vmatpush1.msra.mxu0 %v1508
    %2666 = vmatprep.subr.mxu0 %v1517
    %2667 = vmatpush1.msra.mxu0 %v1516
    %2668 = vmatprep.subr.mxu0 %v1525
    %2669 = vmatpush1.msra.mxu0 %v1524
    %2670 = vmatprep.subr.mxu0 %v1533
    %2671 = vmatpush1.msra.mxu0 %v1532
    %2672 = vmatprep.subr.mxu0 %v1541
    %2673 = vmatpush1.msra.mxu0 %v1540
    %2674 = vmatprep.subr.mxu0 %v1549
    %2675 = vmatpush1.msra.mxu0 %v1548
    %2676 = vmatprep.subr.mxu0 %v1557
    %2677 = vmatpush1.msra.mxu0 %v1556
    %2678 = vmatprep.subr.mxu0 %v1565
    %2679 = vmatpush1.msra.mxu0 %v1564
    %2680 = vmatprep.subr.mxu0 %v1573
    %2681 = vmatpush1.msra.mxu0 %v1572
    %2682 = vmatprep.mubr.f32.mxu0 %v2607
    %2683 = vmatmul.mubr.f32.gmra.mrb[0].mxu0 %v2606
    %v2684 = vpop.f32.mrb[0].mxu0
    %v2685 = vadd.f32 %v2610, %v2684
    %v2686 = vpop.f32.mrb[0].mxu0
    %v2687 = vadd.f32 %v2611, %v2686
    %2688 = vdwg.mxu0
    %2689 = vmatprep.subr.mxu0 %v1327
    %2690 = vmatpush1.msra.mxu0 %v1326
    %2691 = vmatprep.subr.mxu0 %v1335
    %2692 = vmatpush1.msra.mxu0 %v1334
    %2693 = vmatprep.subr.mxu0 %v1343
    %2694 = vmatpush1.msra.mxu0 %v1342
    %2695 = vmatprep.subr.mxu0 %v1351
    %2696 = vmatpush1.msra.mxu0 %v1350
    %2697 = vmatprep.subr.mxu0 %v1359
    %2698 = vmatpush1.msra.mxu0 %v1358
    %2699 = vmatprep.subr.mxu0 %v1367
    %2700 = vmatpush1.msra.mxu0 %v1366
    %2701 = vmatprep.subr.mxu0 %v1375
    %2702 = vmatpush1.msra.mxu0 %v1374
    %2703 = vmatprep.subr.mxu0 %v1383
    %2704 = vmatpush1.msra.mxu0 %v1382
    %2705 = vmatprep.subr.mxu0 %v1391
    %2706 = vmatpush1.msra.mxu0 %v1390
    %2707 = vmatprep.subr.mxu0 %v1399
    %2708 = vmatpush1.msra.mxu0 %v1398
    %2709 = vmatprep.subr.mxu0 %v1407
    %2710 = vmatpush1.msra.mxu0 %v1406
    %2711 = vmatprep.subr.mxu0 %v1415
    %2712 = vmatpush1.msra.mxu0 %v1414
    %2713 = vmatprep.subr.mxu0 %v1423
    %2714 = vmatpush1.msra.mxu0 %v1422
    %2715 = vmatprep.subr.mxu0 %v1431
    %2716 = vmatpush1.msra.mxu0 %v1430
    %2717 = vmatprep.subr.mxu0 %v1439
    %2718 = vmatpush1.msra.mxu0 %v1438
    %2719 = vmatprep.subr.mxu0 %v1447
    %2720 = vmatpush1.msra.mxu0 %v1446
    %2721 = vmatprep.subr.mxu0 %v1455
    %2722 = vmatpush1.msra.mxu0 %v1454
    %2723 = vmatprep.subr.mxu0 %v1463
    %2724 = vmatpush1.msra.mxu0 %v1462
    %2725 = vmatprep.subr.mxu0 %v1471
    %2726 = vmatpush1.msra.mxu0 %v1470
    %2727 = vmatprep.subr.mxu0 %v1479
    %2728 = vmatpush1.msra.mxu0 %v1478
    %2729 = vmatprep.subr.mxu0 %v1487
    %2730 = vmatpush1.msra.mxu0 %v1486
    %2731 = vmatprep.subr.mxu0 %v1495
    %2732 = vmatpush1.msra.mxu0 %v1494
    %2733 = vmatprep.subr.mxu0 %v1503
    %2734 = vmatpush1.msra.mxu0 %v1502
    %2735 = vmatprep.subr.mxu0 %v1511
    %2736 = vmatpush1.msra.mxu0 %v1510
    %2737 = vmatprep.subr.mxu0 %v1519
    %2738 = vmatpush1.msra.mxu0 %v1518
    %2739 = vmatprep.subr.mxu0 %v1527
    %2740 = vmatpush1.msra.mxu0 %v1526
    %2741 = vmatprep.subr.mxu0 %v1535
    %2742 = vmatpush1.msra.mxu0 %v1534
    %2743 = vmatprep.subr.mxu0 %v1543
    %2744 = vmatpush1.msra.mxu0 %v1542
    %2745 = vmatprep.subr.mxu0 %v1551
    %2746 = vmatpush1.msra.mxu0 %v1550
    %2747 = vmatprep.subr.mxu0 %v1559
    %2748 = vmatpush1.msra.mxu0 %v1558
    %2749 = vmatprep.subr.mxu0 %v1567
    %2750 = vmatpush1.msra.mxu0 %v1566
    %2751 = vmatprep.subr.mxu0 %v1575
    %2752 = vmatpush1.msra.mxu0 %v1574
    %2753 = vmatprep.mubr.f32.mxu0 %v2607
    %2754 = vmatmul.mubr.f32.gmra.mrb[0].mxu0 %v2606
    %v2755 = vpop.f32.mrb[0].mxu0
    %v2756 = vadd.f32 %v2612, %v2755
    %v2757 = vpop.f32.mrb[0].mxu0
    %v2758 = vadd.f32 %v2613, %v2757
    %2759 = vdwg.mxu0
    %2760 = vmatprep.subr.mxu0 %v1329
    %2761 = vmatpush1.msra.mxu0 %v1328
    %2762 = vmatprep.subr.mxu0 %v1337
    %2763 = vmatpush1.msra.mxu0 %v1336
    %2764 = vmatprep.subr.mxu0 %v1345
    %2765 = vmatpush1.msra.mxu0 %v1344
    %2766 = vmatprep.subr.mxu0 %v1353
    %2767 = vmatpush1.msra.mxu0 %v1352
    %2768 = vmatprep.subr.mxu0 %v1361
    %2769 = vmatpush1.msra.mxu0 %v1360
    %2770 = vmatprep.subr.mxu0 %v1369
    %2771 = vmatpush1.msra.mxu0 %v1368
    %2772 = vmatprep.subr.mxu0 %v1377
    %2773 = vmatpush1.msra.mxu0 %v1376
    %2774 = vmatprep.subr.mxu0 %v1385
    %2775 = vmatpush1.msra.mxu0 %v1384
    %2776 = vmatprep.subr.mxu0 %v1393
    %2777 = vmatpush1.msra.mxu0 %v1392
    %2778 = vmatprep.subr.mxu0 %v1401
    %2779 = vmatpush1.msra.mxu0 %v1400
    %2780 = vmatprep.subr.mxu0 %v1409
    %2781 = vmatpush1.msra.mxu0 %v1408
    %2782 = vmatprep.subr.mxu0 %v1417
    %2783 = vmatpush1.msra.mxu0 %v1416
    %2784 = vmatprep.subr.mxu0 %v1425
    %2785 = vmatpush1.msra.mxu0 %v1424
    %2786 = vmatprep.subr.mxu0 %v1433
    %2787 = vmatpush1.msra.mxu0 %v1432
    %2788 = vmatprep.subr.mxu0 %v1441
    %2789 = vmatpush1.msra.mxu0 %v1440
    %2790 = vmatprep.subr.mxu0 %v1449
    %2791 = vmatpush1.msra.mxu0 %v1448
    %2792 = vmatprep.subr.mxu0 %v1457
    %2793 = vmatpush1.msra.mxu0 %v1456
    %2794 = vmatprep.subr.mxu0 %v1465
    %2795 = vmatpush1.msra.mxu0 %v1464
    %2796 = vmatprep.subr.mxu0 %v1473
    %2797 = vmatpush1.msra.mxu0 %v1472
    %2798 = vmatprep.subr.mxu0 %v1481
    %2799 = vmatpush1.msra.mxu0 %v1480
    %2800 = vmatprep.subr.mxu0 %v1489
    %2801 = vmatpush1.msra.mxu0 %v1488
    %2802 = vmatprep.subr.mxu0 %v1497
    %2803 = vmatpush1.msra.mxu0 %v1496
    %2804 = vmatprep.subr.mxu0 %v1505
    %2805 = vmatpush1.msra.mxu0 %v1504
    %2806 = vmatprep.subr.mxu0 %v1513
    %2807 = vmatpush1.msra.mxu0 %v1512
    %2808 = vmatprep.subr.mxu0 %v1521
    %2809 = vmatpush1.msra.mxu0 %v1520
    %2810 = vmatprep.subr.mxu0 %v1529
    %2811 = vmatpush1.msra.mxu0 %v1528
    %2812 = vmatprep.subr.mxu0 %v1537
    %2813 = vmatpush1.msra.mxu0 %v1536
    %2814 = vmatprep.subr.mxu0 %v1545
    %2815 = vmatpush1.msra.mxu0 %v1544
    %2816 = vmatprep.subr.mxu0 %v1553
    %2817 = vmatpush1.msra.mxu0 %v1552
    %2818 = vmatprep.subr.mxu0 %v1561
    %2819 = vmatpush1.msra.mxu0 %v1560
    %2820 = vmatprep.subr.mxu0 %v1569
    %2821 = vmatpush1.msra.mxu0 %v1568
    %2822 = vmatprep.subr.mxu0 %v1577
    %2823 = vmatpush1.msra.mxu0 %v1576
    %2824 = vmatprep.mubr.f32.mxu0 %v2607
    %2825 = vmatmul.mubr.f32.gmra.mrb[0].mxu0 %v2606
    %v2826 = vpop.f32.mrb[0].mxu0
    %v2827 = vadd.f32 %v2614, %v2826
    %v2828 = vpop.f32.mrb[0].mxu0
    %v2829 = vadd.f32 %v2615, %v2828
    %2830 = vdwg.mxu0
    %2831 = vmatprep.subr.mxu0 %v1331
    %2832 = vmatpush1.msra.mxu0 %v1330
    %2833 = vmatprep.subr.mxu0 %v1339
    %2834 = vmatpush1.msra.mxu0 %v1338
    %2835 = vmatprep.subr.mxu0 %v1347
    %2836 = vmatpush1.msra.mxu0 %v1346
    %2837 = vmatprep.subr.mxu0 %v1355
    %2838 = vmatpush1.msra.mxu0 %v1354
    %2839 = vmatprep.subr.mxu0 %v1363
    %2840 = vmatpush1.msra.mxu0 %v1362
    %2841 = vmatprep.subr.mxu0 %v1371
    %2842 = vmatpush1.msra.mxu0 %v1370
    %2843 = vmatprep.subr.mxu0 %v1379
    %2844 = vmatpush1.msra.mxu0 %v1378
    %2845 = vmatprep.subr.mxu0 %v1387
    %2846 = vmatpush1.msra.mxu0 %v1386
    %2847 = vmatprep.subr.mxu0 %v1395
    %2848 = vmatpush1.msra.mxu0 %v1394
    %2849 = vmatprep.subr.mxu0 %v1403
    %2850 = vmatpush1.msra.mxu0 %v1402
    %2851 = vmatprep.subr.mxu0 %v1411
    %2852 = vmatpush1.msra.mxu0 %v1410
    %2853 = vmatprep.subr.mxu0 %v1419
    %2854 = vmatpush1.msra.mxu0 %v1418
    %2855 = vmatprep.subr.mxu0 %v1427
    %2856 = vmatpush1.msra.mxu0 %v1426
    %2857 = vmatprep.subr.mxu0 %v1435
    %2858 = vmatpush1.msra.mxu0 %v1434
    %2859 = vmatprep.subr.mxu0 %v1443
    %2860 = vmatpush1.msra.mxu0 %v1442
    %2861 = vmatprep.subr.mxu0 %v1451
    %2862 = vmatpush1.msra.mxu0 %v1450
    %2863 = vmatprep.subr.mxu0 %v1459
    %2864 = vmatpush1.msra.mxu0 %v1458
    %2865 = vmatprep.subr.mxu0 %v1467
    %2866 = vmatpush1.msra.mxu0 %v1466
    %2867 = vmatprep.subr.mxu0 %v1475
    %2868 = vmatpush1.msra.mxu0 %v1474
    %2869 = vmatprep.subr.mxu0 %v1483
    %2870 = vmatpush1.msra.mxu0 %v1482
    %2871 = vmatprep.subr.mxu0 %v1491
    %2872 = vmatpush1.msra.mxu0 %v1490
    %2873 = vmatprep.subr.mxu0 %v1499
    %2874 = vmatpush1.msra.mxu0 %v1498
    %2875 = vmatprep.subr.mxu0 %v1507
    %2876 = vmatpush1.msra.mxu0 %v1506
    %2877 = vmatprep.subr.mxu0 %v1515
    %2878 = vmatpush1.msra.mxu0 %v1514
    %2879 = vmatprep.subr.mxu0 %v1523
    %2880 = vmatpush1.msra.mxu0 %v1522
    %2881 = vmatprep.subr.mxu0 %v1531
    %2882 = vmatpush1.msra.mxu0 %v1530
    %2883 = vmatprep.subr.mxu0 %v1539
    %2884 = vmatpush1.msra.mxu0 %v1538
    %2885 = vmatprep.subr.mxu0 %v1547
    %2886 = vmatpush1.msra.mxu0 %v1546
    %2887 = vmatprep.subr.mxu0 %v1555
    %2888 = vmatpush1.msra.mxu0 %v1554
    %2889 = vmatprep.subr.mxu0 %v1563
    %2890 = vmatpush1.msra.mxu0 %v1562
    %2891 = vmatprep.subr.mxu0 %v1571
    %2892 = vmatpush1.msra.mxu0 %v1570
    %2893 = vmatprep.subr.mxu0 %v1579
    %2894 = vmatpush1.msra.mxu0 %v1578
    %2895 = vmatprep.mubr.f32.mxu0 %v2607
    %2896 = vmatmul.mubr.f32.gmra.mrb[0].mxu0 %v2606
    %v2897 = vpop.f32.mrb[0].mxu0
    %v2898 = vadd.f32 %v2616, %v2897
    %v2899 = vpop.f32.mrb[0].mxu0
    %v2900 = vadd.f32 %v2617, %v2899
    %2901 = vdwg.mxu0
    %v2902 = vxor.u32 %v2685, 2147483648
    %v2903 = vxor.u32 %v2687, 2147483648
    %v2904 = vmul.f32 %v2902, 1.442695
    %v2905 = vpow.pop %v2904
    %v2906 = vmul.f32 %v2903, 1.442695
    %v2907 = vpow.pop %v2906
    %v2908 = vadd.f32 %v2905, 1.0
    %v2909 = vadd.f32 %v2907, 1.0
    %v2910 = vrcp.pop %v2908
    %v2911 = vmul.f32 1.0, %v2910
    %v2912 = vrcp.pop %v2909
    %v2913 = vmul.f32 1.0, %v2912
    %v2914 = vxor.u32 %v2756, 2147483648
    %v2915 = vxor.u32 %v2758, 2147483648
    %v2916 = vmul.f32 %v2914, 1.442695
    %v2917 = vpow.pop %v2916
    %v2918 = vmul.f32 %v2915, 1.442695
    %v2919 = vpow.pop %v2918
    %v2920 = vadd.f32 %v2917, 1.0
    %v2921 = vadd.f32 %v2919, 1.0
    %v2922 = vrcp.pop %v2920
    %v2923 = vmul.f32 1.0, %v2922
    %v2924 = vrcp.pop %v2921
    %v2925 = vmul.f32 1.0, %v2924
    %v2926 = vtanh.pop %v2827
    %v2927 = vtanh.pop %v2829
    %v2928 = vxor.u32 %v2898, 2147483648
    %v2929 = vxor.u32 %v2900, 2147483648
    %v2930 = vmul.f32 %v2928, 1.442695
    %v2931 = vpow.pop %v2930
    %v2932 = vmul.f32 %v2929, 1.442695
    %v2933 = vpow.pop %v2932
    %v2934 = vadd.f32 %v2931, 1.0
    %v2935 = vadd.f32 %v2933, 1.0
    %v2936 = vrcp.pop %v2934
    %v2937 = vmul.f32 1.0, %v2936
    %v2938 = vrcp.pop %v2935
    %v2939 = vmul.f32 1.0, %v2938
    %v2940 = vmul.f32 %v2923, %v2602
    %v2941 = vmul.f32 %v2925, %v2603
    %v2942 = vmul.f32 %v2911, %v2926
    %v2943 = vmul.f32 %v2913, %v2927
    %v2944 = vadd.f32 %v2940, %v2942
    %v2945 = vadd.f32 %v2941, %v2943
    %v2946 = vtanh.pop %v2944
    %v2947 = vtanh.pop %v2945
    %v2948 = vmul.f32 %v2937, %v2946
    %v2949 = vmul.f32 %v2939, %v2947
    %2950 = vst [vmem:[#allocation3 + $0x30] sm:$0xff] %v2948
    %2951 = vst [vmem:[#allocation3 + $0x48] sm:$0xff] %v2949
    %v2952 = vld [vmem:[#allocation2 + $0x100] sm:$0xff]
    %v2953 = vld [vmem:[#allocation2 + $0x108] sm:$0xff]
    %v2954 = vld [vmem:[#allocation2 + $0x110] sm:$0xff]
    %v2955 = vld [vmem:[#allocation2 + $0x118] sm:$0xff]
    %v2956 = vld [vmem:[#allocation2 + $0x120] sm:$0xff]
    %v2957 = vld [vmem:[#allocation2 + $0x128] sm:$0xff]
    %v2958 = vld [vmem:[#allocation2 + $0x130] sm:$0xff]
    %v2959 = vld [vmem:[#allocation2 + $0x138] sm:$0xff]
    %2960 = vmatprep.subr.mxu0 %v1325
    %2961 = vmatpush1.msra.mxu0 %v1324
    %2962 = vmatprep.subr.mxu0 %v1333
    %2963 = vmatpush1.msra.mxu0 %v1332
    %2964 = vmatprep.subr.mxu0 %v1341
    %2965 = vmatpush1.msra.mxu0 %v1340
    %2966 = vmatprep.subr.mxu0 %v1349
    %2967 = vmatpush1.msra.mxu0 %v1348
    %2968 = vmatprep.subr.mxu0 %v1357
    %2969 = vmatpush1.msra.mxu0 %v1356
    %2970 = vmatprep.subr.mxu0 %v1365
    %2971 = vmatpush1.msra.mxu0 %v1364
    %2972 = vmatprep.subr.mxu0 %v1373
    %2973 = vmatpush1.msra.mxu0 %v1372
    %2974 = vmatprep.subr.mxu0 %v1381
    %2975 = vmatpush1.msra.mxu0 %v1380
    %2976 = vmatprep.subr.mxu0 %v1389
    %2977 = vmatpush1.msra.mxu0 %v1388
    %2978 = vmatprep.subr.mxu0 %v1397
    %2979 = vmatpush1.msra.mxu0 %v1396
    %2980 = vmatprep.subr.mxu0 %v1405
    %2981 = vmatpush1.msra.mxu0 %v1404
    %2982 = vmatprep.subr.mxu0 %v1413
    %2983 = vmatpush1.msra.mxu0 %v1412
    %2984 = vmatprep.subr.mxu0 %v1421
    %2985 = vmatpush1.msra.mxu0 %v1420
    %2986 = vmatprep.subr.mxu0 %v1429
    %2987 = vmatpush1.msra.mxu0 %v1428
    %2988 = vmatprep.subr.mxu0 %v1437
    %2989 = vmatpush1.msra.mxu0 %v1436
    %2990 = vmatprep.subr.mxu0 %v1445
    %2991 = vmatpush1.msra.mxu0 %v1444
    %2992 = vmatprep.subr.mxu0 %v1453
    %2993 = vmatpush1.msra.mxu0 %v1452
    %2994 = vmatprep.subr.mxu0 %v1461
    %2995 = vmatpush1.msra.mxu0 %v1460
    %2996 = vmatprep.subr.mxu0 %v1469
    %2997 = vmatpush1.msra.mxu0 %v1468
    %2998 = vmatprep.subr.mxu0 %v1477
    %2999 = vmatpush1.msra.mxu0 %v1476
    %3000 = vmatprep.subr.mxu0 %v1485
    %3001 = vmatpush1.msra.mxu0 %v1484
    %3002 = vmatprep.subr.mxu0 %v1493
    %3003 = vmatpush1.msra.mxu0 %v1492
    %3004 = vmatprep.subr.mxu0 %v1501
    %3005 = vmatpush1.msra.mxu0 %v1500
    %3006 = vmatprep.subr.mxu0 %v1509
    %3007 = vmatpush1.msra.mxu0 %v1508
    %3008 = vmatprep.subr.mxu0 %v1517
    %3009 = vmatpush1.msra.mxu0 %v1516
    %3010 = vmatprep.subr.mxu0 %v1525
    %3011 = vmatpush1.msra.mxu0 %v1524
    %3012 = vmatprep.subr.mxu0 %v1533
    %3013 = vmatpush1.msra.mxu0 %v1532
    %3014 = vmatprep.subr.mxu0 %v1541
    %3015 = vmatpush1.msra.mxu0 %v1540
    %3016 = vmatprep.subr.mxu0 %v1549
    %3017 = vmatpush1.msra.mxu0 %v1548
    %3018 = vmatprep.subr.mxu0 %v1557
    %3019 = vmatpush1.msra.mxu0 %v1556
    %3020 = vmatprep.subr.mxu0 %v1565
    %3021 = vmatpush1.msra.mxu0 %v1564
    %3022 = vmatprep.subr.mxu0 %v1573
    %3023 = vmatpush1.msra.mxu0 %v1572
    %3024 = vmatprep.mubr.f32.mxu0 %v2949
    %3025 = vmatmul.mubr.f32.gmra.mrb[0].mxu0 %v2948
    %v3026 = vpop.f32.mrb[0].mxu0
    %v3027 = vadd.f32 %v2952, %v3026
    %v3028 = vpop.f32.mrb[0].mxu0
    %v3029 = vadd.f32 %v2953, %v3028
    %3030 = vdwg.mxu0
    %3031 = vmatprep.subr.mxu0 %v1327
    %3032 = vmatpush1.msra.mxu0 %v1326
    %3033 = vmatprep.subr.mxu0 %v1335
    %3034 = vmatpush1.msra.mxu0 %v1334
    %3035 = vmatprep.subr.mxu0 %v1343
    %3036 = vmatpush1.msra.mxu0 %v1342
    %3037 = vmatprep.subr.mxu0 %v1351
    %3038 = vmatpush1.msra.mxu0 %v1350
    %3039 = vmatprep.subr.mxu0 %v1359
    %3040 = vmatpush1.msra.mxu0 %v1358
    %3041 = vmatprep.subr.mxu0 %v1367
    %3042 = vmatpush1.msra.mxu0 %v1366
    %3043 = vmatprep.subr.mxu0 %v1375
    %3044 = vmatpush1.msra.mxu0 %v1374
    %3045 = vmatprep.subr.mxu0 %v1383
    %3046 = vmatpush1.msra.mxu0 %v1382
    %3047 = vmatprep.subr.mxu0 %v1391
    %3048 = vmatpush1.msra.mxu0 %v1390
    %3049 = vmatprep.subr.mxu0 %v1399
    %3050 = vmatpush1.msra.mxu0 %v1398
    %3051 = vmatprep.subr.mxu0 %v1407
    %3052 = vmatpush1.msra.mxu0 %v1406
    %3053 = vmatprep.subr.mxu0 %v1415
    %3054 = vmatpush1.msra.mxu0 %v1414
    %3055 = vmatprep.subr.mxu0 %v1423
    %3056 = vmatpush1.msra.mxu0 %v1422
    %3057 = vmatprep.subr.mxu0 %v1431
    %3058 = vmatpush1.msra.mxu0 %v1430
    %3059 = vmatprep.subr.mxu0 %v1439
    %3060 = vmatpush1.msra.mxu0 %v1438
    %3061 = vmatprep.subr.mxu0 %v1447
    %3062 = vmatpush1.msra.mxu0 %v1446
    %3063 = vmatprep.subr.mxu0 %v1455
    %3064 = vmatpush1.msra.mxu0 %v1454
    %3065 = vmatprep.subr.mxu0 %v1463
    %3066 = vmatpush1.msra.mxu0 %v1462
    %3067 = vmatprep.subr.mxu0 %v1471
    %3068 = vmatpush1.msra.mxu0 %v1470
    %3069 = vmatprep.subr.mxu0 %v1479
    %3070 = vmatpush1.msra.mxu0 %v1478
    %3071 = vmatprep.subr.mxu0 %v1487
    %3072 = vmatpush1.msra.mxu0 %v1486
    %3073 = vmatprep.subr.mxu0 %v1495
    %3074 = vmatpush1.msra.mxu0 %v1494
    %3075 = vmatprep.subr.mxu0 %v1503
    %3076 = vmatpush1.msra.mxu0 %v1502
    %3077 = vmatprep.subr.mxu0 %v1511
    %3078 = vmatpush1.msra.mxu0 %v1510
    %3079 = vmatprep.subr.mxu0 %v1519
    %3080 = vmatpush1.msra.mxu0 %v1518
    %3081 = vmatprep.subr.mxu0 %v1527
    %3082 = vmatpush1.msra.mxu0 %v1526
    %3083 = vmatprep.subr.mxu0 %v1535
    %3084 = vmatpush1.msra.mxu0 %v1534
    %3085 = vmatprep.subr.mxu0 %v1543
    %3086 = vmatpush1.msra.mxu0 %v1542
    %3087 = vmatprep.subr.mxu0 %v1551
    %3088 = vmatpush1.msra.mxu0 %v1550
    %3089 = vmatprep.subr.mxu0 %v1559
    %3090 = vmatpush1.msra.mxu0 %v1558
    %3091 = vmatprep.subr.mxu0 %v1567
    %3092 = vmatpush1.msra.mxu0 %v1566
    %3093 = vmatprep.subr.mxu0 %v1575
    %3094 = vmatpush1.msra.mxu0 %v1574
    %3095 = vmatprep.mubr.f32.mxu0 %v2949
    %3096 = vmatmul.mubr.f32.gmra.mrb[0].mxu0 %v2948
    %v3097 = vpop.f32.mrb[0].mxu0
    %v3098 = vadd.f32 %v2954, %v3097
    %v3099 = vpop.f32.mrb[0].mxu0
    %v3100 = vadd.f32 %v2955, %v3099
    %3101 = vdwg.mxu0
    %3102 = vmatprep.subr.mxu0 %v1329
    %3103 = vmatpush1.msra.mxu0 %v1328
    %3104 = vmatprep.subr.mxu0 %v1337
    %3105 = vmatpush1.msra.mxu0 %v1336
    %3106 = vmatprep.subr.mxu0 %v1345
    %3107 = vmatpush1.msra.mxu0 %v1344
    %3108 = vmatprep.subr.mxu0 %v1353
    %3109 = vmatpush1.msra.mxu0 %v1352
    %3110 = vmatprep.subr.mxu0 %v1361
    %3111 = vmatpush1.msra.mxu0 %v1360
    %3112 = vmatprep.subr.mxu0 %v1369
    %3113 = vmatpush1.msra.mxu0 %v1368
    %3114 = vmatprep.subr.mxu0 %v1377
    %3115 = vmatpush1.msra.mxu0 %v1376
    %3116 = vmatprep.subr.mxu0 %v1385
    %3117 = vmatpush1.msra.mxu0 %v1384
    %3118 = vmatprep.subr.mxu0 %v1393
    %3119 = vmatpush1.msra.mxu0 %v1392
    %3120 = vmatprep.subr.mxu0 %v1401
    %3121 = vmatpush1.msra.mxu0 %v1400
    %3122 = vmatprep.subr.mxu0 %v1409
    %3123 = vmatpush1.msra.mxu0 %v1408
    %3124 = vmatprep.subr.mxu0 %v1417
    %3125 = vmatpush1.msra.mxu0 %v1416
    %3126 = vmatprep.subr.mxu0 %v1425
    %3127 = vmatpush1.msra.mxu0 %v1424
    %3128 = vmatprep.subr.mxu0 %v1433
    %3129 = vmatpush1.msra.mxu0 %v1432
    %3130 = vmatprep.subr.mxu0 %v1441
    %3131 = vmatpush1.msra.mxu0 %v1440
    %3132 = vmatprep.subr.mxu0 %v1449
    %3133 = vmatpush1.msra.mxu0 %v1448
    %3134 = vmatprep.subr.mxu0 %v1457
    %3135 = vmatpush1.msra.mxu0 %v1456
    %3136 = vmatprep.subr.mxu0 %v1465
    %3137 = vmatpush1.msra.mxu0 %v1464
    %3138 = vmatprep.subr.mxu0 %v1473
    %3139 = vmatpush1.msra.mxu0 %v1472
    %3140 = vmatprep.subr.mxu0 %v1481
    %3141 = vmatpush1.msra.mxu0 %v1480
    %3142 = vmatprep.subr.mxu0 %v1489
    %3143 = vmatpush1.msra.mxu0 %v1488
    %3144 = vmatprep.subr.mxu0 %v1497
    %3145 = vmatpush1.msra.mxu0 %v1496
    %3146 = vmatprep.subr.mxu0 %v1505
    %3147 = vmatpush1.msra.mxu0 %v1504
    %3148 = vmatprep.subr.mxu0 %v1513
    %3149 = vmatpush1.msra.mxu0 %v1512
    %3150 = vmatprep.subr.mxu0 %v1521
    %3151 = vmatpush1.msra.mxu0 %v1520
    %3152 = vmatprep.subr.mxu0 %v1529
    %3153 = vmatpush1.msra.mxu0 %v1528
    %3154 = vmatprep.subr.mxu0 %v1537
    %3155 = vmatpush1.msra.mxu0 %v1536
    %3156 = vmatprep.subr.mxu0 %v1545
    %3157 = vmatpush1.msra.mxu0 %v1544
    %3158 = vmatprep.subr.mxu0 %v1553
    %3159 = vmatpush1.msra.mxu0 %v1552
    %3160 = vmatprep.subr.mxu0 %v1561
    %3161 = vmatpush1.msra.mxu0 %v1560
    %3162 = vmatprep.subr.mxu0 %v1569
    %3163 = vmatpush1.msra.mxu0 %v1568
    %3164 = vmatprep.subr.mxu0 %v1577
    %3165 = vmatpush1.msra.mxu0 %v1576
    %3166 = vmatprep.mubr.f32.mxu0 %v2949
    %3167 = vmatmul.mubr.f32.gmra.mrb[0].mxu0 %v2948
    %v3168 = vpop.f32.mrb[0].mxu0
    %v3169 = vadd.f32 %v2956, %v3168
    %v3170 = vpop.f32.mrb[0].mxu0
    %v3171 = vadd.f32 %v2957, %v3170
    %3172 = vdwg.mxu0
    %3173 = vmatprep.subr.mxu0 %v1331
    %3174 = vmatpush1.msra.mxu0 %v1330
    %3175 = vmatprep.subr.mxu0 %v1339
    %3176 = vmatpush1.msra.mxu0 %v1338
    %3177 = vmatprep.subr.mxu0 %v1347
    %3178 = vmatpush1.msra.mxu0 %v1346
    %3179 = vmatprep.subr.mxu0 %v1355
    %3180 = vmatpush1.msra.mxu0 %v1354
    %3181 = vmatprep.subr.mxu0 %v1363
    %3182 = vmatpush1.msra.mxu0 %v1362
    %3183 = vmatprep.subr.mxu0 %v1371
    %3184 = vmatpush1.msra.mxu0 %v1370
    %3185 = vmatprep.subr.mxu0 %v1379
    %3186 = vmatpush1.msra.mxu0 %v1378
    %3187 = vmatprep.subr.mxu0 %v1387
    %3188 = vmatpush1.msra.mxu0 %v1386
    %3189 = vmatprep.subr.mxu0 %v1395
    %3190 = vmatpush1.msra.mxu0 %v1394
    %3191 = vmatprep.subr.mxu0 %v1403
    %3192 = vmatpush1.msra.mxu0 %v1402
    %3193 = vmatprep.subr.mxu0 %v1411
    %3194 = vmatpush1.msra.mxu0 %v1410
    %3195 = vmatprep.subr.mxu0 %v1419
    %3196 = vmatpush1.msra.mxu0 %v1418
    %3197 = vmatprep.subr.mxu0 %v1427
    %3198 = vmatpush1.msra.mxu0 %v1426
    %3199 = vmatprep.subr.mxu0 %v1435
    %3200 = vmatpush1.msra.mxu0 %v1434
    %3201 = vmatprep.subr.mxu0 %v1443
    %3202 = vmatpush1.msra.mxu0 %v1442
    %3203 = vmatprep.subr.mxu0 %v1451
    %3204 = vmatpush1.msra.mxu0 %v1450
    %3205 = vmatprep.subr.mxu0 %v1459
    %3206 = vmatpush1.msra.mxu0 %v1458
    %3207 = vmatprep.subr.mxu0 %v1467
    %3208 = vmatpush1.msra.mxu0 %v1466
    %3209 = vmatprep.subr.mxu0 %v1475
    %3210 = vmatpush1.msra.mxu0 %v1474
    %3211 = vmatprep.subr.mxu0 %v1483
    %3212 = vmatpush1.msra.mxu0 %v1482
    %3213 = vmatprep.subr.mxu0 %v1491
    %3214 = vmatpush1.msra.mxu0 %v1490
    %3215 = vmatprep.subr.mxu0 %v1499
    %3216 = vmatpush1.msra.mxu0 %v1498
    %3217 = vmatprep.subr.mxu0 %v1507
    %3218 = vmatpush1.msra.mxu0 %v1506
    %3219 = vmatprep.subr.mxu0 %v1515
    %3220 = vmatpush1.msra.mxu0 %v1514
    %3221 = vmatprep.subr.mxu0 %v1523
    %3222 = vmatpush1.msra.mxu0 %v1522
    %3223 = vmatprep.subr.mxu0 %v1531
    %3224 = vmatpush1.msra.mxu0 %v1530
    %3225 = vmatprep.subr.mxu0 %v1539
    %3226 = vmatpush1.msra.mxu0 %v1538
    %3227 = vmatprep.subr.mxu0 %v1547
    %3228 = vmatpush1.msra.mxu0 %v1546
    %3229 = vmatprep.subr.mxu0 %v1555
    %3230 = vmatpush1.msra.mxu0 %v1554
    %3231 = vmatprep.subr.mxu0 %v1563
    %3232 = vmatpush1.msra.mxu0 %v1562
    %3233 = vmatprep.subr.mxu0 %v1571
    %3234 = vmatpush1.msra.mxu0 %v1570
    %3235 = vmatprep.subr.mxu0 %v1579
    %3236 = vmatpush1.msra.mxu0 %v1578
    %3237 = vmatprep.mubr.f32.mxu0 %v2949
    %3238 = vmatmul.mubr.f32.gmra.mrb[0].mxu0 %v2948
    %v3239 = vpop.f32.mrb[0].mxu0
    %v3240 = vadd.f32 %v2958, %v3239
    %v3241 = vpop.f32.mrb[0].mxu0
    %v3242 = vadd.f32 %v2959, %v3241
    %3243 = vdwg.mxu0
    %v3244 = vxor.u32 %v3027, 2147483648
    %v3245 = vxor.u32 %v3029, 2147483648
    %v3246 = vmul.f32 %v3244, 1.442695
    %v3247 = vpow.pop %v3246
    %v3248 = vmul.f32 %v3245, 1.442695
    %v3249 = vpow.pop %v3248
    %v3250 = vadd.f32 %v3247, 1.0
    %v3251 = vadd.f32 %v3249, 1.0
    %v3252 = vrcp.pop %v3250
    %v3253 = vmul.f32 1.0, %v3252
    %v3254 = vrcp.pop %v3251
    %v3255 = vmul.f32 1.0, %v3254
    %v3256 = vxor.u32 %v3098, 2147483648
    %v3257 = vxor.u32 %v3100, 2147483648
    %v3258 = vmul.f32 %v3256, 1.442695
    %v3259 = vpow.pop %v3258
    %v3260 = vmul.f32 %v3257, 1.442695
    %v3261 = vpow.pop %v3260
    %v3262 = vadd.f32 %v3259, 1.0
    %v3263 = vadd.f32 %v3261, 1.0
    %v3264 = vrcp.pop %v3262
    %v3265 = vmul.f32 1.0, %v3264
    %v3266 = vrcp.pop %v3263
    %v3267 = vmul.f32 1.0, %v3266
    %v3268 = vtanh.pop %v3169
    %v3269 = vtanh.pop %v3171
    %v3270 = vxor.u32 %v3240, 2147483648
    %v3271 = vxor.u32 %v3242, 2147483648
    %v3272 = vmul.f32 %v3270, 1.442695
    %v3273 = vpow.pop %v3272
    %v3274 = vmul.f32 %v3271, 1.442695
    %v3275 = vpow.pop %v3274
    %v3276 = vadd.f32 %v3273, 1.0
    %v3277 = vadd.f32 %v3275, 1.0
    %v3278 = vrcp.pop %v3276
    %v3279 = vmul.f32 1.0, %v3278
    %v3280 = vrcp.pop %v3277
    %v3281 = vmul.f32 1.0, %v3280
    %v3282 = vmul.f32 %v3265, %v2944
    %v3283 = vmul.f32 %v3267, %v2945
    %v3284 = vmul.f32 %v3253, %v3268
    %v3285 = vmul.f32 %v3255, %v3269
    %v3286 = vadd.f32 %v3282, %v3284
    %v3287 = vadd.f32 %v3283, %v3285
    %v3288 = vtanh.pop %v3286
    %v3289 = vtanh.pop %v3287
    %v3290 = vmul.f32 %v3279, %v3288
    %v3291 = vmul.f32 %v3281, %v3289
    %3292 = vst [vmem:[#allocation3 + $0x40] sm:$0xff] %v3290
    %3293 = vst [vmem:[#allocation3 + $0x38] sm:$0xff] %v3291
    %v3294 = vld [vmem:[#allocation2 + $0x140] sm:$0xff]
    %v3295 = vld [vmem:[#allocation2 + $0x148] sm:$0xff]
    %v3296 = vld [vmem:[#allocation2 + $0x150] sm:$0xff]
    %v3297 = vld [vmem:[#allocation2 + $0x158] sm:$0xff]
    %v3298 = vld [vmem:[#allocation2 + $0x160] sm:$0xff]
    %v3299 = vld [vmem:[#allocation2 + $0x168] sm:$0xff]
    %v3300 = vld [vmem:[#allocation2 + $0x170] sm:$0xff]
    %v3301 = vld [vmem:[#allocation2 + $0x178] sm:$0xff]
    %3302 = vmatprep.subr.mxu0 %v1325
    %3303 = vmatpush1.msra.mxu0 %v1324
    %3304 = vmatprep.subr.mxu0 %v1333
    %3305 = vmatpush1.msra.mxu0 %v1332
    %3306 = vmatprep.subr.mxu0 %v1341
    %3307 = vmatpush1.msra.mxu0 %v1340
    %3308 = vmatprep.subr.mxu0 %v1349
    %3309 = vmatpush1.msra.mxu0 %v1348
    %3310 = vmatprep.subr.mxu0 %v1357
    %3311 = vmatpush1.msra.mxu0 %v1356
    %3312 = vmatprep.subr.mxu0 %v1365
    %3313 = vmatpush1.msra.mxu0 %v1364
    %3314 = vmatprep.subr.mxu0 %v1373
    %3315 = vmatpush1.msra.mxu0 %v1372
    %3316 = vmatprep.subr.mxu0 %v1381
    %3317 = vmatpush1.msra.mxu0 %v1380
    %3318 = vmatprep.subr.mxu0 %v1389
    %3319 = vmatpush1.msra.mxu0 %v1388
    %3320 = vmatprep.subr.mxu0 %v1397
    %3321 = vmatpush1.msra.mxu0 %v1396
    %3322 = vmatprep.subr.mxu0 %v1405
    %3323 = vmatpush1.msra.mxu0 %v1404
    %3324 = vmatprep.subr.mxu0 %v1413
    %3325 = vmatpush1.msra.mxu0 %v1412
    %3326 = vmatprep.subr.mxu0 %v1421
    %3327 = vmatpush1.msra.mxu0 %v1420
    %3328 = vmatprep.subr.mxu0 %v1429
    %3329 = vmatpush1.msra.mxu0 %v1428
    %3330 = vmatprep.subr.mxu0 %v1437
    %3331 = vmatpush1.msra.mxu0 %v1436
    %3332 = vmatprep.subr.mxu0 %v1445
    %3333 = vmatpush1.msra.mxu0 %v1444
    %3334 = vmatprep.subr.mxu0 %v1453
    %3335 = vmatpush1.msra.mxu0 %v1452
    %3336 = vmatprep.subr.mxu0 %v1461
    %3337 = vmatpush1.msra.mxu0 %v1460
    %3338 = vmatprep.subr.mxu0 %v1469
    %3339 = vmatpush1.msra.mxu0 %v1468
    %3340 = vmatprep.subr.mxu0 %v1477
    %3341 = vmatpush1.msra.mxu0 %v1476
    %3342 = vmatprep.subr.mxu0 %v1485
    %3343 = vmatpush1.msra.mxu0 %v1484
    %3344 = vmatprep.subr.mxu0 %v1493
    %3345 = vmatpush1.msra.mxu0 %v1492
    %3346 = vmatprep.subr.mxu0 %v1501
    %3347 = vmatpush1.msra.mxu0 %v1500
    %3348 = vmatprep.subr.mxu0 %v1509
    %3349 = vmatpush1.msra.mxu0 %v1508
    %3350 = vmatprep.subr.mxu0 %v1517
    %3351 = vmatpush1.msra.mxu0 %v1516
    %3352 = vmatprep.subr.mxu0 %v1525
    %3353 = vmatpush1.msra.mxu0 %v1524
    %3354 = vmatprep.subr.mxu0 %v1533
    %3355 = vmatpush1.msra.mxu0 %v1532
    %3356 = vmatprep.subr.mxu0 %v1541
    %3357 = vmatpush1.msra.mxu0 %v1540
    %3358 = vmatprep.subr.mxu0 %v1549
    %3359 = vmatpush1.msra.mxu0 %v1548
    %3360 = vmatprep.subr.mxu0 %v1557
    %3361 = vmatpush1.msra.mxu0 %v1556
    %3362 = vmatprep.subr.mxu0 %v1565
    %3363 = vmatpush1.msra.mxu0 %v1564
    %3364 = vmatprep.subr.mxu0 %v1573
    %3365 = vmatpush1.msra.mxu0 %v1572
    %3366 = vmatprep.mubr.f32.mxu0 %v3291
    %3367 = vmatmul.mubr.f32.gmra.mrb[0].mxu0 %v3290
    %v3368 = vpop.f32.mrb[0].mxu0
    %v3369 = vadd.f32 %v3294, %v3368
    %v3370 = vpop.f32.mrb[0].mxu0
    %v3371 = vadd.f32 %v3295, %v3370
    %3372 = vdwg.mxu0
    %3373 = vmatprep.subr.mxu0 %v1327
    %3374 = vmatpush1.msra.mxu0 %v1326
    %3375 = vmatprep.subr.mxu0 %v1335
    %3376 = vmatpush1.msra.mxu0 %v1334
    %3377 = vmatprep.subr.mxu0 %v1343
    %3378 = vmatpush1.msra.mxu0 %v1342
    %3379 = vmatprep.subr.mxu0 %v1351
    %3380 = vmatpush1.msra.mxu0 %v1350
    %3381 = vmatprep.subr.mxu0 %v1359
    %3382 = vmatpush1.msra.mxu0 %v1358
    %3383 = vmatprep.subr.mxu0 %v1367
    %3384 = vmatpush1.msra.mxu0 %v1366
    %3385 = vmatprep.subr.mxu0 %v1375
    %3386 = vmatpush1.msra.mxu0 %v1374
    %3387 = vmatprep.subr.mxu0 %v1383
    %3388 = vmatpush1.msra.mxu0 %v1382
    %3389 = vmatprep.subr.mxu0 %v1391
    %3390 = vmatpush1.msra.mxu0 %v1390
    %3391 = vmatprep.subr.mxu0 %v1399
    %3392 = vmatpush1.msra.mxu0 %v1398
    %3393 = vmatprep.subr.mxu0 %v1407
    %3394 = vmatpush1.msra.mxu0 %v1406
    %3395 = vmatprep.subr.mxu0 %v1415
    %3396 = vmatpush1.msra.mxu0 %v1414
    %3397 = vmatprep.subr.mxu0 %v1423
    %3398 = vmatpush1.msra.mxu0 %v1422
    %3399 = vmatprep.subr.mxu0 %v1431
    %3400 = vmatpush1.msra.mxu0 %v1430
    %3401 = vmatprep.subr.mxu0 %v1439
    %3402 = vmatpush1.msra.mxu0 %v1438
    %3403 = vmatprep.subr.mxu0 %v1447
    %3404 = vmatpush1.msra.mxu0 %v1446
    %3405 = vmatprep.subr.mxu0 %v1455
    %3406 = vmatpush1.msra.mxu0 %v1454
    %3407 = vmatprep.subr.mxu0 %v1463
    %3408 = vmatpush1.msra.mxu0 %v1462
    %3409 = vmatprep.subr.mxu0 %v1471
    %3410 = vmatpush1.msra.mxu0 %v1470
    %3411 = vmatprep.subr.mxu0 %v1479
    %3412 = vmatpush1.msra.mxu0 %v1478
    %3413 = vmatprep.subr.mxu0 %v1487
    %3414 = vmatpush1.msra.mxu0 %v1486
    %3415 = vmatprep.subr.mxu0 %v1495
    %3416 = vmatpush1.msra.mxu0 %v1494
    %3417 = vmatprep.subr.mxu0 %v1503
    %3418 = vmatpush1.msra.mxu0 %v1502
    %3419 = vmatprep.subr.mxu0 %v1511
    %3420 = vmatpush1.msra.mxu0 %v1510
    %3421 = vmatprep.subr.mxu0 %v1519
    %3422 = vmatpush1.msra.mxu0 %v1518
    %3423 = vmatprep.subr.mxu0 %v1527
    %3424 = vmatpush1.msra.mxu0 %v1526
    %3425 = vmatprep.subr.mxu0 %v1535
    %3426 = vmatpush1.msra.mxu0 %v1534
    %3427 = vmatprep.subr.mxu0 %v1543
    %3428 = vmatpush1.msra.mxu0 %v1542
    %3429 = vmatprep.subr.mxu0 %v1551
    %3430 = vmatpush1.msra.mxu0 %v1550
    %3431 = vmatprep.subr.mxu0 %v1559
    %3432 = vmatpush1.msra.mxu0 %v1558
    %3433 = vmatprep.subr.mxu0 %v1567
    %3434 = vmatpush1.msra.mxu0 %v1566
    %3435 = vmatprep.subr.mxu0 %v1575
    %3436 = vmatpush1.msra.mxu0 %v1574
    %3437 = vmatprep.mubr.f32.mxu0 %v3291
    %3438 = vmatmul.mubr.f32.gmra.mrb[0].mxu0 %v3290
    %v3439 = vpop.f32.mrb[0].mxu0
    %v3440 = vadd.f32 %v3296, %v3439
    %v3441 = vpop.f32.mrb[0].mxu0
    %v3442 = vadd.f32 %v3297, %v3441
    %3443 = vdwg.mxu0
    %3444 = vmatprep.subr.mxu0 %v1329
    %3445 = vmatpush1.msra.mxu0 %v1328
    %3446 = vmatprep.subr.mxu0 %v1337
    %3447 = vmatpush1.msra.mxu0 %v1336
    %3448 = vmatprep.subr.mxu0 %v1345
    %3449 = vmatpush1.msra.mxu0 %v1344
    %3450 = vmatprep.subr.mxu0 %v1353
    %3451 = vmatpush1.msra.mxu0 %v1352
    %3452 = vmatprep.subr.mxu0 %v1361
    %3453 = vmatpush1.msra.mxu0 %v1360
    %3454 = vmatprep.subr.mxu0 %v1369
    %3455 = vmatpush1.msra.mxu0 %v1368
    %3456 = vmatprep.subr.mxu0 %v1377
    %3457 = vmatpush1.msra.mxu0 %v1376
    %3458 = vmatprep.subr.mxu0 %v1385
    %3459 = vmatpush1.msra.mxu0 %v1384
    %3460 = vmatprep.subr.mxu0 %v1393
    %3461 = vmatpush1.msra.mxu0 %v1392
    %3462 = vmatprep.subr.mxu0 %v1401
    %3463 = vmatpush1.msra.mxu0 %v1400
    %3464 = vmatprep.subr.mxu0 %v1409
    %3465 = vmatpush1.msra.mxu0 %v1408
    %3466 = vmatprep.subr.mxu0 %v1417
    %3467 = vmatpush1.msra.mxu0 %v1416
    %3468 = vmatprep.subr.mxu0 %v1425
    %3469 = vmatpush1.msra.mxu0 %v1424
    %3470 = vmatprep.subr.mxu0 %v1433
    %3471 = vmatpush1.msra.mxu0 %v1432
    %3472 = vmatprep.subr.mxu0 %v1441
    %3473 = vmatpush1.msra.mxu0 %v1440
    %3474 = vmatprep.subr.mxu0 %v1449
    %3475 = vmatpush1.msra.mxu0 %v1448
    %3476 = vmatprep.subr.mxu0 %v1457
    %3477 = vmatpush1.msra.mxu0 %v1456
    %3478 = vmatprep.subr.mxu0 %v1465
    %3479 = vmatpush1.msra.mxu0 %v1464
    %3480 = vmatprep.subr.mxu0 %v1473
    %3481 = vmatpush1.msra.mxu0 %v1472
    %3482 = vmatprep.subr.mxu0 %v1481
    %3483 = vmatpush1.msra.mxu0 %v1480
    %3484 = vmatprep.subr.mxu0 %v1489
    %3485 = vmatpush1.msra.mxu0 %v1488
    %3486 = vmatprep.subr.mxu0 %v1497
    %3487 = vmatpush1.msra.mxu0 %v1496
    %3488 = vmatprep.subr.mxu0 %v1505
    %3489 = vmatpush1.msra.mxu0 %v1504
    %3490 = vmatprep.subr.mxu0 %v1513
    %3491 = vmatpush1.msra.mxu0 %v1512
    %3492 = vmatprep.subr.mxu0 %v1521
    %3493 = vmatpush1.msra.mxu0 %v1520
    %3494 = vmatprep.subr.mxu0 %v1529
    %3495 = vmatpush1.msra.mxu0 %v1528
    %3496 = vmatprep.subr.mxu0 %v1537
    %3497 = vmatpush1.msra.mxu0 %v1536
    %3498 = vmatprep.subr.mxu0 %v1545
    %3499 = vmatpush1.msra.mxu0 %v1544
    %3500 = vmatprep.subr.mxu0 %v1553
    %3501 = vmatpush1.msra.mxu0 %v1552
    %3502 = vmatprep.subr.mxu0 %v1561
    %3503 = vmatpush1.msra.mxu0 %v1560
    %3504 = vmatprep.subr.mxu0 %v1569
    %3505 = vmatpush1.msra.mxu0 %v1568
    %3506 = vmatprep.subr.mxu0 %v1577
    %3507 = vmatpush1.msra.mxu0 %v1576
    %3508 = vmatprep.mubr.f32.mxu0 %v3291
    %3509 = vmatmul.mubr.f32.gmra.mrb[0].mxu0 %v3290
    %v3510 = vpop.f32.mrb[0].mxu0
    %v3511 = vadd.f32 %v3298, %v3510
    %v3512 = vpop.f32.mrb[0].mxu0
    %v3513 = vadd.f32 %v3299, %v3512
    %3514 = vdwg.mxu0
    %3515 = vmatprep.subr.mxu0 %v1331
    %3516 = vmatpush1.msra.mxu0 %v1330
    %3517 = vmatprep.subr.mxu0 %v1339
    %3518 = vmatpush1.msra.mxu0 %v1338
    %3519 = vmatprep.subr.mxu0 %v1347
    %3520 = vmatpush1.msra.mxu0 %v1346
    %3521 = vmatprep.subr.mxu0 %v1355
    %3522 = vmatpush1.msra.mxu0 %v1354
    %3523 = vmatprep.subr.mxu0 %v1363
    %3524 = vmatpush1.msra.mxu0 %v1362
    %3525 = vmatprep.subr.mxu0 %v1371
    %3526 = vmatpush1.msra.mxu0 %v1370
    %3527 = vmatprep.subr.mxu0 %v1379
    %3528 = vmatpush1.msra.mxu0 %v1378
    %3529 = vmatprep.subr.mxu0 %v1387
    %3530 = vmatpush1.msra.mxu0 %v1386
    %3531 = vmatprep.subr.mxu0 %v1395
    %3532 = vmatpush1.msra.mxu0 %v1394
    %3533 = vmatprep.subr.mxu0 %v1403
    %3534 = vmatpush1.msra.mxu0 %v1402
    %3535 = vmatprep.subr.mxu0 %v1411
    %3536 = vmatpush1.msra.mxu0 %v1410
    %3537 = vmatprep.subr.mxu0 %v1419
    %3538 = vmatpush1.msra.mxu0 %v1418
    %3539 = vmatprep.subr.mxu0 %v1427
    %3540 = vmatpush1.msra.mxu0 %v1426
    %3541 = vmatprep.subr.mxu0 %v1435
    %3542 = vmatpush1.msra.mxu0 %v1434
    %3543 = vmatprep.subr.mxu0 %v1443
    %3544 = vmatpush1.msra.mxu0 %v1442
    %3545 = vmatprep.subr.mxu0 %v1451
    %3546 = vmatpush1.msra.mxu0 %v1450
    %3547 = vmatprep.subr.mxu0 %v1459
    %3548 = vmatpush1.msra.mxu0 %v1458
    %3549 = vmatprep.subr.mxu0 %v1467
    %3550 = vmatpush1.msra.mxu0 %v1466
    %3551 = vmatprep.subr.mxu0 %v1475
    %3552 = vmatpush1.msra.mxu0 %v1474
    %3553 = vmatprep.subr.mxu0 %v1483
    %3554 = vmatpush1.msra.mxu0 %v1482
    %3555 = vmatprep.subr.mxu0 %v1491
    %3556 = vmatpush1.msra.mxu0 %v1490
    %3557 = vmatprep.subr.mxu0 %v1499
    %3558 = vmatpush1.msra.mxu0 %v1498
    %3559 = vmatprep.subr.mxu0 %v1507
    %3560 = vmatpush1.msra.mxu0 %v1506
    %3561 = vmatprep.subr.mxu0 %v1515
    %3562 = vmatpush1.msra.mxu0 %v1514
    %3563 = vmatprep.subr.mxu0 %v1523
    %3564 = vmatpush1.msra.mxu0 %v1522
    %3565 = vmatprep.subr.mxu0 %v1531
    %3566 = vmatpush1.msra.mxu0 %v1530
    %3567 = vmatprep.subr.mxu0 %v1539
    %3568 = vmatpush1.msra.mxu0 %v1538
    %3569 = vmatprep.subr.mxu0 %v1547
    %3570 = vmatpush1.msra.mxu0 %v1546
    %3571 = vmatprep.subr.mxu0 %v1555
    %3572 = vmatpush1.msra.mxu0 %v1554
    %3573 = vmatprep.subr.mxu0 %v1563
    %3574 = vmatpush1.msra.mxu0 %v1562
    %3575 = vmatprep.subr.mxu0 %v1571
    %3576 = vmatpush1.msra.mxu0 %v1570
    %3577 = vmatprep.subr.mxu0 %v1579
    %3578 = vmatpush1.msra.mxu0 %v1578
    %3579 = vmatprep.mubr.f32.mxu0 %v3291
    %3580 = vmatmul.mubr.f32.gmra.mrb[0].mxu0 %v3290
    %v3581 = vpop.f32.mrb[0].mxu0
    %v3582 = vadd.f32 %v3300, %v3581
    %v3583 = vpop.f32.mrb[0].mxu0
    %v3584 = vadd.f32 %v3301, %v3583
    %3585 = vdwg.mxu0
    %v3586 = vxor.u32 %v3369, 2147483648
    %v3587 = vxor.u32 %v3371, 2147483648
    %v3588 = vmul.f32 %v3586, 1.442695
    %v3589 = vpow.pop %v3588
    %v3590 = vmul.f32 %v3587, 1.442695
    %v3591 = vpow.pop %v3590
    %v3592 = vadd.f32 %v3589, 1.0
    %v3593 = vadd.f32 %v3591, 1.0
    %v3594 = vrcp.pop %v3592
    %v3595 = vmul.f32 1.0, %v3594
    %v3596 = vrcp.pop %v3593
    %v3597 = vmul.f32 1.0, %v3596
    %v3598 = vxor.u32 %v3440, 2147483648
    %v3599 = vxor.u32 %v3442, 2147483648
    %v3600 = vmul.f32 %v3598, 1.442695
    %v3601 = vpow.pop %v3600
    %v3602 = vmul.f32 %v3599, 1.442695
    %v3603 = vpow.pop %v3602
    %v3604 = vadd.f32 %v3601, 1.0
    %v3605 = vadd.f32 %v3603, 1.0
    %v3606 = vrcp.pop %v3604
    %v3607 = vmul.f32 1.0, %v3606
    %v3608 = vrcp.pop %v3605
    %v3609 = vmul.f32 1.0, %v3608
    %v3610 = vtanh.pop %v3511
    %v3611 = vtanh.pop %v3513
    %v3612 = vxor.u32 %v3582, 2147483648
    %v3613 = vxor.u32 %v3584, 2147483648
    %v3614 = vmul.f32 %v3612, 1.442695
    %v3615 = vpow.pop %v3614
    %v3616 = vmul.f32 %v3613, 1.442695
    %v3617 = vpow.pop %v3616
    %v3618 = vadd.f32 %v3615, 1.0
    %v3619 = vadd.f32 %v3617, 1.0
    %v3620 = vrcp.pop %v3618
    %v3621 = vmul.f32 1.0, %v3620
    %v3622 = vrcp.pop %v3619
    %v3623 = vmul.f32 1.0, %v3622
    %v3624 = vmul.f32 %v3607, %v3286
    %v3625 = vmul.f32 %v3609, %v3287
    %v3626 = vmul.f32 %v3595, %v3610
    %v3627 = vmul.f32 %v3597, %v3611
    %v3628 = vadd.f32 %v3624, %v3626
    %v3629 = vadd.f32 %v3625, %v3627
    %v3630 = vtanh.pop %v3628
    %v3631 = vtanh.pop %v3629
    %v3632 = vmul.f32 %v3621, %v3630
    %v3633 = vmul.f32 %v3623, %v3631
    %3634 = vst [vmem:[#allocation3 + $0x50] sm:$0xff] %v3632
    %3635 = vst [vmem:[#allocation3 + $0x28] sm:$0xff] %v3633
    %v3636 = vld [vmem:[#allocation2 + $0x180] sm:$0xff]
    %v3637 = vld [vmem:[#allocation2 + $0x188] sm:$0xff]
    %v3638 = vld [vmem:[#allocation2 + $0x190] sm:$0xff]
    %v3639 = vld [vmem:[#allocation2 + $0x198] sm:$0xff]
    %v3640 = vld [vmem:[#allocation2 + $0x1a0] sm:$0xff]
    %v3641 = vld [vmem:[#allocation2 + $0x1a8] sm:$0xff]
    %v3642 = vld [vmem:[#allocation2 + $0x1b0] sm:$0xff]
    %v3643 = vld [vmem:[#allocation2 + $0x1b8] sm:$0xff]
    %3644 = vmatprep.subr.mxu0 %v1325
    %3645 = vmatpush1.msra.mxu0 %v1324
    %3646 = vmatprep.subr.mxu0 %v1333
    %3647 = vmatpush1.msra.mxu0 %v1332
    %3648 = vmatprep.subr.mxu0 %v1341
    %3649 = vmatpush1.msra.mxu0 %v1340
    %3650 = vmatprep.subr.mxu0 %v1349
    %3651 = vmatpush1.msra.mxu0 %v1348
    %3652 = vmatprep.subr.mxu0 %v1357
    %3653 = vmatpush1.msra.mxu0 %v1356
    %3654 = vmatprep.subr.mxu0 %v1365
    %3655 = vmatpush1.msra.mxu0 %v1364
    %3656 = vmatprep.subr.mxu0 %v1373
    %3657 = vmatpush1.msra.mxu0 %v1372
    %3658 = vmatprep.subr.mxu0 %v1381
    %3659 = vmatpush1.msra.mxu0 %v1380
    %3660 = vmatprep.subr.mxu0 %v1389
    %3661 = vmatpush1.msra.mxu0 %v1388
    %3662 = vmatprep.subr.mxu0 %v1397
    %3663 = vmatpush1.msra.mxu0 %v1396
    %3664 = vmatprep.subr.mxu0 %v1405
    %3665 = vmatpush1.msra.mxu0 %v1404
    %3666 = vmatprep.subr.mxu0 %v1413
    %3667 = vmatpush1.msra.mxu0 %v1412
    %3668 = vmatprep.subr.mxu0 %v1421
    %3669 = vmatpush1.msra.mxu0 %v1420
    %3670 = vmatprep.subr.mxu0 %v1429
    %3671 = vmatpush1.msra.mxu0 %v1428
    %3672 = vmatprep.subr.mxu0 %v1437
    %3673 = vmatpush1.msra.mxu0 %v1436
    %3674 = vmatprep.subr.mxu0 %v1445
    %3675 = vmatpush1.msra.mxu0 %v1444
    %3676 = vmatprep.subr.mxu0 %v1453
    %3677 = vmatpush1.msra.mxu0 %v1452
    %3678 = vmatprep.subr.mxu0 %v1461
    %3679 = vmatpush1.msra.mxu0 %v1460
    %3680 = vmatprep.subr.mxu0 %v1469
    %3681 = vmatpush1.msra.mxu0 %v1468
    %3682 = vmatprep.subr.mxu0 %v1477
    %3683 = vmatpush1.msra.mxu0 %v1476
    %3684 = vmatprep.subr.mxu0 %v1485
    %3685 = vmatpush1.msra.mxu0 %v1484
    %3686 = vmatprep.subr.mxu0 %v1493
    %3687 = vmatpush1.msra.mxu0 %v1492
    %3688 = vmatprep.subr.mxu0 %v1501
    %3689 = vmatpush1.msra.mxu0 %v1500
    %3690 = vmatprep.subr.mxu0 %v1509
    %3691 = vmatpush1.msra.mxu0 %v1508
    %3692 = vmatprep.subr.mxu0 %v1517
    %3693 = vmatpush1.msra.mxu0 %v1516
    %3694 = vmatprep.subr.mxu0 %v1525
    %3695 = vmatpush1.msra.mxu0 %v1524
    %3696 = vmatprep.subr.mxu0 %v1533
    %3697 = vmatpush1.msra.mxu0 %v1532
    %3698 = vmatprep.subr.mxu0 %v1541
    %3699 = vmatpush1.msra.mxu0 %v1540
    %3700 = vmatprep.subr.mxu0 %v1549
    %3701 = vmatpush1.msra.mxu0 %v1548
    %3702 = vmatprep.subr.mxu0 %v1557
    %3703 = vmatpush1.msra.mxu0 %v1556
    %3704 = vmatprep.subr.mxu0 %v1565
    %3705 = vmatpush1.msra.mxu0 %v1564
    %3706 = vmatprep.subr.mxu0 %v1573
    %3707 = vmatpush1.msra.mxu0 %v1572
    %3708 = vmatprep.mubr.f32.mxu0 %v3633
    %3709 = vmatmul.mubr.f32.gmra.mrb[0].mxu0 %v3632
    %v3710 = vpop.f32.mrb[0].mxu0
    %v3711 = vadd.f32 %v3636, %v3710
    %v3712 = vpop.f32.mrb[0].mxu0
    %v3713 = vadd.f32 %v3637, %v3712
    %3714 = vdwg.mxu0
    %3715 = vmatprep.subr.mxu0 %v1327
    %3716 = vmatpush1.msra.mxu0 %v1326
    %3717 = vmatprep.subr.mxu0 %v1335
    %3718 = vmatpush1.msra.mxu0 %v1334
    %3719 = vmatprep.subr.mxu0 %v1343
    %3720 = vmatpush1.msra.mxu0 %v1342
    %3721 = vmatprep.subr.mxu0 %v1351
    %3722 = vmatpush1.msra.mxu0 %v1350
    %3723 = vmatprep.subr.mxu0 %v1359
    %3724 = vmatpush1.msra.mxu0 %v1358
    %3725 = vmatprep.subr.mxu0 %v1367
    %3726 = vmatpush1.msra.mxu0 %v1366
    %3727 = vmatprep.subr.mxu0 %v1375
    %3728 = vmatpush1.msra.mxu0 %v1374
    %3729 = vmatprep.subr.mxu0 %v1383
    %3730 = vmatpush1.msra.mxu0 %v1382
    %3731 = vmatprep.subr.mxu0 %v1391
    %3732 = vmatpush1.msra.mxu0 %v1390
    %3733 = vmatprep.subr.mxu0 %v1399
    %3734 = vmatpush1.msra.mxu0 %v1398
    %3735 = vmatprep.subr.mxu0 %v1407
    %3736 = vmatpush1.msra.mxu0 %v1406
    %3737 = vmatprep.subr.mxu0 %v1415
    %3738 = vmatpush1.msra.mxu0 %v1414
    %3739 = vmatprep.subr.mxu0 %v1423
    %3740 = vmatpush1.msra.mxu0 %v1422
    %3741 = vmatprep.subr.mxu0 %v1431
    %3742 = vmatpush1.msra.mxu0 %v1430
    %3743 = vmatprep.subr.mxu0 %v1439
    %3744 = vmatpush1.msra.mxu0 %v1438
    %3745 = vmatprep.subr.mxu0 %v1447
    %3746 = vmatpush1.msra.mxu0 %v1446
    %3747 = vmatprep.subr.mxu0 %v1455
    %3748 = vmatpush1.msra.mxu0 %v1454
    %3749 = vmatprep.subr.mxu0 %v1463
    %3750 = vmatpush1.msra.mxu0 %v1462
    %3751 = vmatprep.subr.mxu0 %v1471
    %3752 = vmatpush1.msra.mxu0 %v1470
    %3753 = vmatprep.subr.mxu0 %v1479
    %3754 = vmatpush1.msra.mxu0 %v1478
    %3755 = vmatprep.subr.mxu0 %v1487
    %3756 = vmatpush1.msra.mxu0 %v1486
    %3757 = vmatprep.subr.mxu0 %v1495
    %3758 = vmatpush1.msra.mxu0 %v1494
    %3759 = vmatprep.subr.mxu0 %v1503
    %3760 = vmatpush1.msra.mxu0 %v1502
    %3761 = vmatprep.subr.mxu0 %v1511
    %3762 = vmatpush1.msra.mxu0 %v1510
    %3763 = vmatprep.subr.mxu0 %v1519
    %3764 = vmatpush1.msra.mxu0 %v1518
    %3765 = vmatprep.subr.mxu0 %v1527
    %3766 = vmatpush1.msra.mxu0 %v1526
    %3767 = vmatprep.subr.mxu0 %v1535
    %3768 = vmatpush1.msra.mxu0 %v1534
    %3769 = vmatprep.subr.mxu0 %v1543
    %3770 = vmatpush1.msra.mxu0 %v1542
    %3771 = vmatprep.subr.mxu0 %v1551
    %3772 = vmatpush1.msra.mxu0 %v1550
    %3773 = vmatprep.subr.mxu0 %v1559
    %3774 = vmatpush1.msra.mxu0 %v1558
    %3775 = vmatprep.subr.mxu0 %v1567
    %3776 = vmatpush1.msra.mxu0 %v1566
    %3777 = vmatprep.subr.mxu0 %v1575
    %3778 = vmatpush1.msra.mxu0 %v1574
    %3779 = vmatprep.mubr.f32.mxu0 %v3633
    %3780 = vmatmul.mubr.f32.gmra.mrb[0].mxu0 %v3632
    %v3781 = vpop.f32.mrb[0].mxu0
    %v3782 = vadd.f32 %v3638, %v3781
    %v3783 = vpop.f32.mrb[0].mxu0
    %v3784 = vadd.f32 %v3639, %v3783
    %3785 = vdwg.mxu0
    %3786 = vmatprep.subr.mxu0 %v1329
    %3787 = vmatpush1.msra.mxu0 %v1328
    %3788 = vmatprep.subr.mxu0 %v1337
    %3789 = vmatpush1.msra.mxu0 %v1336
    %3790 = vmatprep.subr.mxu0 %v1345
    %3791 = vmatpush1.msra.mxu0 %v1344
    %3792 = vmatprep.subr.mxu0 %v1353
    %3793 = vmatpush1.msra.mxu0 %v1352
    %3794 = vmatprep.subr.mxu0 %v1361
    %3795 = vmatpush1.msra.mxu0 %v1360
    %3796 = vmatprep.subr.mxu0 %v1369
    %3797 = vmatpush1.msra.mxu0 %v1368
    %3798 = vmatprep.subr.mxu0 %v1377
    %3799 = vmatpush1.msra.mxu0 %v1376
    %3800 = vmatprep.subr.mxu0 %v1385
    %3801 = vmatpush1.msra.mxu0 %v1384
    %3802 = vmatprep.subr.mxu0 %v1393
    %3803 = vmatpush1.msra.mxu0 %v1392
    %3804 = vmatprep.subr.mxu0 %v1401
    %3805 = vmatpush1.msra.mxu0 %v1400
    %3806 = vmatprep.subr.mxu0 %v1409
    %3807 = vmatpush1.msra.mxu0 %v1408
    %3808 = vmatprep.subr.mxu0 %v1417
    %3809 = vmatpush1.msra.mxu0 %v1416
    %3810 = vmatprep.subr.mxu0 %v1425
    %3811 = vmatpush1.msra.mxu0 %v1424
    %3812 = vmatprep.subr.mxu0 %v1433
    %3813 = vmatpush1.msra.mxu0 %v1432
    %3814 = vmatprep.subr.mxu0 %v1441
    %3815 = vmatpush1.msra.mxu0 %v1440
    %3816 = vmatprep.subr.mxu0 %v1449
    %3817 = vmatpush1.msra.mxu0 %v1448
    %3818 = vmatprep.subr.mxu0 %v1457
    %3819 = vmatpush1.msra.mxu0 %v1456
    %3820 = vmatprep.subr.mxu0 %v1465
    %3821 = vmatpush1.msra.mxu0 %v1464
    %3822 = vmatprep.subr.mxu0 %v1473
    %3823 = vmatpush1.msra.mxu0 %v1472
    %3824 = vmatprep.subr.mxu0 %v1481
    %3825 = vmatpush1.msra.mxu0 %v1480
    %3826 = vmatprep.subr.mxu0 %v1489
    %3827 = vmatpush1.msra.mxu0 %v1488
    %3828 = vmatprep.subr.mxu0 %v1497
    %3829 = vmatpush1.msra.mxu0 %v1496
    %3830 = vmatprep.subr.mxu0 %v1505
    %3831 = vmatpush1.msra.mxu0 %v1504
    %3832 = vmatprep.subr.mxu0 %v1513
    %3833 = vmatpush1.msra.mxu0 %v1512
    %3834 = vmatprep.subr.mxu0 %v1521
    %3835 = vmatpush1.msra.mxu0 %v1520
    %3836 = vmatprep.subr.mxu0 %v1529
    %3837 = vmatpush1.msra.mxu0 %v1528
    %3838 = vmatprep.subr.mxu0 %v1537
    %3839 = vmatpush1.msra.mxu0 %v1536
    %3840 = vmatprep.subr.mxu0 %v1545
    %3841 = vmatpush1.msra.mxu0 %v1544
    %3842 = vmatprep.subr.mxu0 %v1553
    %3843 = vmatpush1.msra.mxu0 %v1552
    %3844 = vmatprep.subr.mxu0 %v1561
    %3845 = vmatpush1.msra.mxu0 %v1560
    %3846 = vmatprep.subr.mxu0 %v1569
    %3847 = vmatpush1.msra.mxu0 %v1568
    %3848 = vmatprep.subr.mxu0 %v1577
    %3849 = vmatpush1.msra.mxu0 %v1576
    %3850 = vmatprep.mubr.f32.mxu0 %v3633
    %3851 = vmatmul.mubr.f32.gmra.mrb[0].mxu0 %v3632
    %v3852 = vpop.f32.mrb[0].mxu0
    %v3853 = vadd.f32 %v3640, %v3852
    %v3854 = vpop.f32.mrb[0].mxu0
    %v3855 = vadd.f32 %v3641, %v3854
    %3856 = vdwg.mxu0
    %3857 = vmatprep.subr.mxu0 %v1331
    %3858 = vmatpush1.msra.mxu0 %v1330
    %3859 = vmatprep.subr.mxu0 %v1339
    %3860 = vmatpush1.msra.mxu0 %v1338
    %3861 = vmatprep.subr.mxu0 %v1347
    %3862 = vmatpush1.msra.mxu0 %v1346
    %3863 = vmatprep.subr.mxu0 %v1355
    %3864 = vmatpush1.msra.mxu0 %v1354
    %3865 = vmatprep.subr.mxu0 %v1363
    %3866 = vmatpush1.msra.mxu0 %v1362
    %3867 = vmatprep.subr.mxu0 %v1371
    %3868 = vmatpush1.msra.mxu0 %v1370
    %3869 = vmatprep.subr.mxu0 %v1379
    %3870 = vmatpush1.msra.mxu0 %v1378
    %3871 = vmatprep.subr.mxu0 %v1387
    %3872 = vmatpush1.msra.mxu0 %v1386
    %3873 = vmatprep.subr.mxu0 %v1395
    %3874 = vmatpush1.msra.mxu0 %v1394
    %3875 = vmatprep.subr.mxu0 %v1403
    %3876 = vmatpush1.msra.mxu0 %v1402
    %3877 = vmatprep.subr.mxu0 %v1411
    %3878 = vmatpush1.msra.mxu0 %v1410
    %3879 = vmatprep.subr.mxu0 %v1419
    %3880 = vmatpush1.msra.mxu0 %v1418
    %3881 = vmatprep.subr.mxu0 %v1427
    %3882 = vmatpush1.msra.mxu0 %v1426
    %3883 = vmatprep.subr.mxu0 %v1435
    %3884 = vmatpush1.msra.mxu0 %v1434
    %3885 = vmatprep.subr.mxu0 %v1443
    %3886 = vmatpush1.msra.mxu0 %v1442
    %3887 = vmatprep.subr.mxu0 %v1451
    %3888 = vmatpush1.msra.mxu0 %v1450
    %3889 = vmatprep.subr.mxu0 %v1459
    %3890 = vmatpush1.msra.mxu0 %v1458
    %3891 = vmatprep.subr.mxu0 %v1467
    %3892 = vmatpush1.msra.mxu0 %v1466
    %3893 = vmatprep.subr.mxu0 %v1475
    %3894 = vmatpush1.msra.mxu0 %v1474
    %3895 = vmatprep.subr.mxu0 %v1483
    %3896 = vmatpush1.msra.mxu0 %v1482
    %3897 = vmatprep.subr.mxu0 %v1491
    %3898 = vmatpush1.msra.mxu0 %v1490
    %3899 = vmatprep.subr.mxu0 %v1499
    %3900 = vmatpush1.msra.mxu0 %v1498
    %3901 = vmatprep.subr.mxu0 %v1507
    %3902 = vmatpush1.msra.mxu0 %v1506
    %3903 = vmatprep.subr.mxu0 %v1515
    %3904 = vmatpush1.msra.mxu0 %v1514
    %3905 = vmatprep.subr.mxu0 %v1523
    %3906 = vmatpush1.msra.mxu0 %v1522
    %3907 = vmatprep.subr.mxu0 %v1531
    %3908 = vmatpush1.msra.mxu0 %v1530
    %3909 = vmatprep.subr.mxu0 %v1539
    %3910 = vmatpush1.msra.mxu0 %v1538
    %3911 = vmatprep.subr.mxu0 %v1547
    %3912 = vmatpush1.msra.mxu0 %v1546
    %3913 = vmatprep.subr.mxu0 %v1555
    %3914 = vmatpush1.msra.mxu0 %v1554
    %3915 = vmatprep.subr.mxu0 %v1563
    %3916 = vmatpush1.msra.mxu0 %v1562
    %3917 = vmatprep.subr.mxu0 %v1571
    %3918 = vmatpush1.msra.mxu0 %v1570
    %3919 = vmatprep.subr.mxu0 %v1579
    %3920 = vmatpush1.msra.mxu0 %v1578
    %3921 = vmatprep.mubr.f32.mxu0 %v3633
    %3922 = vmatmul.mubr.f32.gmra.mrb[0].mxu0 %v3632
    %v3923 = vpop.f32.mrb[0].mxu0
    %v3924 = vadd.f32 %v3642, %v3923
    %v3925 = vpop.f32.mrb[0].mxu0
    %v3926 = vadd.f32 %v3643, %v3925
    %3927 = vdwg.mxu0
    %v3928 = vxor.u32 %v3711, 2147483648
    %v3929 = vxor.u32 %v3713, 2147483648
    %v3930 = vmul.f32 %v3928, 1.442695
    %v3931 = vpow.pop %v3930
    %v3932 = vmul.f32 %v3929, 1.442695
    %v3933 = vpow.pop %v3932
    %v3934 = vadd.f32 %v3931, 1.0
    %v3935 = vadd.f32 %v3933, 1.0
    %v3936 = vrcp.pop %v3934
    %v3937 = vmul.f32 1.0, %v3936
    %v3938 = vrcp.pop %v3935
    %v3939 = vmul.f32 1.0, %v3938
    %v3940 = vxor.u32 %v3782, 2147483648
    %v3941 = vxor.u32 %v3784, 2147483648
    %v3942 = vmul.f32 %v3940, 1.442695
    %v3943 = vpow.pop %v3942
    %v3944 = vmul.f32 %v3941, 1.442695
    %v3945 = vpow.pop %v3944
    %v3946 = vadd.f32 %v3943, 1.0
    %v3947 = vadd.f32 %v3945, 1.0
    %v3948 = vrcp.pop %v3946
    %v3949 = vmul.f32 1.0, %v3948
    %v3950 = vrcp.pop %v3947
    %v3951 = vmul.f32 1.0, %v3950
    %v3952 = vtanh.pop %v3853
    %v3953 = vtanh.pop %v3855
    %v3954 = vxor.u32 %v3924, 2147483648
    %v3955 = vxor.u32 %v3926, 2147483648
    %v3956 = vmul.f32 %v3954, 1.442695
    %v3957 = vpow.pop %v3956
    %v3958 = vmul.f32 %v3955, 1.442695
    %v3959 = vpow.pop %v3958
    %v3960 = vadd.f32 %v3957, 1.0
    %v3961 = vadd.f32 %v3959, 1.0
    %v3962 = vrcp.pop %v3960
    %v3963 = vmul.f32 1.0, %v3962
    %v3964 = vrcp.pop %v3961
    %v3965 = vmul.f32 1.0, %v3964
    %v3966 = vmul.f32 %v3949, %v3628
    %v3967 = vmul.f32 %v3951, %v3629
    %v3968 = vmul.f32 %v3937, %v3952
    %v3969 = vmul.f32 %v3939, %v3953
    %v3970 = vadd.f32 %v3966, %v3968
    %v3971 = vadd.f32 %v3967, %v3969
    %v3972 = vtanh.pop %v3970
    %v3973 = vtanh.pop %v3971
    %v3974 = vmul.f32 %v3963, %v3972
    %v3975 = vmul.f32 %v3965, %v3973
    %3976 = vst [vmem:[#allocation3 + $0x60] sm:$0xff] %v3974
    %3977 = vst [vmem:[#allocation3 + $0x18] sm:$0xff] %v3975
    %v3978 = vld [vmem:[#allocation2 + $0x1c0] sm:$0xff]
    %v3979 = vld [vmem:[#allocation2 + $0x1c8] sm:$0xff]
    %v3980 = vld [vmem:[#allocation2 + $0x1d0] sm:$0xff]
    %v3981 = vld [vmem:[#allocation2 + $0x1d8] sm:$0xff]
    %v3982 = vld [vmem:[#allocation2 + $0x1e0] sm:$0xff]
    %v3983 = vld [vmem:[#allocation2 + $0x1e8] sm:$0xff]
    %v3984 = vld [vmem:[#allocation2 + $0x1f0] sm:$0xff]
    %v3985 = vld [vmem:[#allocation2 + $0x1f8] sm:$0xff]
    %3986 = vmatprep.subr.mxu0 %v1325
    %3987 = vmatpush1.msra.mxu0 %v1324
    %3988 = vmatprep.subr.mxu0 %v1333
    %3989 = vmatpush1.msra.mxu0 %v1332
    %3990 = vmatprep.subr.mxu0 %v1341
    %3991 = vmatpush1.msra.mxu0 %v1340
    %3992 = vmatprep.subr.mxu0 %v1349
    %3993 = vmatpush1.msra.mxu0 %v1348
    %3994 = vmatprep.subr.mxu0 %v1357
    %3995 = vmatpush1.msra.mxu0 %v1356
    %3996 = vmatprep.subr.mxu0 %v1365
    %3997 = vmatpush1.msra.mxu0 %v1364
    %3998 = vmatprep.subr.mxu0 %v1373
    %3999 = vmatpush1.msra.mxu0 %v1372
    %4000 = vmatprep.subr.mxu0 %v1381
    %4001 = vmatpush1.msra.mxu0 %v1380
    %4002 = vmatprep.subr.mxu0 %v1389
    %4003 = vmatpush1.msra.mxu0 %v1388
    %4004 = vmatprep.subr.mxu0 %v1397
    %4005 = vmatpush1.msra.mxu0 %v1396
    %4006 = vmatprep.subr.mxu0 %v1405
    %4007 = vmatpush1.msra.mxu0 %v1404
    %4008 = vmatprep.subr.mxu0 %v1413
    %4009 = vmatpush1.msra.mxu0 %v1412
    %4010 = vmatprep.subr.mxu0 %v1421
    %4011 = vmatpush1.msra.mxu0 %v1420
    %4012 = vmatprep.subr.mxu0 %v1429
    %4013 = vmatpush1.msra.mxu0 %v1428
    %4014 = vmatprep.subr.mxu0 %v1437
    %4015 = vmatpush1.msra.mxu0 %v1436
    %4016 = vmatprep.subr.mxu0 %v1445
    %4017 = vmatpush1.msra.mxu0 %v1444
    %4018 = vmatprep.subr.mxu0 %v1453
    %4019 = vmatpush1.msra.mxu0 %v1452
    %4020 = vmatprep.subr.mxu0 %v1461
    %4021 = vmatpush1.msra.mxu0 %v1460
    %4022 = vmatprep.subr.mxu0 %v1469
    %4023 = vmatpush1.msra.mxu0 %v1468
    %4024 = vmatprep.subr.mxu0 %v1477
    %4025 = vmatpush1.msra.mxu0 %v1476
    %4026 = vmatprep.subr.mxu0 %v1485
    %4027 = vmatpush1.msra.mxu0 %v1484
    %4028 = vmatprep.subr.mxu0 %v1493
    %4029 = vmatpush1.msra.mxu0 %v1492
    %4030 = vmatprep.subr.mxu0 %v1501
    %4031 = vmatpush1.msra.mxu0 %v1500
    %4032 = vmatprep.subr.mxu0 %v1509
    %4033 = vmatpush1.msra.mxu0 %v1508
    %4034 = vmatprep.subr.mxu0 %v1517
    %4035 = vmatpush1.msra.mxu0 %v1516
    %4036 = vmatprep.subr.mxu0 %v1525
    %4037 = vmatpush1.msra.mxu0 %v1524
    %4038 = vmatprep.subr.mxu0 %v1533
    %4039 = vmatpush1.msra.mxu0 %v1532
    %4040 = vmatprep.subr.mxu0 %v1541
    %4041 = vmatpush1.msra.mxu0 %v1540
    %4042 = vmatprep.subr.mxu0 %v1549
    %4043 = vmatpush1.msra.mxu0 %v1548
    %4044 = vmatprep.subr.mxu0 %v1557
    %4045 = vmatpush1.msra.mxu0 %v1556
    %4046 = vmatprep.subr.mxu0 %v1565
    %4047 = vmatpush1.msra.mxu0 %v1564
    %4048 = vmatprep.subr.mxu0 %v1573
    %4049 = vmatpush1.msra.mxu0 %v1572
    %4050 = vmatprep.mubr.f32.mxu0 %v3975
    %4051 = vmatmul.mubr.f32.gmra.mrb[0].mxu0 %v3974
    %v4052 = vpop.f32.mrb[0].mxu0
    %v4053 = vadd.f32 %v3978, %v4052
    %v4054 = vpop.f32.mrb[0].mxu0
    %v4055 = vadd.f32 %v3979, %v4054
    %4056 = vdwg.mxu0
    %4057 = vmatprep.subr.mxu0 %v1327
    %4058 = vmatpush1.msra.mxu0 %v1326
    %4059 = vmatprep.subr.mxu0 %v1335
    %4060 = vmatpush1.msra.mxu0 %v1334
    %4061 = vmatprep.subr.mxu0 %v1343
    %4062 = vmatpush1.msra.mxu0 %v1342
    %4063 = vmatprep.subr.mxu0 %v1351
    %4064 = vmatpush1.msra.mxu0 %v1350
    %4065 = vmatprep.subr.mxu0 %v1359
    %4066 = vmatpush1.msra.mxu0 %v1358
    %4067 = vmatprep.subr.mxu0 %v1367
    %4068 = vmatpush1.msra.mxu0 %v1366
    %4069 = vmatprep.subr.mxu0 %v1375
    %4070 = vmatpush1.msra.mxu0 %v1374
    %4071 = vmatprep.subr.mxu0 %v1383
    %4072 = vmatpush1.msra.mxu0 %v1382
    %4073 = vmatprep.subr.mxu0 %v1391
    %4074 = vmatpush1.msra.mxu0 %v1390
    %4075 = vmatprep.subr.mxu0 %v1399
    %4076 = vmatpush1.msra.mxu0 %v1398
    %4077 = vmatprep.subr.mxu0 %v1407
    %4078 = vmatpush1.msra.mxu0 %v1406
    %4079 = vmatprep.subr.mxu0 %v1415
    %4080 = vmatpush1.msra.mxu0 %v1414
    %4081 = vmatprep.subr.mxu0 %v1423
    %4082 = vmatpush1.msra.mxu0 %v1422
    %4083 = vmatprep.subr.mxu0 %v1431
    %4084 = vmatpush1.msra.mxu0 %v1430
    %4085 = vmatprep.subr.mxu0 %v1439
    %4086 = vmatpush1.msra.mxu0 %v1438
    %4087 = vmatprep.subr.mxu0 %v1447
    %4088 = vmatpush1.msra.mxu0 %v1446
    %4089 = vmatprep.subr.mxu0 %v1455
    %4090 = vmatpush1.msra.mxu0 %v1454
    %4091 = vmatprep.subr.mxu0 %v1463
    %4092 = vmatpush1.msra.mxu0 %v1462
    %4093 = vmatprep.subr.mxu0 %v1471
    %4094 = vmatpush1.msra.mxu0 %v1470
    %4095 = vmatprep.subr.mxu0 %v1479
    %4096 = vmatpush1.msra.mxu0 %v1478
    %4097 = vmatprep.subr.mxu0 %v1487
    %4098 = vmatpush1.msra.mxu0 %v1486
    %4099 = vmatprep.subr.mxu0 %v1495
    %4100 = vmatpush1.msra.mxu0 %v1494
    %4101 = vmatprep.subr.mxu0 %v1503
    %4102 = vmatpush1.msra.mxu0 %v1502
    %4103 = vmatprep.subr.mxu0 %v1511
    %4104 = vmatpush1.msra.mxu0 %v1510
    %4105 = vmatprep.subr.mxu0 %v1519
    %4106 = vmatpush1.msra.mxu0 %v1518
    %4107 = vmatprep.subr.mxu0 %v1527
    %4108 = vmatpush1.msra.mxu0 %v1526
    %4109 = vmatprep.subr.mxu0 %v1535
    %4110 = vmatpush1.msra.mxu0 %v1534
    %4111 = vmatprep.subr.mxu0 %v1543
    %4112 = vmatpush1.msra.mxu0 %v1542
    %4113 = vmatprep.subr.mxu0 %v1551
    %4114 = vmatpush1.msra.mxu0 %v1550
    %4115 = vmatprep.subr.mxu0 %v1559
    %4116 = vmatpush1.msra.mxu0 %v1558
    %4117 = vmatprep.subr.mxu0 %v1567
    %4118 = vmatpush1.msra.mxu0 %v1566
    %4119 = vmatprep.subr.mxu0 %v1575
    %4120 = vmatpush1.msra.mxu0 %v1574
    %4121 = vmatprep.mubr.f32.mxu0 %v3975
    %4122 = vmatmul.mubr.f32.gmra.mrb[0].mxu0 %v3974
    %v4123 = vpop.f32.mrb[0].mxu0
    %v4124 = vadd.f32 %v3980, %v4123
    %v4125 = vpop.f32.mrb[0].mxu0
    %v4126 = vadd.f32 %v3981, %v4125
    %4127 = vdwg.mxu0
    %4128 = vmatprep.subr.mxu0 %v1329
    %4129 = vmatpush1.msra.mxu0 %v1328
    %4130 = vmatprep.subr.mxu0 %v1337
    %4131 = vmatpush1.msra.mxu0 %v1336
    %4132 = vmatprep.subr.mxu0 %v1345
    %4133 = vmatpush1.msra.mxu0 %v1344
    %4134 = vmatprep.subr.mxu0 %v1353
    %4135 = vmatpush1.msra.mxu0 %v1352
    %4136 = vmatprep.subr.mxu0 %v1361
    %4137 = vmatpush1.msra.mxu0 %v1360
    %4138 = vmatprep.subr.mxu0 %v1369
    %4139 = vmatpush1.msra.mxu0 %v1368
    %4140 = vmatprep.subr.mxu0 %v1377
    %4141 = vmatpush1.msra.mxu0 %v1376
    %4142 = vmatprep.subr.mxu0 %v1385
    %4143 = vmatpush1.msra.mxu0 %v1384
    %4144 = vmatprep.subr.mxu0 %v1393
    %4145 = vmatpush1.msra.mxu0 %v1392
    %4146 = vmatprep.subr.mxu0 %v1401
    %4147 = vmatpush1.msra.mxu0 %v1400
    %4148 = vmatprep.subr.mxu0 %v1409
    %4149 = vmatpush1.msra.mxu0 %v1408
    %4150 = vmatprep.subr.mxu0 %v1417
    %4151 = vmatpush1.msra.mxu0 %v1416
    %4152 = vmatprep.subr.mxu0 %v1425
    %4153 = vmatpush1.msra.mxu0 %v1424
    %4154 = vmatprep.subr.mxu0 %v1433
    %4155 = vmatpush1.msra.mxu0 %v1432
    %4156 = vmatprep.subr.mxu0 %v1441
    %4157 = vmatpush1.msra.mxu0 %v1440
    %4158 = vmatprep.subr.mxu0 %v1449
    %4159 = vmatpush1.msra.mxu0 %v1448
    %4160 = vmatprep.subr.mxu0 %v1457
    %4161 = vmatpush1.msra.mxu0 %v1456
    %4162 = vmatprep.subr.mxu0 %v1465
    %4163 = vmatpush1.msra.mxu0 %v1464
    %4164 = vmatprep.subr.mxu0 %v1473
    %4165 = vmatpush1.msra.mxu0 %v1472
    %4166 = vmatprep.subr.mxu0 %v1481
    %4167 = vmatpush1.msra.mxu0 %v1480
    %4168 = vmatprep.subr.mxu0 %v1489
    %4169 = vmatpush1.msra.mxu0 %v1488
    %4170 = vmatprep.subr.mxu0 %v1497
    %4171 = vmatpush1.msra.mxu0 %v1496
    %4172 = vmatprep.subr.mxu0 %v1505
    %4173 = vmatpush1.msra.mxu0 %v1504
    %4174 = vmatprep.subr.mxu0 %v1513
    %4175 = vmatpush1.msra.mxu0 %v1512
    %4176 = vmatprep.subr.mxu0 %v1521
    %4177 = vmatpush1.msra.mxu0 %v1520
    %4178 = vmatprep.subr.mxu0 %v1529
    %4179 = vmatpush1.msra.mxu0 %v1528
    %4180 = vmatprep.subr.mxu0 %v1537
    %4181 = vmatpush1.msra.mxu0 %v1536
    %4182 = vmatprep.subr.mxu0 %v1545
    %4183 = vmatpush1.msra.mxu0 %v1544
    %4184 = vmatprep.subr.mxu0 %v1553
    %4185 = vmatpush1.msra.mxu0 %v1552
    %4186 = vmatprep.subr.mxu0 %v1561
    %4187 = vmatpush1.msra.mxu0 %v1560
    %4188 = vmatprep.subr.mxu0 %v1569
    %4189 = vmatpush1.msra.mxu0 %v1568
    %4190 = vmatprep.subr.mxu0 %v1577
    %4191 = vmatpush1.msra.mxu0 %v1576
    %4192 = vmatprep.mubr.f32.mxu0 %v3975
    %4193 = vmatmul.mubr.f32.gmra.mrb[0].mxu0 %v3974
    %v4194 = vpop.f32.mrb[0].mxu0
    %v4195 = vadd.f32 %v3982, %v4194
    %v4196 = vpop.f32.mrb[0].mxu0
    %v4197 = vadd.f32 %v3983, %v4196
    %4198 = vdwg.mxu0
    %4199 = vmatprep.subr.mxu0 %v1331
    %4200 = vmatpush1.msra.mxu0 %v1330
    %4201 = vmatprep.subr.mxu0 %v1339
    %4202 = vmatpush1.msra.mxu0 %v1338
    %4203 = vmatprep.subr.mxu0 %v1347
    %4204 = vmatpush1.msra.mxu0 %v1346
    %4205 = vmatprep.subr.mxu0 %v1355
    %4206 = vmatpush1.msra.mxu0 %v1354
    %4207 = vmatprep.subr.mxu0 %v1363
    %4208 = vmatpush1.msra.mxu0 %v1362
    %4209 = vmatprep.subr.mxu0 %v1371
    %4210 = vmatpush1.msra.mxu0 %v1370
    %4211 = vmatprep.subr.mxu0 %v1379
    %4212 = vmatpush1.msra.mxu0 %v1378
    %4213 = vmatprep.subr.mxu0 %v1387
    %4214 = vmatpush1.msra.mxu0 %v1386
    %4215 = vmatprep.subr.mxu0 %v1395
    %4216 = vmatpush1.msra.mxu0 %v1394
    %4217 = vmatprep.subr.mxu0 %v1403
    %4218 = vmatpush1.msra.mxu0 %v1402
    %4219 = vmatprep.subr.mxu0 %v1411
    %4220 = vmatpush1.msra.mxu0 %v1410
    %4221 = vmatprep.subr.mxu0 %v1419
    %4222 = vmatpush1.msra.mxu0 %v1418
    %4223 = vmatprep.subr.mxu0 %v1427
    %4224 = vmatpush1.msra.mxu0 %v1426
    %4225 = vmatprep.subr.mxu0 %v1435
    %4226 = vmatpush1.msra.mxu0 %v1434
    %4227 = vmatprep.subr.mxu0 %v1443
    %4228 = vmatpush1.msra.mxu0 %v1442
    %4229 = vmatprep.subr.mxu0 %v1451
    %4230 = vmatpush1.msra.mxu0 %v1450
    %4231 = vmatprep.subr.mxu0 %v1459
    %4232 = vmatpush1.msra.mxu0 %v1458
    %4233 = vmatprep.subr.mxu0 %v1467
    %4234 = vmatpush1.msra.mxu0 %v1466
    %4235 = vmatprep.subr.mxu0 %v1475
    %4236 = vmatpush1.msra.mxu0 %v1474
    %4237 = vmatprep.subr.mxu0 %v1483
    %4238 = vmatpush1.msra.mxu0 %v1482
    %4239 = vmatprep.subr.mxu0 %v1491
    %4240 = vmatpush1.msra.mxu0 %v1490
    %4241 = vmatprep.subr.mxu0 %v1499
    %4242 = vmatpush1.msra.mxu0 %v1498
    %4243 = vmatprep.subr.mxu0 %v1507
    %4244 = vmatpush1.msra.mxu0 %v1506
    %4245 = vmatprep.subr.mxu0 %v1515
    %4246 = vmatpush1.msra.mxu0 %v1514
    %4247 = vmatprep.subr.mxu0 %v1523
    %4248 = vmatpush1.msra.mxu0 %v1522
    %4249 = vmatprep.subr.mxu0 %v1531
    %4250 = vmatpush1.msra.mxu0 %v1530
    %4251 = vmatprep.subr.mxu0 %v1539
    %4252 = vmatpush1.msra.mxu0 %v1538
    %4253 = vmatprep.subr.mxu0 %v1547
    %4254 = vmatpush1.msra.mxu0 %v1546
    %4255 = vmatprep.subr.mxu0 %v1555
    %4256 = vmatpush1.msra.mxu0 %v1554
    %4257 = vmatprep.subr.mxu0 %v1563
    %4258 = vmatpush1.msra.mxu0 %v1562
    %4259 = vmatprep.subr.mxu0 %v1571
    %4260 = vmatpush1.msra.mxu0 %v1570
    %4261 = vmatprep.subr.mxu0 %v1579
    %4262 = vmatpush1.msra.mxu0 %v1578
    %4263 = vmatprep.mubr.f32.mxu0 %v3975
    %4264 = vmatmul.mubr.f32.gmra.mrb[0].mxu0 %v3974
    %v4265 = vpop.f32.mrb[0].mxu0
    %v4266 = vadd.f32 %v3984, %v4265
    %v4267 = vpop.f32.mrb[0].mxu0
    %v4268 = vadd.f32 %v3985, %v4267
    %4269 = vdwg.mxu0
    %v4270 = vxor.u32 %v4053, 2147483648
    %v4271 = vxor.u32 %v4055, 2147483648
    %v4272 = vmul.f32 %v4270, 1.442695
    %v4273 = vpow.pop %v4272
    %v4274 = vmul.f32 %v4271, 1.442695
    %v4275 = vpow.pop %v4274
    %v4276 = vadd.f32 %v4273, 1.0
    %v4277 = vadd.f32 %v4275, 1.0
    %v4278 = vrcp.pop %v4276
    %v4279 = vmul.f32 1.0, %v4278
    %v4280 = vrcp.pop %v4277
    %v4281 = vmul.f32 1.0, %v4280
    %v4282 = vxor.u32 %v4124, 2147483648
    %v4283 = vxor.u32 %v4126, 2147483648
    %v4284 = vmul.f32 %v4282, 1.442695
    %v4285 = vpow.pop %v4284
    %v4286 = vmul.f32 %v4283, 1.442695
    %v4287 = vpow.pop %v4286
    %v4288 = vadd.f32 %v4285, 1.0
    %v4289 = vadd.f32 %v4287, 1.0
    %v4290 = vrcp.pop %v4288
    %v4291 = vmul.f32 1.0, %v4290
    %v4292 = vrcp.pop %v4289
    %v4293 = vmul.f32 1.0, %v4292
    %v4294 = vtanh.pop %v4195
    %v4295 = vtanh.pop %v4197
    %v4296 = vxor.u32 %v4266, 2147483648
    %v4297 = vxor.u32 %v4268, 2147483648
    %v4298 = vmul.f32 %v4296, 1.442695
    %v4299 = vpow.pop %v4298
    %v4300 = vmul.f32 %v4297, 1.442695
    %v4301 = vpow.pop %v4300
    %v4302 = vadd.f32 %v4299, 1.0
    %v4303 = vadd.f32 %v4301, 1.0
    %v4304 = vrcp.pop %v4302
    %v4305 = vmul.f32 1.0, %v4304
    %v4306 = vrcp.pop %v4303
    %v4307 = vmul.f32 1.0, %v4306
    %v4308 = vmul.f32 %v4291, %v3970
    %v4309 = vmul.f32 %v4293, %v3971
    %v4310 = vmul.f32 %v4279, %v4294
    %v4311 = vmul.f32 %v4281, %v4295
    %v4312 = vadd.f32 %v4308, %v4310
    %v4313 = vadd.f32 %v4309, %v4311
    %v4314 = vtanh.pop %v4312
    %v4315 = vtanh.pop %v4313
    %v4316 = vmul.f32 %v4305, %v4314
    %v4317 = vmul.f32 %v4307, %v4315
    %4318 = vst [vmem:[#allocation3 + $0x70] sm:$0xff] %v4316
    %4319 = vst [vmem:[#allocation3 + $0x8] sm:$0xff] %v4317
    %v4320 = vld [vmem:[#allocation3] sm:$0xff]
    %v4321 = vld [vmem:[#allocation3 + $0x8] sm:$0xff]
    %v4322 = vld [vmem:[#allocation3 + $0x10] sm:$0xff]
    %v4323 = vld [vmem:[#allocation3 + $0x18] sm:$0xff]
    %v4324 = vld [vmem:[#allocation3 + $0x20] sm:$0xff]
    %v4325 = vld [vmem:[#allocation3 + $0x28] sm:$0xff]
    %v4326 = vld [vmem:[#allocation3 + $0x30] sm:$0xff]
    %v4327 = vld [vmem:[#allocation3 + $0x38] sm:$0xff]
    %v4328 = vld [vmem:[#allocation3 + $0x40] sm:$0xff]
    %v4329 = vld [vmem:[#allocation3 + $0x48] sm:$0xff]
    %v4330 = vld [vmem:[#allocation3 + $0x50] sm:$0xff]
    %v4331 = vld [vmem:[#allocation3 + $0x58] sm:$0xff]
    %v4332 = vld [vmem:[#allocation3 + $0x60] sm:$0xff]
    %v4333 = vld [vmem:[#allocation3 + $0x68] sm:$0xff]
    %v4334 = vld [vmem:[#allocation3 + $0x70] sm:$0xff]
    %v4335 = vld [vmem:[#allocation3 + $0x78] sm:$0xff]
    %v4336 = vld [vmem:[%s8] sm:$0xff]
    %v4337 = vld [vmem:[%s8 + $0x8] sm:$0xff]
    %v4338 = vld [vmem:[%s8 + $0x10] sm:$0xff]
    %v4339 = vld [vmem:[%s8 + $0x18] sm:$0xff]
    %v4340 = vld [vmem:[%s8 + $0x20] sm:$0xff]
    %v4341 = vld [vmem:[%s8 + $0x28] sm:$0xff]
    %v4342 = vld [vmem:[%s8 + $0x30] sm:$0xff]
    %v4343 = vld [vmem:[%s8 + $0x38] sm:$0xff]
    %v4344 = vld [vmem:[%s8 + $0x40] sm:$0xff]
    %v4345 = vld [vmem:[%s8 + $0x48] sm:$0xff]
    %v4346 = vld [vmem:[%s8 + $0x50] sm:$0xff]
    %v4347 = vld [vmem:[%s8 + $0x58] sm:$0xff]
    %v4348 = vld [vmem:[%s8 + $0x60] sm:$0xff]
    %v4349 = vld [vmem:[%s8 + $0x68] sm:$0xff]
    %v4350 = vld [vmem:[%s8 + $0x70] sm:$0xff]
    %v4351 = vld [vmem:[%s8 + $0x78] sm:$0xff]
    %v4352 = vld [vmem:[%s8 + $0x80] sm:$0xff]
    %v4353 = vld [vmem:[%s8 + $0x88] sm:$0xff]
    %v4354 = vld [vmem:[%s8 + $0x90] sm:$0xff]
    %v4355 = vld [vmem:[%s8 + $0x98] sm:$0xff]
    %v4356 = vld [vmem:[%s8 + $0xa0] sm:$0xff]
    %v4357 = vld [vmem:[%s8 + $0xa8] sm:$0xff]
    %v4358 = vld [vmem:[%s8 + $0xb0] sm:$0xff]
    %v4359 = vld [vmem:[%s8 + $0xb8] sm:$0xff]
    %v4360 = vld [vmem:[%s8 + $0xc0] sm:$0xff]
    %v4361 = vld [vmem:[%s8 + $0xc8] sm:$0xff]
    %v4362 = vld [vmem:[%s8 + $0xd0] sm:$0xff]
    %v4363 = vld [vmem:[%s8 + $0xd8] sm:$0xff]
    %v4364 = vld [vmem:[%s8 + $0xe0] sm:$0xff]
    %v4365 = vld [vmem:[%s8 + $0xe8] sm:$0xff]
    %v4366 = vld [vmem:[%s8 + $0xf0] sm:$0xff]
    %v4367 = vld [vmem:[%s8 + $0xf8] sm:$0xff]
    %v4368 = vld [vmem:[%s9] sm:$0x1]
    %v4370 = vlaneseq
    %v4371 = vshrl.u32 %v4370, 7
    %v4372 = vsub.s32 0, %v4371
    %v4373 = vrot.slane %v4368, %v4372
    %4375 = vmatprep.subr.mxu0 0.0
    %4376 = vmatpush1.msra.mxu0 %v4336
    %4377 = vmatprep.subr.mxu0 0.0
    %4378 = vmatpush1.msra.mxu0 %v4337
    %4379 = vmatprep.subr.mxu0 0.0
    %4380 = vmatpush1.msra.mxu0 %v4338
    %4381 = vmatprep.subr.mxu0 0.0
    %4382 = vmatpush1.msra.mxu0 %v4339
    %4383 = vmatprep.subr.mxu0 0.0
    %4384 = vmatpush1.msra.mxu0 %v4340
    %4385 = vmatprep.subr.mxu0 0.0
    %4386 = vmatpush1.msra.mxu0 %v4341
    %4387 = vmatprep.subr.mxu0 0.0
    %4388 = vmatpush1.msra.mxu0 %v4342
    %4389 = vmatprep.subr.mxu0 0.0
    %4390 = vmatpush1.msra.mxu0 %v4343
    %4391 = vmatprep.subr.mxu0 0.0
    %4392 = vmatpush1.msra.mxu0 %v4344
    %4393 = vmatprep.subr.mxu0 0.0
    %4394 = vmatpush1.msra.mxu0 %v4345
    %4395 = vmatprep.subr.mxu0 0.0
    %4396 = vmatpush1.msra.mxu0 %v4346
    %4397 = vmatprep.subr.mxu0 0.0
    %4398 = vmatpush1.msra.mxu0 %v4347
    %4399 = vmatprep.subr.mxu0 0.0
    %4400 = vmatpush1.msra.mxu0 %v4348
    %4401 = vmatprep.subr.mxu0 0.0
    %4402 = vmatpush1.msra.mxu0 %v4349
    %4403 = vmatprep.subr.mxu0 0.0
    %4404 = vmatpush1.msra.mxu0 %v4350
    %4405 = vmatprep.subr.mxu0 0.0
    %4406 = vmatpush1.msra.mxu0 %v4351
    %4407 = vmatprep.subr.mxu0 0.0
    %4408 = vmatpush1.msra.mxu0 %v4352
    %4409 = vmatprep.subr.mxu0 0.0
    %4410 = vmatpush1.msra.mxu0 %v4353
    %4411 = vmatprep.subr.mxu0 0.0
    %4412 = vmatpush1.msra.mxu0 %v4354
    %4413 = vmatprep.subr.mxu0 0.0
    %4414 = vmatpush1.msra.mxu0 %v4355
    %4415 = vmatprep.subr.mxu0 0.0
    %4416 = vmatpush1.msra.mxu0 %v4356
    %4417 = vmatprep.subr.mxu0 0.0
    %4418 = vmatpush1.msra.mxu0 %v4357
    %4419 = vmatprep.subr.mxu0 0.0
    %4420 = vmatpush1.msra.mxu0 %v4358
    %4421 = vmatprep.subr.mxu0 0.0
    %4422 = vmatpush1.msra.mxu0 %v4359
    %4423 = vmatprep.subr.mxu0 0.0
    %4424 = vmatpush1.msra.mxu0 %v4360
    %4425 = vmatprep.subr.mxu0 0.0
    %4426 = vmatpush1.msra.mxu0 %v4361
    %4427 = vmatprep.subr.mxu0 0.0
    %4428 = vmatpush1.msra.mxu0 %v4362
    %4429 = vmatprep.subr.mxu0 0.0
    %4430 = vmatpush1.msra.mxu0 %v4363
    %4431 = vmatprep.subr.mxu0 0.0
    %4432 = vmatpush1.msra.mxu0 %v4364
    %4433 = vmatprep.subr.mxu0 0.0
    %4434 = vmatpush1.msra.mxu0 %v4365
    %4435 = vmatprep.subr.mxu0 0.0
    %4436 = vmatpush1.msra.mxu0 %v4366
    %4437 = vmatprep.subr.mxu0 0.0
    %4438 = vmatpush1.msra.mxu0 %v4367
    %4439 = vmatprep.mubr.f32.mxu0 %v4321
    %4440 = vmatmul.mubr.f32.gmra.mrb[0].mxu0 %v4320
    %v4441 = vpop.f32.mrb[0].mxu0
    %v4442 = vadd.f32 %v4373, %v4441
    %v4443 = vpop.f32.mrb[0].mxu0
    %4444 = vmatprep.mubr.f32.mxu0 %v4323
    %4445 = vmatmul.mubr.f32.gmra.mrb[0].mxu0 %v4322
    %v4446 = vpop.f32.mrb[0].mxu0
    %v4447 = vadd.f32 %v4373, %v4446
    %v4448 = vpop.f32.mrb[0].mxu0
    %4449 = vmatprep.mubr.f32.mxu0 %v4325
    %4450 = vmatmul.mubr.f32.gmra.mrb[0].mxu0 %v4324
    %v4451 = vpop.f32.mrb[0].mxu0
    %v4452 = vadd.f32 %v4373, %v4451
    %v4453 = vpop.f32.mrb[0].mxu0
    %4454 = vmatprep.mubr.f32.mxu0 %v4327
    %4455 = vmatmul.mubr.f32.gmra.mrb[0].mxu0 %v4326
    %v4456 = vpop.f32.mrb[0].mxu0
    %v4457 = vadd.f32 %v4373, %v4456
    %v4458 = vpop.f32.mrb[0].mxu0
    %4459 = vmatprep.mubr.f32.mxu0 %v4329
    %4460 = vmatmul.mubr.f32.gmra.mrb[0].mxu0 %v4328
    %v4461 = vpop.f32.mrb[0].mxu0
    %v4462 = vadd.f32 %v4373, %v4461
    %v4463 = vpop.f32.mrb[0].mxu0
    %4464 = vmatprep.mubr.f32.mxu0 %v4331
    %4465 = vmatmul.mubr.f32.gmra.mrb[0].mxu0 %v4330
    %v4466 = vpop.f32.mrb[0].mxu0
    %v4467 = vadd.f32 %v4373, %v4466
    %v4468 = vpop.f32.mrb[0].mxu0
    %4469 = vmatprep.mubr.f32.mxu0 %v4333
    %4470 = vmatmul.mubr.f32.gmra.mrb[0].mxu0 %v4332
    %v4471 = vpop.f32.mrb[0].mxu0
    %v4472 = vadd.f32 %v4373, %v4471
    %v4473 = vpop.f32.mrb[0].mxu0
    %4474 = vmatprep.mubr.f32.mxu0 %v4335
    %4475 = vmatmul.mubr.f32.gmra.mrb[0].mxu0 %v4334
    %v4476 = vpop.f32.mrb[0].mxu0
    %v4477 = vadd.f32 %v4373, %v4476
    %v4478 = vpop.f32.mrb[0].mxu0
    %4479 = vdwg.mxu0
    %4480 = vst [vmem:[%s10] sm:$0xff] %v4442
    %4481 = vst [vmem:[%s10 + $0x8] sm:$0xff] %v4447
    %4482 = vst [vmem:[%s10 + $0x10] sm:$0xff] %v4452
    %4483 = vst [vmem:[%s10 + $0x18] sm:$0xff] %v4457
    %4484 = vst [vmem:[%s10 + $0x20] sm:$0xff] %v4462
    %4485 = vst [vmem:[%s10 + $0x28] sm:$0xff] %v4467
    %4486 = vst [vmem:[%s10 + $0x30] sm:$0xff] %v4472
    %4487 = vst [vmem:[%s10 + $0x38] sm:$0xff] %v4477
    // Predicated region
    $region50: #{model9_forward.1} parent=1 // pred_check
      _
    $region51: #{model9_forward.1} parent=1 // pred_check_branch
      %4489 = sbr.rel (0) target = $region53
    $region52: #{model9_forward.1} parent=1 // pred_region
      _
    $region53: #{model9_forward.1} parent=1 // pred_fallthru
      _
    // Predicated region
    $region54: #{model9_forward.1} parent=1 // pred_check
      _
    $region55: #{model9_forward.1} parent=1 // pred_check_branch
      %4491 = sbr.rel (0) target = $region57
    $region56: #{model9_forward.1} parent=1 // pred_region
      _
    $region57: #{model9_forward.1} parent=1 // pred_fallthru
      _
    %4492 = vsyncpa [#allocation5], 1
    %4493 = vsyncpa [#allocation7], 1

</llo_original>
